<compile_context>
chip_gen: v6e
topology: v6e:2x2x1
jax: 0.10.0
libtpu: 0.0.40
codegen_flags: <defaults>
</compile_context>

<pallas_src>
import math

import jax
import jax.numpy as jnp
from jax.experimental import pallas as pl
from jax.experimental.pallas import tpu as pltpu

# --- model config (small, synthetic) ---
B = 2            # batch
S = 8            # sequence length
H = 32           # hidden_size
NH = 4           # num_attention_heads
HD = H // NH     # attention_head_size
I = 4 * H        # intermediate_size (128 -> lane-dense param slab)
L = 2            # num_hidden_layers
NP = 10          # packed small-param rows per layer
LN_EPS = 1e-12

_SQRT_2_OVER_PI = math.sqrt(2.0 / math.pi)


def _gelu(x):
    # ACT2FN['gelu_new'] (tanh approximation).
    return 0.5 * x * (1.0 + jnp.tanh(_SQRT_2_OVER_PI * (x + 0.044715 * x * x * x)))


def _layernorm(y, gamma, beta):
    mean = jnp.mean(y, axis=-1, keepdims=True)
    var = jnp.mean((y - mean) ** 2, axis=-1, keepdims=True)
    return (y - mean) * jax.lax.rsqrt(var + LN_EPS) * gamma + beta


# Packed small-param row layout (per layer, each row padded to I lanes):
#   0: bq (pre-scaled by 1/sqrt(HD))   1: bk    2: bv    3: bo (attn out dense)
#   4: bi (intermediate, full I)       5: LN1 gamma   6: LN1 beta
#   7: bd (output dense)               8: LN2 gamma   9: LN2 beta


def bert_encoder_kernel(x_ref, mask_ref, wqkv_ref, wo_ref, wi_ref, wd_ref, p_ref,
                        out_ref, ctx_sc):
    """Grid = (batch,). One step == ALL layers for one batch element.

    Weight refs hold every layer (constant index_map -> DMA'd once); the
    hidden state is carried as a value through the unrolled layer loop.
    """
    x = x_ref[0]                     # (S, H) hidden state for this batch element
    mask = mask_ref[0]               # (1, S) additive mask, broadcasts over rows

    for l in range(L):               # static unroll, L=2
        wqkv = wqkv_ref[l]           # (H, 3H)  (query block pre-scaled)
        wo = wo_ref[l]               # (H, H)
        wi = wi_ref[l]               # (H, I)
        wd = wd_ref[l]               # (I, H)
        p = p_ref[l]                 # (NP, I) packed small params

        # --- BertSelfAttention: fused QKV projection (one MXU matmul) ---
        qkv = jnp.dot(x, wqkv, preferred_element_type=jnp.float32)   # (S, 3H)
        q = qkv[:, 0 * H:1 * H] + p[0:1, :H]
        k = qkv[:, 1 * H:2 * H] + p[1:2, :H]
        v = qkv[:, 2 * H:3 * H] + p[2:3, :H]

        # --- per-head scaled dot-product attention ---
        # Each head's context goes into its (S, HD) slice of the ctx scratch;
        # the head-concat + output projection is then a single (S,H)@(H,H).
        for h in range(NH):
            lo = h * HD
            qh = q[:, lo:lo + HD]                                    # (S, HD)
            kh = k[:, lo:lo + HD]
            vh = v[:, lo:lo + HD]
            # scores = qh . kh^T via dot_general contracting last dims (MXU
            # handles the transpose).  Scale already folded into Wq/bq.
            scores = jax.lax.dot_general(
                qh, kh, (((1,), (1,)), ((), ())),
                preferred_element_type=jnp.float32) + mask           # (S, S)
            m = jnp.max(scores, axis=-1, keepdims=True)
            e = jnp.exp(scores - m)
            denom = jnp.sum(e, axis=-1, keepdims=True)               # >= 1
            probs = e * pl.reciprocal(denom, approx=True)
            # TODO(synk): attention-probs dropout omitted (inference semantics).
            ctx_sc[:, lo:lo + HD] = jnp.dot(probs, vh,
                                            preferred_element_type=jnp.float32)

        attn = jnp.dot(ctx_sc[...], wo,
                       preferred_element_type=jnp.float32) + p[3:4, :H]

        # --- BertSelfOutput: residual + LayerNorm (dropout = no-op) ---
        y = _layernorm(attn + x, p[5:6, :H], p[6:7, :H])

        # --- BertIntermediate: dense + GELU ---
        inter = jnp.dot(y, wi, preferred_element_type=jnp.float32) + p[4:5, :]  # (S, I)
        inter = _gelu(inter)

        # --- BertOutput: dense + residual + LayerNorm ---
        z = jnp.dot(inter, wd, preferred_element_type=jnp.float32) + p[7:8, :H]
        x = _layernorm(z + y, p[8:9, :H], p[9:10, :H])

    out_ref[0] = x


def pack_params(layer_params):
    """Per-layer PyTorch-style params -> fused/packed kernel operands."""
    scale = 1.0 / math.sqrt(HD)

    def pad_row(v):
        return jnp.pad(v, (0, I - v.shape[0]))

    wqkv_l, wo_l, wi_l, wd_l, p_l = [], [], [], [], []
    for lp in layer_params:
        (wq, bq, wk, bk, wv, bv, wo, bo, g1, be1, wi, bi, wd, bd, g2, be2) = lp
        wqkv_l.append(jnp.concatenate([wq * scale, wk, wv], axis=1))   # (H, 3H)
        wo_l.append(wo)
        wi_l.append(wi)
        wd_l.append(wd)
        p_l.append(jnp.stack([
            pad_row(bq * scale), pad_row(bk), pad_row(bv), pad_row(bo),
            bi,                                      # already length I
            pad_row(g1), pad_row(be1),
            pad_row(bd), pad_row(g2), pad_row(be2),
        ]))                                          # (NP, I)
    return (jnp.stack(wqkv_l), jnp.stack(wo_l), jnp.stack(wi_l),
            jnp.stack(wd_l), jnp.stack(p_l))


def bert_encoder(hidden_states, attention_mask, packed):
    """hidden_states: (B, S, H) f32; attention_mask: (B, 1, S) additive f32."""
    wqkv, wo, wi, wd, p = packed
    return pl.pallas_call(
        bert_encoder_kernel,
        out_shape=jax.ShapeDtypeStruct((B, S, H), jnp.float32),
        grid_spec=pltpu.PrefetchScalarGridSpec(
            num_scalar_prefetch=0,
            grid=(B,),
            in_specs=[
                pl.BlockSpec((1, S, H), lambda b: (b, 0, 0)),       # hidden
                pl.BlockSpec((1, 1, S), lambda b: (b, 0, 0)),       # mask
                # All layers resident, constant index_map -> fetched once.
                pl.BlockSpec((L, H, 3 * H), lambda b: (0, 0, 0)),   # Wqkv
                pl.BlockSpec((L, H, H), lambda b: (0, 0, 0)),       # Wo
                pl.BlockSpec((L, H, I), lambda b: (0, 0, 0)),       # Wi
                pl.BlockSpec((L, I, H), lambda b: (0, 0, 0)),       # Wd
                pl.BlockSpec((L, NP, I), lambda b: (0, 0, 0)),      # packed small params
            ],
            out_specs=pl.BlockSpec((1, S, H), lambda b: (b, 0, 0)),
            scratch_shapes=[pltpu.VMEM((S, H), jnp.float32)],       # per-head ctx slab
        ),
        compiler_params=pltpu.CompilerParams(
            dimension_semantics=("parallel",)),
    )(hidden_states, attention_mask, wqkv, wo, wi, wd, p)


def reference(hidden_states, attention_mask, layer_params):
    """Pure-JAX reference mirroring the PyTorch BertEncoder (eval mode)."""
    x = hidden_states
    ext_mask = attention_mask[:, None, :, :]                          # (B,1,1,S)
    for lp in layer_params:
        (wq, bq, wk, bk, wv, bv, wo, bo, g1, be1, wi, bi, wd, bd, g2, be2) = lp
        q = x @ wq + bq
        k = x @ wk + bk
        v = x @ wv + bv

        def split(t):
            return t.reshape(B, S, NH, HD).transpose(0, 2, 1, 3)

        qh, kh, vh = split(q), split(k), split(v)
        scores = jnp.einsum('bhqd,bhkd->bhqk', qh, kh) / math.sqrt(HD) + ext_mask
        probs = jax.nn.softmax(scores, axis=-1)
        ctx = jnp.einsum('bhqk,bhkd->bhqd', probs, vh)
        ctx = ctx.transpose(0, 2, 1, 3).reshape(B, S, H)
        attn = ctx @ wo + bo
        y = _layernorm(attn + x, g1, be1)
        inter = _gelu(y @ wi + bi)
        x = _layernorm(inter @ wd + bd + y, g2, be2)
    return x


if __name__ == "__main__":
    key = jax.random.PRNGKey(0)
    k_x, k_p = jax.random.split(key)

    hidden_states = jax.random.normal(k_x, (B, S, H), dtype=jnp.float32)

    # BERT-style additive mask: 0 for visible tokens, -10000 for padded tokens.
    attention_mask = jnp.zeros((B, 1, S), jnp.float32).at[1, 0, S - 2:].set(-10000.0)

    def lin_init(kw, kb, fan_in, shape_w):
        bound = 1.0 / math.sqrt(fan_in)
        w = jax.random.uniform(kw, shape_w, jnp.float32, -bound, bound)
        b = jax.random.uniform(kb, (shape_w[1],), jnp.float32, -bound, bound)
        return w, b

    layer_params = []
    pkeys = jax.random.split(k_p, L)
    for li in range(L):
        ks = jax.random.split(pkeys[li], 12)
        wq, bq = lin_init(ks[0], ks[1], H, (H, H))
        wk, bk = lin_init(ks[2], ks[3], H, (H, H))
        wv, bv = lin_init(ks[4], ks[5], H, (H, H))
        wo, bo = lin_init(ks[6], ks[7], H, (H, H))
        wi, bi = lin_init(ks[8], ks[9], H, (H, I))
        wd, bd = lin_init(ks[10], ks[11], I, (I, H))
        g1 = jnp.ones((H,), jnp.float32)
        be1 = jnp.zeros((H,), jnp.float32)
        g2 = jnp.ones((H,), jnp.float32)
        be2 = jnp.zeros((H,), jnp.float32)
        layer_params.append((wq, bq, wk, bk, wv, bv, wo, bo, g1, be1,
                             wi, bi, wd, bd, g2, be2))

    packed = pack_params(layer_params)

    out = jax.block_until_ready(bert_encoder(hidden_states, attention_mask, packed))
    ref = reference(hidden_states, attention_mask, layer_params)

    assert out.shape == (B, S, H)
    # Tolerance relaxed from 2e-4 to 2e-3 to accommodate the approx-reciprocal
    # softmax denominator (pl.reciprocal(approx=True)); everything else is f32.
    assert jnp.allclose(out, ref, atol=2e-3, rtol=2e-3), "mismatch vs reference"

    print("KERNEL_OK")
</pallas_src>

<mosaic_0001>
module attributes {stable_mosaic.version = 11 : i64} {
  func.func @bert_encoder_kernel(%arg0: i32, %arg1: memref<1x8x32xf32, #tpu.memory_space<vmem>>, %arg2: memref<1x1x8xf32, #tpu.memory_space<vmem>>, %arg3: memref<2x32x96xf32, #tpu.memory_space<vmem>>, %arg4: memref<2x32x32xf32, #tpu.memory_space<vmem>>, %arg5: memref<2x32x128xf32, #tpu.memory_space<vmem>>, %arg6: memref<2x128x32xf32, #tpu.memory_space<vmem>>, %arg7: memref<2x10x128xf32, #tpu.memory_space<vmem>>, %arg8: memref<1x8x32xf32, #tpu.memory_space<vmem>>, %arg9: memref<8x32xf32, #tpu.memory_space<vmem>>) attributes {dimension_semantics = [#tpu.dimension_semantics<parallel>], iteration_bounds = array<i64: 2>, scalar_prefetch = 0 : i64, scratch_operands = 1 : i64, tpu.core_type = #tpu.core_type<tc>, window_params = [{transform_indices = @transform_0, window_bounds = array<i64: 1, 8, 32>}, {transform_indices = @transform_1, window_bounds = array<i64: 1, 1, 8>}, {pipeline_mode = #tpu.pipeline_mode<synchronous>, transform_indices = @transform_2, window_bounds = array<i64: 2, 32, 96>}, {pipeline_mode = #tpu.pipeline_mode<synchronous>, transform_indices = @transform_3, window_bounds = array<i64: 2, 32, 32>}, {pipeline_mode = #tpu.pipeline_mode<synchronous>, transform_indices = @transform_4, window_bounds = array<i64: 2, 32, 128>}, {pipeline_mode = #tpu.pipeline_mode<synchronous>, transform_indices = @transform_5, window_bounds = array<i64: 2, 128, 32>}, {pipeline_mode = #tpu.pipeline_mode<synchronous>, transform_indices = @transform_6, window_bounds = array<i64: 2, 10, 128>}, {transform_indices = @transform_7, window_bounds = array<i64: 1, 8, 32>}]} {
    %c0 = arith.constant 0 : index
    %c0_0 = arith.constant 0 : index
    %c0_1 = arith.constant 0 : index
    %0 = vector.load %arg1[%c0, %c0_0, %c0_1] : memref<1x8x32xf32, #tpu.memory_space<vmem>>, vector<1x8x32xf32>
    %1 = vector.shape_cast %0 : vector<1x8x32xf32> to vector<8x32xf32>
    %c0_2 = arith.constant 0 : index
    %c0_3 = arith.constant 0 : index
    %c0_4 = arith.constant 0 : index
    %2 = vector.load %arg2[%c0_2, %c0_3, %c0_4] : memref<1x1x8xf32, #tpu.memory_space<vmem>>, vector<1x1x8xf32>
    %3 = vector.shape_cast %2 : vector<1x1x8xf32> to vector<1x8xf32>
    %c0_5 = arith.constant 0 : index
    %c0_6 = arith.constant 0 : index
    %c0_7 = arith.constant 0 : index
    %4 = vector.load %arg3[%c0_5, %c0_6, %c0_7] : memref<2x32x96xf32, #tpu.memory_space<vmem>>, vector<1x32x96xf32>
    %5 = vector.shape_cast %4 : vector<1x32x96xf32> to vector<32x96xf32>
    %c0_8 = arith.constant 0 : index
    %c0_9 = arith.constant 0 : index
    %c0_10 = arith.constant 0 : index
    %6 = vector.load %arg4[%c0_8, %c0_9, %c0_10] : memref<2x32x32xf32, #tpu.memory_space<vmem>>, vector<1x32x32xf32>
    %7 = vector.shape_cast %6 : vector<1x32x32xf32> to vector<32x32xf32>
    %c0_11 = arith.constant 0 : index
    %c0_12 = arith.constant 0 : index
    %c0_13 = arith.constant 0 : index
    %8 = vector.load %arg5[%c0_11, %c0_12, %c0_13] : memref<2x32x128xf32, #tpu.memory_space<vmem>>, vector<1x32x128xf32>
    %9 = vector.shape_cast %8 : vector<1x32x128xf32> to vector<32x128xf32>
    %c0_14 = arith.constant 0 : index
    %c0_15 = arith.constant 0 : index
    %c0_16 = arith.constant 0 : index
    %10 = vector.load %arg6[%c0_14, %c0_15, %c0_16] : memref<2x128x32xf32, #tpu.memory_space<vmem>>, vector<1x128x32xf32>
    %11 = vector.shape_cast %10 : vector<1x128x32xf32> to vector<128x32xf32>
    %c0_17 = arith.constant 0 : index
    %c0_18 = arith.constant 0 : index
    %c0_19 = arith.constant 0 : index
    %12 = vector.load %arg7[%c0_17, %c0_18, %c0_19] : memref<2x10x128xf32, #tpu.memory_space<vmem>>, vector<1x10x128xf32>
    %13 = vector.shape_cast %12 : vector<1x10x128xf32> to vector<10x128xf32>
    %cst = arith.constant dense<0.000000e+00> : vector<8x96xf32>
    %14 = tpu.matmul %1, %5, %cst {dimension_numbers = #tpu.dot_dimension_numbers<[1], [0], [0], [1], [0, 0, 1, 1], [], []>} : vector<8x32xf32>, vector<32x96xf32>, vector<8x96xf32> -> vector<8x96xf32>
    %15 = vector.extract_strided_slice %14 {offsets = [0, 0], sizes = [8, 32], strides = [1, 1]} : vector<8x96xf32> to vector<8x32xf32>
    %16 = vector.extract_strided_slice %13 {offsets = [0, 0], sizes = [1, 32], strides = [1, 1]} : vector<10x128xf32> to vector<1x32xf32>
    %17 = vector.broadcast %16 : vector<1x32xf32> to vector<8x32xf32>
    %18 = arith.addf %15, %17 : vector<8x32xf32>
    %19 = vector.extract_strided_slice %14 {offsets = [0, 32], sizes = [8, 32], strides = [1, 1]} : vector<8x96xf32> to vector<8x32xf32>
    %20 = vector.extract_strided_slice %13 {offsets = [1, 0], sizes = [1, 32], strides = [1, 1]} : vector<10x128xf32> to vector<1x32xf32>
    %21 = vector.broadcast %20 : vector<1x32xf32> to vector<8x32xf32>
    %22 = arith.addf %19, %21 : vector<8x32xf32>
    %23 = vector.extract_strided_slice %14 {offsets = [0, 64], sizes = [8, 32], strides = [1, 1]} : vector<8x96xf32> to vector<8x32xf32>
    %24 = vector.extract_strided_slice %13 {offsets = [2, 0], sizes = [1, 32], strides = [1, 1]} : vector<10x128xf32> to vector<1x32xf32>
    %25 = vector.broadcast %24 : vector<1x32xf32> to vector<8x32xf32>
    %26 = arith.addf %23, %25 : vector<8x32xf32>
    %27 = vector.extract_strided_slice %18 {offsets = [0, 0], sizes = [8, 8], strides = [1, 1]} : vector<8x32xf32> to vector<8x8xf32>
    %28 = vector.extract_strided_slice %22 {offsets = [0, 0], sizes = [8, 8], strides = [1, 1]} : vector<8x32xf32> to vector<8x8xf32>
    %29 = vector.extract_strided_slice %26 {offsets = [0, 0], sizes = [8, 8], strides = [1, 1]} : vector<8x32xf32> to vector<8x8xf32>
    %cst_20 = arith.constant dense<0.000000e+00> : vector<8x8xf32>
    %30 = tpu.matmul %27, %28, %cst_20 {dimension_numbers = #tpu.dot_dimension_numbers<[1], [1], [0], [0], [0, 0, 1, 0], [], []>} : vector<8x8xf32>, vector<8x8xf32>, vector<8x8xf32> -> vector<8x8xf32>
    %31 = vector.broadcast %3 : vector<1x8xf32> to vector<8x8xf32>
    %32 = arith.addf %30, %31 : vector<8x8xf32>
    %cst_21 = arith.constant dense<0xFF800000> : vector<8xf32>
    %33 = vector.multi_reduction <maximumf>, %32, %cst_21 [1] : vector<8x8xf32> to vector<8xf32>
    %34 = vector.shape_cast %33 : vector<8xf32> to vector<8x1xf32>
    %35 = vector.broadcast %34 : vector<8x1xf32> to vector<8x8xf32>
    %36 = arith.subf %32, %35 : vector<8x8xf32>
    %37 = math.exp %36 : vector<8x8xf32>
    %cst_22 = arith.constant dense<0.000000e+00> : vector<8xf32>
    %38 = vector.multi_reduction <add>, %37, %cst_22 [1] : vector<8x8xf32> to vector<8xf32>
    %39 = vector.shape_cast %38 : vector<8xf32> to vector<8x1xf32>
    %40 = tpu.reciprocal %39 {approx = true} : vector<8x1xf32> -> vector<8x1xf32>
    %41 = vector.broadcast %40 : vector<8x1xf32> to vector<8x8xf32>
    %42 = arith.mulf %37, %41 : vector<8x8xf32>
    %cst_23 = arith.constant dense<0.000000e+00> : vector<8x8xf32>
    %43 = tpu.matmul %42, %29, %cst_23 {dimension_numbers = #tpu.dot_dimension_numbers<[1], [0], [0], [1], [0, 0, 1, 1], [], []>} : vector<8x8xf32>, vector<8x8xf32>, vector<8x8xf32> -> vector<8x8xf32>
    %c0_24 = arith.constant 0 : index
    %c0_25 = arith.constant 0 : index
    %44 = vector.load %arg9[%c0_24, %c0_25] : memref<8x32xf32, #tpu.memory_space<vmem>>, vector<8x8xf32>
    tpu.vector_store %arg9[%c0_24, %c0_25], %43 {strides = array<i32>} : memref<8x32xf32, #tpu.memory_space<vmem>>, vector<8x8xf32>,
    %45 = vector.extract_strided_slice %18 {offsets = [0, 8], sizes = [8, 8], strides = [1, 1]} : vector<8x32xf32> to vector<8x8xf32>
    %46 = vector.extract_strided_slice %22 {offsets = [0, 8], sizes = [8, 8], strides = [1, 1]} : vector<8x32xf32> to vector<8x8xf32>
    %47 = vector.extract_strided_slice %26 {offsets = [0, 8], sizes = [8, 8], strides = [1, 1]} : vector<8x32xf32> to vector<8x8xf32>
    %cst_26 = arith.constant dense<0.000000e+00> : vector<8x8xf32>
    %48 = tpu.matmul %45, %46, %cst_26 {dimension_numbers = #tpu.dot_dimension_numbers<[1], [1], [0], [0], [0, 0, 1, 0], [], []>} : vector<8x8xf32>, vector<8x8xf32>, vector<8x8xf32> -> vector<8x8xf32>
    %49 = vector.broadcast %3 : vector<1x8xf32> to vector<8x8xf32>
    %50 = arith.addf %48, %49 : vector<8x8xf32>
    %cst_27 = arith.constant dense<0xFF800000> : vector<8xf32>
    %51 = vector.multi_reduction <maximumf>, %50, %cst_27 [1] : vector<8x8xf32> to vector<8xf32>
    %52 = vector.shape_cast %51 : vector<8xf32> to vector<8x1xf32>
    %53 = vector.broadcast %52 : vector<8x1xf32> to vector<8x8xf32>
    %54 = arith.subf %50, %53 : vector<8x8xf32>
    %55 = math.exp %54 : vector<8x8xf32>
    %cst_28 = arith.constant dense<0.000000e+00> : vector<8xf32>
    %56 = vector.multi_reduction <add>, %55, %cst_28 [1] : vector<8x8xf32> to vector<8xf32>
    %57 = vector.shape_cast %56 : vector<8xf32> to vector<8x1xf32>
    %58 = tpu.reciprocal %57 {approx = true} : vector<8x1xf32> -> vector<8x1xf32>
    %59 = vector.broadcast %58 : vector<8x1xf32> to vector<8x8xf32>
    %60 = arith.mulf %55, %59 : vector<8x8xf32>
    %cst_29 = arith.constant dense<0.000000e+00> : vector<8x8xf32>
    %61 = tpu.matmul %60, %47, %cst_29 {dimension_numbers = #tpu.dot_dimension_numbers<[1], [0], [0], [1], [0, 0, 1, 1], [], []>} : vector<8x8xf32>, vector<8x8xf32>, vector<8x8xf32> -> vector<8x8xf32>
    %c0_30 = arith.constant 0 : index
    %c8 = arith.constant 8 : index
    %62 = vector.load %arg9[%c0_30, %c8] : memref<8x32xf32, #tpu.memory_space<vmem>>, vector<8x8xf32>
    tpu.vector_store %arg9[%c0_30, %c8], %61 {strides = array<i32>} : memref<8x32xf32, #tpu.memory_space<vmem>>, vector<8x8xf32>,
    %63 = vector.extract_strided_slice %18 {offsets = [0, 16], sizes = [8, 8], strides = [1, 1]} : vector<8x32xf32> to vector<8x8xf32>
    %64 = vector.extract_strided_slice %22 {offsets = [0, 16], sizes = [8, 8], strides = [1, 1]} : vector<8x32xf32> to vector<8x8xf32>
    %65 = vector.extract_strided_slice %26 {offsets = [0, 16], sizes = [8, 8], strides = [1, 1]} : vector<8x32xf32> to vector<8x8xf32>
    %cst_31 = arith.constant dense<0.000000e+00> : vector<8x8xf32>
    %66 = tpu.matmul %63, %64, %cst_31 {dimension_numbers = #tpu.dot_dimension_numbers<[1], [1], [0], [0], [0, 0, 1, 0], [], []>} : vector<8x8xf32>, vector<8x8xf32>, vector<8x8xf32> -> vector<8x8xf32>
    %67 = vector.broadcast %3 : vector<1x8xf32> to vector<8x8xf32>
    %68 = arith.addf %66, %67 : vector<8x8xf32>
    %cst_32 = arith.constant dense<0xFF800000> : vector<8xf32>
    %69 = vector.multi_reduction <maximumf>, %68, %cst_32 [1] : vector<8x8xf32> to vector<8xf32>
    %70 = vector.shape_cast %69 : vector<8xf32> to vector<8x1xf32>
    %71 = vector.broadcast %70 : vector<8x1xf32> to vector<8x8xf32>
    %72 = arith.subf %68, %71 : vector<8x8xf32>
    %73 = math.exp %72 : vector<8x8xf32>
    %cst_33 = arith.constant dense<0.000000e+00> : vector<8xf32>
    %74 = vector.multi_reduction <add>, %73, %cst_33 [1] : vector<8x8xf32> to vector<8xf32>
    %75 = vector.shape_cast %74 : vector<8xf32> to vector<8x1xf32>
    %76 = tpu.reciprocal %75 {approx = true} : vector<8x1xf32> -> vector<8x1xf32>
    %77 = vector.broadcast %76 : vector<8x1xf32> to vector<8x8xf32>
    %78 = arith.mulf %73, %77 : vector<8x8xf32>
    %cst_34 = arith.constant dense<0.000000e+00> : vector<8x8xf32>
    %79 = tpu.matmul %78, %65, %cst_34 {dimension_numbers = #tpu.dot_dimension_numbers<[1], [0], [0], [1], [0, 0, 1, 1], [], []>} : vector<8x8xf32>, vector<8x8xf32>, vector<8x8xf32> -> vector<8x8xf32>
    %c0_35 = arith.constant 0 : index
    %c16 = arith.constant 16 : index
    %80 = vector.load %arg9[%c0_35, %c16] : memref<8x32xf32, #tpu.memory_space<vmem>>, vector<8x8xf32>
    tpu.vector_store %arg9[%c0_35, %c16], %79 {strides = array<i32>} : memref<8x32xf32, #tpu.memory_space<vmem>>, vector<8x8xf32>,
    %81 = vector.extract_strided_slice %18 {offsets = [0, 24], sizes = [8, 8], strides = [1, 1]} : vector<8x32xf32> to vector<8x8xf32>
    %82 = vector.extract_strided_slice %22 {offsets = [0, 24], sizes = [8, 8], strides = [1, 1]} : vector<8x32xf32> to vector<8x8xf32>
    %83 = vector.extract_strided_slice %26 {offsets = [0, 24], sizes = [8, 8], strides = [1, 1]} : vector<8x32xf32> to vector<8x8xf32>
    %cst_36 = arith.constant dense<0.000000e+00> : vector<8x8xf32>
    %84 = tpu.matmul %81, %82, %cst_36 {dimension_numbers = #tpu.dot_dimension_numbers<[1], [1], [0], [0], [0, 0, 1, 0], [], []>} : vector<8x8xf32>, vector<8x8xf32>, vector<8x8xf32> -> vector<8x8xf32>
    %85 = vector.broadcast %3 : vector<1x8xf32> to vector<8x8xf32>
    %86 = arith.addf %84, %85 : vector<8x8xf32>
    %cst_37 = arith.constant dense<0xFF800000> : vector<8xf32>
    %87 = vector.multi_reduction <maximumf>, %86, %cst_37 [1] : vector<8x8xf32> to vector<8xf32>
    %88 = vector.shape_cast %87 : vector<8xf32> to vector<8x1xf32>
    %89 = vector.broadcast %88 : vector<8x1xf32> to vector<8x8xf32>
    %90 = arith.subf %86, %89 : vector<8x8xf32>
    %91 = math.exp %90 : vector<8x8xf32>
    %cst_38 = arith.constant dense<0.000000e+00> : vector<8xf32>
    %92 = vector.multi_reduction <add>, %91, %cst_38 [1] : vector<8x8xf32> to vector<8xf32>
    %93 = vector.shape_cast %92 : vector<8xf32> to vector<8x1xf32>
    %94 = tpu.reciprocal %93 {approx = true} : vector<8x1xf32> -> vector<8x1xf32>
    %95 = vector.broadcast %94 : vector<8x1xf32> to vector<8x8xf32>
    %96 = arith.mulf %91, %95 : vector<8x8xf32>
    %cst_39 = arith.constant dense<0.000000e+00> : vector<8x8xf32>
    %97 = tpu.matmul %96, %83, %cst_39 {dimension_numbers = #tpu.dot_dimension_numbers<[1], [0], [0], [1], [0, 0, 1, 1], [], []>} : vector<8x8xf32>, vector<8x8xf32>, vector<8x8xf32> -> vector<8x8xf32>
    %c0_40 = arith.constant 0 : index
    %c24 = arith.constant 24 : index
    %98 = vector.load %arg9[%c0_40, %c24] : memref<8x32xf32, #tpu.memory_space<vmem>>, vector<8x8xf32>
    tpu.vector_store %arg9[%c0_40, %c24], %97 {strides = array<i32>} : memref<8x32xf32, #tpu.memory_space<vmem>>, vector<8x8xf32>,
    %c0_41 = arith.constant 0 : index
    %c0_42 = arith.constant 0 : index
    %99 = vector.load %arg9[%c0_41, %c0_42] : memref<8x32xf32, #tpu.memory_space<vmem>>, vector<8x32xf32>
    %cst_43 = arith.constant dense<0.000000e+00> : vector<8x32xf32>
    %100 = tpu.matmul %99, %7, %cst_43 {dimension_numbers = #tpu.dot_dimension_numbers<[1], [0], [0], [1], [0, 0, 1, 1], [], []>} : vector<8x32xf32>, vector<32x32xf32>, vector<8x32xf32> -> vector<8x32xf32>
    %101 = vector.extract_strided_slice %13 {offsets = [3, 0], sizes = [1, 32], strides = [1, 1]} : vector<10x128xf32> to vector<1x32xf32>
    %102 = vector.broadcast %101 : vector<1x32xf32> to vector<8x32xf32>
    %103 = arith.addf %100, %102 : vector<8x32xf32>
    %104 = arith.addf %103, %1 : vector<8x32xf32>
    %105 = vector.extract_strided_slice %13 {offsets = [5, 0], sizes = [1, 32], strides = [1, 1]} : vector<10x128xf32> to vector<1x32xf32>
    %106 = vector.extract_strided_slice %13 {offsets = [6, 0], sizes = [1, 32], strides = [1, 1]} : vector<10x128xf32> to vector<1x32xf32>
    %cst_44 = arith.constant dense<0.000000e+00> : vector<8xf32>
    %107 = vector.multi_reduction <add>, %104, %cst_44 [1] : vector<8x32xf32> to vector<8xf32>
    %108 = vector.shape_cast %107 : vector<8xf32> to vector<8x1xf32>
    %cst_45 = arith.constant 3.200000e+01 : f32
    %109 = vector.broadcast %cst_45 : f32 to vector<8x1xf32>
    %110 = arith.divf %108, %109 : vector<8x1xf32>
    %111 = vector.broadcast %110 : vector<8x1xf32> to vector<8x32xf32>
    %112 = arith.subf %104, %111 : vector<8x32xf32>
    %113 = arith.mulf %112, %112 : vector<8x32xf32>
    %cst_46 = arith.constant dense<0.000000e+00> : vector<8xf32>
    %114 = vector.multi_reduction <add>, %113, %cst_46 [1] : vector<8x32xf32> to vector<8xf32>
    %115 = vector.shape_cast %114 : vector<8xf32> to vector<8x1xf32>
    %cst_47 = arith.constant 3.200000e+01 : f32
    %116 = vector.broadcast %cst_47 : f32 to vector<8x1xf32>
    %117 = arith.divf %115, %116 : vector<8x1xf32>
    %118 = vector.broadcast %110 : vector<8x1xf32> to vector<8x32xf32>
    %119 = arith.subf %104, %118 : vector<8x32xf32>
    %cst_48 = arith.constant 9.99999996E-13 : f32
    %120 = vector.broadcast %cst_48 : f32 to vector<8x1xf32>
    %121 = arith.addf %117, %120 : vector<8x1xf32>
    %122 = math.rsqrt %121 : vector<8x1xf32>
    %123 = vector.broadcast %122 : vector<8x1xf32> to vector<8x32xf32>
    %124 = arith.mulf %119, %123 : vector<8x32xf32>
    %125 = vector.broadcast %105 : vector<1x32xf32> to vector<8x32xf32>
    %126 = arith.mulf %124, %125 : vector<8x32xf32>
    %127 = vector.broadcast %106 : vector<1x32xf32> to vector<8x32xf32>
    %128 = arith.addf %126, %127 : vector<8x32xf32>
    %cst_49 = arith.constant dense<0.000000e+00> : vector<8x128xf32>
    %129 = tpu.matmul %128, %9, %cst_49 {dimension_numbers = #tpu.dot_dimension_numbers<[1], [0], [0], [1], [0, 0, 1, 1], [], []>} : vector<8x32xf32>, vector<32x128xf32>, vector<8x128xf32> -> vector<8x128xf32>
    %130 = vector.extract_strided_slice %13 {offsets = [4, 0], sizes = [1, 128], strides = [1, 1]} : vector<10x128xf32> to vector<1x128xf32>
    %131 = vector.broadcast %130 : vector<1x128xf32> to vector<8x128xf32>
    %132 = arith.addf %129, %131 : vector<8x128xf32>
    %cst_50 = arith.constant 5.000000e-01 : f32
    %133 = vector.broadcast %cst_50 : f32 to vector<8x128xf32>
    %134 = arith.mulf %133, %132 : vector<8x128xf32>
    %cst_51 = arith.constant 4.471500e-02 : f32
    %135 = vector.broadcast %cst_51 : f32 to vector<8x128xf32>
    %136 = arith.mulf %135, %132 : vector<8x128xf32>
    %137 = arith.mulf %136, %132 : vector<8x128xf32>
    %138 = arith.mulf %137, %132 : vector<8x128xf32>
    %139 = arith.addf %132, %138 : vector<8x128xf32>
    %cst_52 = arith.constant 0.797884583 : f32
    %140 = vector.broadcast %cst_52 : f32 to vector<8x128xf32>
    %141 = arith.mulf %140, %139 : vector<8x128xf32>
    %142 = math.tanh %141 : vector<8x128xf32>
    %cst_53 = arith.constant 1.000000e+00 : f32
    %143 = vector.broadcast %cst_53 : f32 to vector<8x128xf32>
    %144 = arith.addf %143, %142 : vector<8x128xf32>
    %145 = arith.mulf %134, %144 : vector<8x128xf32>
    %cst_54 = arith.constant dense<0.000000e+00> : vector<8x32xf32>
    %146 = tpu.matmul %145, %11, %cst_54 {dimension_numbers = #tpu.dot_dimension_numbers<[1], [0], [0], [1], [0, 0, 1, 1], [], []>} : vector<8x128xf32>, vector<128x32xf32>, vector<8x32xf32> -> vector<8x32xf32>
    %147 = vector.extract_strided_slice %13 {offsets = [7, 0], sizes = [1, 32], strides = [1, 1]} : vector<10x128xf32> to vector<1x32xf32>
    %148 = vector.broadcast %147 : vector<1x32xf32> to vector<8x32xf32>
    %149 = arith.addf %146, %148 : vector<8x32xf32>
    %150 = arith.addf %149, %128 : vector<8x32xf32>
    %151 = vector.extract_strided_slice %13 {offsets = [8, 0], sizes = [1, 32], strides = [1, 1]} : vector<10x128xf32> to vector<1x32xf32>
    %152 = vector.extract_strided_slice %13 {offsets = [9, 0], sizes = [1, 32], strides = [1, 1]} : vector<10x128xf32> to vector<1x32xf32>
    %cst_55 = arith.constant dense<0.000000e+00> : vector<8xf32>
    %153 = vector.multi_reduction <add>, %150, %cst_55 [1] : vector<8x32xf32> to vector<8xf32>
    %154 = vector.shape_cast %153 : vector<8xf32> to vector<8x1xf32>
    %cst_56 = arith.constant 3.200000e+01 : f32
    %155 = vector.broadcast %cst_56 : f32 to vector<8x1xf32>
    %156 = arith.divf %154, %155 : vector<8x1xf32>
    %157 = vector.broadcast %156 : vector<8x1xf32> to vector<8x32xf32>
    %158 = arith.subf %150, %157 : vector<8x32xf32>
    %159 = arith.mulf %158, %158 : vector<8x32xf32>
    %cst_57 = arith.constant dense<0.000000e+00> : vector<8xf32>
    %160 = vector.multi_reduction <add>, %159, %cst_57 [1] : vector<8x32xf32> to vector<8xf32>
    %161 = vector.shape_cast %160 : vector<8xf32> to vector<8x1xf32>
    %cst_58 = arith.constant 3.200000e+01 : f32
    %162 = vector.broadcast %cst_58 : f32 to vector<8x1xf32>
    %163 = arith.divf %161, %162 : vector<8x1xf32>
    %164 = vector.broadcast %156 : vector<8x1xf32> to vector<8x32xf32>
    %165 = arith.subf %150, %164 : vector<8x32xf32>
    %cst_59 = arith.constant 9.99999996E-13 : f32
    %166 = vector.broadcast %cst_59 : f32 to vector<8x1xf32>
    %167 = arith.addf %163, %166 : vector<8x1xf32>
    %168 = math.rsqrt %167 : vector<8x1xf32>
    %169 = vector.broadcast %168 : vector<8x1xf32> to vector<8x32xf32>
    %170 = arith.mulf %165, %169 : vector<8x32xf32>
    %171 = vector.broadcast %151 : vector<1x32xf32> to vector<8x32xf32>
    %172 = arith.mulf %170, %171 : vector<8x32xf32>
    %173 = vector.broadcast %152 : vector<1x32xf32> to vector<8x32xf32>
    %174 = arith.addf %172, %173 : vector<8x32xf32>
    %c1 = arith.constant 1 : index
    %c0_60 = arith.constant 0 : index
    %c0_61 = arith.constant 0 : index
    %175 = vector.load %arg3[%c1, %c0_60, %c0_61] : memref<2x32x96xf32, #tpu.memory_space<vmem>>, vector<1x32x96xf32>
    %176 = vector.shape_cast %175 : vector<1x32x96xf32> to vector<32x96xf32>
    %c1_62 = arith.constant 1 : index
    %c0_63 = arith.constant 0 : index
    %c0_64 = arith.constant 0 : index
    %177 = vector.load %arg4[%c1_62, %c0_63, %c0_64] : memref<2x32x32xf32, #tpu.memory_space<vmem>>, vector<1x32x32xf32>
    %178 = vector.shape_cast %177 : vector<1x32x32xf32> to vector<32x32xf32>
    %c1_65 = arith.constant 1 : index
    %c0_66 = arith.constant 0 : index
    %c0_67 = arith.constant 0 : index
    %179 = vector.load %arg5[%c1_65, %c0_66, %c0_67] : memref<2x32x128xf32, #tpu.memory_space<vmem>>, vector<1x32x128xf32>
    %180 = vector.shape_cast %179 : vector<1x32x128xf32> to vector<32x128xf32>
    %c1_68 = arith.constant 1 : index
    %c0_69 = arith.constant 0 : index
    %c0_70 = arith.constant 0 : index
    %181 = vector.load %arg6[%c1_68, %c0_69, %c0_70] : memref<2x128x32xf32, #tpu.memory_space<vmem>>, vector<1x128x32xf32>
    %182 = vector.shape_cast %181 : vector<1x128x32xf32> to vector<128x32xf32>
    %c1_71 = arith.constant 1 : index
    %c0_72 = arith.constant 0 : index
    %c0_73 = arith.constant 0 : index
    %183 = vector.load %arg7[%c1_71, %c0_72, %c0_73] : memref<2x10x128xf32, #tpu.memory_space<vmem>>, vector<1x10x128xf32>
    %184 = vector.shape_cast %183 : vector<1x10x128xf32> to vector<10x128xf32>
    %cst_74 = arith.constant dense<0.000000e+00> : vector<8x96xf32>
    %185 = tpu.matmul %174, %176, %cst_74 {dimension_numbers = #tpu.dot_dimension_numbers<[1], [0], [0], [1], [0, 0, 1, 1], [], []>} : vector<8x32xf32>, vector<32x96xf32>, vector<8x96xf32> -> vector<8x96xf32>
    %186 = vector.extract_strided_slice %185 {offsets = [0, 0], sizes = [8, 32], strides = [1, 1]} : vector<8x96xf32> to vector<8x32xf32>
    %187 = vector.extract_strided_slice %184 {offsets = [0, 0], sizes = [1, 32], strides = [1, 1]} : vector<10x128xf32> to vector<1x32xf32>
    %188 = vector.broadcast %187 : vector<1x32xf32> to vector<8x32xf32>
    %189 = arith.addf %186, %188 : vector<8x32xf32>
    %190 = vector.extract_strided_slice %185 {offsets = [0, 32], sizes = [8, 32], strides = [1, 1]} : vector<8x96xf32> to vector<8x32xf32>
    %191 = vector.extract_strided_slice %184 {offsets = [1, 0], sizes = [1, 32], strides = [1, 1]} : vector<10x128xf32> to vector<1x32xf32>
    %192 = vector.broadcast %191 : vector<1x32xf32> to vector<8x32xf32>
    %193 = arith.addf %190, %192 : vector<8x32xf32>
    %194 = vector.extract_strided_slice %185 {offsets = [0, 64], sizes = [8, 32], strides = [1, 1]} : vector<8x96xf32> to vector<8x32xf32>
    %195 = vector.extract_strided_slice %184 {offsets = [2, 0], sizes = [1, 32], strides = [1, 1]} : vector<10x128xf32> to vector<1x32xf32>
    %196 = vector.broadcast %195 : vector<1x32xf32> to vector<8x32xf32>
    %197 = arith.addf %194, %196 : vector<8x32xf32>
    %198 = vector.extract_strided_slice %189 {offsets = [0, 0], sizes = [8, 8], strides = [1, 1]} : vector<8x32xf32> to vector<8x8xf32>
    %199 = vector.extract_strided_slice %193 {offsets = [0, 0], sizes = [8, 8], strides = [1, 1]} : vector<8x32xf32> to vector<8x8xf32>
    %200 = vector.extract_strided_slice %197 {offsets = [0, 0], sizes = [8, 8], strides = [1, 1]} : vector<8x32xf32> to vector<8x8xf32>
    %cst_75 = arith.constant dense<0.000000e+00> : vector<8x8xf32>
    %201 = tpu.matmul %198, %199, %cst_75 {dimension_numbers = #tpu.dot_dimension_numbers<[1], [1], [0], [0], [0, 0, 1, 0], [], []>} : vector<8x8xf32>, vector<8x8xf32>, vector<8x8xf32> -> vector<8x8xf32>
    %202 = vector.broadcast %3 : vector<1x8xf32> to vector<8x8xf32>
    %203 = arith.addf %201, %202 : vector<8x8xf32>
    %cst_76 = arith.constant dense<0xFF800000> : vector<8xf32>
    %204 = vector.multi_reduction <maximumf>, %203, %cst_76 [1] : vector<8x8xf32> to vector<8xf32>
    %205 = vector.shape_cast %204 : vector<8xf32> to vector<8x1xf32>
    %206 = vector.broadcast %205 : vector<8x1xf32> to vector<8x8xf32>
    %207 = arith.subf %203, %206 : vector<8x8xf32>
    %208 = math.exp %207 : vector<8x8xf32>
    %cst_77 = arith.constant dense<0.000000e+00> : vector<8xf32>
    %209 = vector.multi_reduction <add>, %208, %cst_77 [1] : vector<8x8xf32> to vector<8xf32>
    %210 = vector.shape_cast %209 : vector<8xf32> to vector<8x1xf32>
    %211 = tpu.reciprocal %210 {approx = true} : vector<8x1xf32> -> vector<8x1xf32>
    %212 = vector.broadcast %211 : vector<8x1xf32> to vector<8x8xf32>
    %213 = arith.mulf %208, %212 : vector<8x8xf32>
    %cst_78 = arith.constant dense<0.000000e+00> : vector<8x8xf32>
    %214 = tpu.matmul %213, %200, %cst_78 {dimension_numbers = #tpu.dot_dimension_numbers<[1], [0], [0], [1], [0, 0, 1, 1], [], []>} : vector<8x8xf32>, vector<8x8xf32>, vector<8x8xf32> -> vector<8x8xf32>
    %c0_79 = arith.constant 0 : index
    %c0_80 = arith.constant 0 : index
    %215 = vector.load %arg9[%c0_79, %c0_80] : memref<8x32xf32, #tpu.memory_space<vmem>>, vector<8x8xf32>
    tpu.vector_store %arg9[%c0_79, %c0_80], %214 {strides = array<i32>} : memref<8x32xf32, #tpu.memory_space<vmem>>, vector<8x8xf32>,
    %216 = vector.extract_strided_slice %189 {offsets = [0, 8], sizes = [8, 8], strides = [1, 1]} : vector<8x32xf32> to vector<8x8xf32>
    %217 = vector.extract_strided_slice %193 {offsets = [0, 8], sizes = [8, 8], strides = [1, 1]} : vector<8x32xf32> to vector<8x8xf32>
    %218 = vector.extract_strided_slice %197 {offsets = [0, 8], sizes = [8, 8], strides = [1, 1]} : vector<8x32xf32> to vector<8x8xf32>
    %cst_81 = arith.constant dense<0.000000e+00> : vector<8x8xf32>
    %219 = tpu.matmul %216, %217, %cst_81 {dimension_numbers = #tpu.dot_dimension_numbers<[1], [1], [0], [0], [0, 0, 1, 0], [], []>} : vector<8x8xf32>, vector<8x8xf32>, vector<8x8xf32> -> vector<8x8xf32>
    %220 = vector.broadcast %3 : vector<1x8xf32> to vector<8x8xf32>
    %221 = arith.addf %219, %220 : vector<8x8xf32>
    %cst_82 = arith.constant dense<0xFF800000> : vector<8xf32>
    %222 = vector.multi_reduction <maximumf>, %221, %cst_82 [1] : vector<8x8xf32> to vector<8xf32>
    %223 = vector.shape_cast %222 : vector<8xf32> to vector<8x1xf32>
    %224 = vector.broadcast %223 : vector<8x1xf32> to vector<8x8xf32>
    %225 = arith.subf %221, %224 : vector<8x8xf32>
    %226 = math.exp %225 : vector<8x8xf32>
    %cst_83 = arith.constant dense<0.000000e+00> : vector<8xf32>
    %227 = vector.multi_reduction <add>, %226, %cst_83 [1] : vector<8x8xf32> to vector<8xf32>
    %228 = vector.shape_cast %227 : vector<8xf32> to vector<8x1xf32>
    %229 = tpu.reciprocal %228 {approx = true} : vector<8x1xf32> -> vector<8x1xf32>
    %230 = vector.broadcast %229 : vector<8x1xf32> to vector<8x8xf32>
    %231 = arith.mulf %226, %230 : vector<8x8xf32>
    %cst_84 = arith.constant dense<0.000000e+00> : vector<8x8xf32>
    %232 = tpu.matmul %231, %218, %cst_84 {dimension_numbers = #tpu.dot_dimension_numbers<[1], [0], [0], [1], [0, 0, 1, 1], [], []>} : vector<8x8xf32>, vector<8x8xf32>, vector<8x8xf32> -> vector<8x8xf32>
    %c0_85 = arith.constant 0 : index
    %c8_86 = arith.constant 8 : index
    %233 = vector.load %arg9[%c0_85, %c8_86] : memref<8x32xf32, #tpu.memory_space<vmem>>, vector<8x8xf32>
    tpu.vector_store %arg9[%c0_85, %c8_86], %232 {strides = array<i32>} : memref<8x32xf32, #tpu.memory_space<vmem>>, vector<8x8xf32>,
    %234 = vector.extract_strided_slice %189 {offsets = [0, 16], sizes = [8, 8], strides = [1, 1]} : vector<8x32xf32> to vector<8x8xf32>
    %235 = vector.extract_strided_slice %193 {offsets = [0, 16], sizes = [8, 8], strides = [1, 1]} : vector<8x32xf32> to vector<8x8xf32>
    %236 = vector.extract_strided_slice %197 {offsets = [0, 16], sizes = [8, 8], strides = [1, 1]} : vector<8x32xf32> to vector<8x8xf32>
    %cst_87 = arith.constant dense<0.000000e+00> : vector<8x8xf32>
    %237 = tpu.matmul %234, %235, %cst_87 {dimension_numbers = #tpu.dot_dimension_numbers<[1], [1], [0], [0], [0, 0, 1, 0], [], []>} : vector<8x8xf32>, vector<8x8xf32>, vector<8x8xf32> -> vector<8x8xf32>
    %238 = vector.broadcast %3 : vector<1x8xf32> to vector<8x8xf32>
    %239 = arith.addf %237, %238 : vector<8x8xf32>
    %cst_88 = arith.constant dense<0xFF800000> : vector<8xf32>
    %240 = vector.multi_reduction <maximumf>, %239, %cst_88 [1] : vector<8x8xf32> to vector<8xf32>
    %241 = vector.shape_cast %240 : vector<8xf32> to vector<8x1xf32>
    %242 = vector.broadcast %241 : vector<8x1xf32> to vector<8x8xf32>
    %243 = arith.subf %239, %242 : vector<8x8xf32>
    %244 = math.exp %243 : vector<8x8xf32>
    %cst_89 = arith.constant dense<0.000000e+00> : vector<8xf32>
    %245 = vector.multi_reduction <add>, %244, %cst_89 [1] : vector<8x8xf32> to vector<8xf32>
    %246 = vector.shape_cast %245 : vector<8xf32> to vector<8x1xf32>
    %247 = tpu.reciprocal %246 {approx = true} : vector<8x1xf32> -> vector<8x1xf32>
    %248 = vector.broadcast %247 : vector<8x1xf32> to vector<8x8xf32>
    %249 = arith.mulf %244, %248 : vector<8x8xf32>
    %cst_90 = arith.constant dense<0.000000e+00> : vector<8x8xf32>
    %250 = tpu.matmul %249, %236, %cst_90 {dimension_numbers = #tpu.dot_dimension_numbers<[1], [0], [0], [1], [0, 0, 1, 1], [], []>} : vector<8x8xf32>, vector<8x8xf32>, vector<8x8xf32> -> vector<8x8xf32>
    %c0_91 = arith.constant 0 : index
    %c16_92 = arith.constant 16 : index
    %251 = vector.load %arg9[%c0_91, %c16_92] : memref<8x32xf32, #tpu.memory_space<vmem>>, vector<8x8xf32>
    tpu.vector_store %arg9[%c0_91, %c16_92], %250 {strides = array<i32>} : memref<8x32xf32, #tpu.memory_space<vmem>>, vector<8x8xf32>,
    %252 = vector.extract_strided_slice %189 {offsets = [0, 24], sizes = [8, 8], strides = [1, 1]} : vector<8x32xf32> to vector<8x8xf32>
    %253 = vector.extract_strided_slice %193 {offsets = [0, 24], sizes = [8, 8], strides = [1, 1]} : vector<8x32xf32> to vector<8x8xf32>
    %254 = vector.extract_strided_slice %197 {offsets = [0, 24], sizes = [8, 8], strides = [1, 1]} : vector<8x32xf32> to vector<8x8xf32>
    %cst_93 = arith.constant dense<0.000000e+00> : vector<8x8xf32>
    %255 = tpu.matmul %252, %253, %cst_93 {dimension_numbers = #tpu.dot_dimension_numbers<[1], [1], [0], [0], [0, 0, 1, 0], [], []>} : vector<8x8xf32>, vector<8x8xf32>, vector<8x8xf32> -> vector<8x8xf32>
    %256 = vector.broadcast %3 : vector<1x8xf32> to vector<8x8xf32>
    %257 = arith.addf %255, %256 : vector<8x8xf32>
    %cst_94 = arith.constant dense<0xFF800000> : vector<8xf32>
    %258 = vector.multi_reduction <maximumf>, %257, %cst_94 [1] : vector<8x8xf32> to vector<8xf32>
    %259 = vector.shape_cast %258 : vector<8xf32> to vector<8x1xf32>
    %260 = vector.broadcast %259 : vector<8x1xf32> to vector<8x8xf32>
    %261 = arith.subf %257, %260 : vector<8x8xf32>
    %262 = math.exp %261 : vector<8x8xf32>
    %cst_95 = arith.constant dense<0.000000e+00> : vector<8xf32>
    %263 = vector.multi_reduction <add>, %262, %cst_95 [1] : vector<8x8xf32> to vector<8xf32>
    %264 = vector.shape_cast %263 : vector<8xf32> to vector<8x1xf32>
    %265 = tpu.reciprocal %264 {approx = true} : vector<8x1xf32> -> vector<8x1xf32>
    %266 = vector.broadcast %265 : vector<8x1xf32> to vector<8x8xf32>
    %267 = arith.mulf %262, %266 : vector<8x8xf32>
    %cst_96 = arith.constant dense<0.000000e+00> : vector<8x8xf32>
    %268 = tpu.matmul %267, %254, %cst_96 {dimension_numbers = #tpu.dot_dimension_numbers<[1], [0], [0], [1], [0, 0, 1, 1], [], []>} : vector<8x8xf32>, vector<8x8xf32>, vector<8x8xf32> -> vector<8x8xf32>
    %c0_97 = arith.constant 0 : index
    %c24_98 = arith.constant 24 : index
    %269 = vector.load %arg9[%c0_97, %c24_98] : memref<8x32xf32, #tpu.memory_space<vmem>>, vector<8x8xf32>
    tpu.vector_store %arg9[%c0_97, %c24_98], %268 {strides = array<i32>} : memref<8x32xf32, #tpu.memory_space<vmem>>, vector<8x8xf32>,
    %c0_99 = arith.constant 0 : index
    %c0_100 = arith.constant 0 : index
    %270 = vector.load %arg9[%c0_99, %c0_100] : memref<8x32xf32, #tpu.memory_space<vmem>>, vector<8x32xf32>
    %cst_101 = arith.constant dense<0.000000e+00> : vector<8x32xf32>
    %271 = tpu.matmul %270, %178, %cst_101 {dimension_numbers = #tpu.dot_dimension_numbers<[1], [0], [0], [1], [0, 0, 1, 1], [], []>} : vector<8x32xf32>, vector<32x32xf32>, vector<8x32xf32> -> vector<8x32xf32>
    %272 = vector.extract_strided_slice %184 {offsets = [3, 0], sizes = [1, 32], strides = [1, 1]} : vector<10x128xf32> to vector<1x32xf32>
    %273 = vector.broadcast %272 : vector<1x32xf32> to vector<8x32xf32>
    %274 = arith.addf %271, %273 : vector<8x32xf32>
    %275 = arith.addf %274, %174 : vector<8x32xf32>
    %276 = vector.extract_strided_slice %184 {offsets = [5, 0], sizes = [1, 32], strides = [1, 1]} : vector<10x128xf32> to vector<1x32xf32>
    %277 = vector.extract_strided_slice %184 {offsets = [6, 0], sizes = [1, 32], strides = [1, 1]} : vector<10x128xf32> to vector<1x32xf32>
    %cst_102 = arith.constant dense<0.000000e+00> : vector<8xf32>
    %278 = vector.multi_reduction <add>, %275, %cst_102 [1] : vector<8x32xf32> to vector<8xf32>
    %279 = vector.shape_cast %278 : vector<8xf32> to vector<8x1xf32>
    %cst_103 = arith.constant 3.200000e+01 : f32
    %280 = vector.broadcast %cst_103 : f32 to vector<8x1xf32>
    %281 = arith.divf %279, %280 : vector<8x1xf32>
    %282 = vector.broadcast %281 : vector<8x1xf32> to vector<8x32xf32>
    %283 = arith.subf %275, %282 : vector<8x32xf32>
    %284 = arith.mulf %283, %283 : vector<8x32xf32>
    %cst_104 = arith.constant dense<0.000000e+00> : vector<8xf32>
    %285 = vector.multi_reduction <add>, %284, %cst_104 [1] : vector<8x32xf32> to vector<8xf32>
    %286 = vector.shape_cast %285 : vector<8xf32> to vector<8x1xf32>
    %cst_105 = arith.constant 3.200000e+01 : f32
    %287 = vector.broadcast %cst_105 : f32 to vector<8x1xf32>
    %288 = arith.divf %286, %287 : vector<8x1xf32>
    %289 = vector.broadcast %281 : vector<8x1xf32> to vector<8x32xf32>
    %290 = arith.subf %275, %289 : vector<8x32xf32>
    %cst_106 = arith.constant 9.99999996E-13 : f32
    %291 = vector.broadcast %cst_106 : f32 to vector<8x1xf32>
    %292 = arith.addf %288, %291 : vector<8x1xf32>
    %293 = math.rsqrt %292 : vector<8x1xf32>
    %294 = vector.broadcast %293 : vector<8x1xf32> to vector<8x32xf32>
    %295 = arith.mulf %290, %294 : vector<8x32xf32>
    %296 = vector.broadcast %276 : vector<1x32xf32> to vector<8x32xf32>
    %297 = arith.mulf %295, %296 : vector<8x32xf32>
    %298 = vector.broadcast %277 : vector<1x32xf32> to vector<8x32xf32>
    %299 = arith.addf %297, %298 : vector<8x32xf32>
    %cst_107 = arith.constant dense<0.000000e+00> : vector<8x128xf32>
    %300 = tpu.matmul %299, %180, %cst_107 {dimension_numbers = #tpu.dot_dimension_numbers<[1], [0], [0], [1], [0, 0, 1, 1], [], []>} : vector<8x32xf32>, vector<32x128xf32>, vector<8x128xf32> -> vector<8x128xf32>
    %301 = vector.extract_strided_slice %184 {offsets = [4, 0], sizes = [1, 128], strides = [1, 1]} : vector<10x128xf32> to vector<1x128xf32>
    %302 = vector.broadcast %301 : vector<1x128xf32> to vector<8x128xf32>
    %303 = arith.addf %300, %302 : vector<8x128xf32>
    %cst_108 = arith.constant 5.000000e-01 : f32
    %304 = vector.broadcast %cst_108 : f32 to vector<8x128xf32>
    %305 = arith.mulf %304, %303 : vector<8x128xf32>
    %cst_109 = arith.constant 4.471500e-02 : f32
    %306 = vector.broadcast %cst_109 : f32 to vector<8x128xf32>
    %307 = arith.mulf %306, %303 : vector<8x128xf32>
    %308 = arith.mulf %307, %303 : vector<8x128xf32>
    %309 = arith.mulf %308, %303 : vector<8x128xf32>
    %310 = arith.addf %303, %309 : vector<8x128xf32>
    %cst_110 = arith.constant 0.797884583 : f32
    %311 = vector.broadcast %cst_110 : f32 to vector<8x128xf32>
    %312 = arith.mulf %311, %310 : vector<8x128xf32>
    %313 = math.tanh %312 : vector<8x128xf32>
    %cst_111 = arith.constant 1.000000e+00 : f32
    %314 = vector.broadcast %cst_111 : f32 to vector<8x128xf32>
    %315 = arith.addf %314, %313 : vector<8x128xf32>
    %316 = arith.mulf %305, %315 : vector<8x128xf32>
    %cst_112 = arith.constant dense<0.000000e+00> : vector<8x32xf32>
    %317 = tpu.matmul %316, %182, %cst_112 {dimension_numbers = #tpu.dot_dimension_numbers<[1], [0], [0], [1], [0, 0, 1, 1], [], []>} : vector<8x128xf32>, vector<128x32xf32>, vector<8x32xf32> -> vector<8x32xf32>
    %318 = vector.extract_strided_slice %184 {offsets = [7, 0], sizes = [1, 32], strides = [1, 1]} : vector<10x128xf32> to vector<1x32xf32>
    %319 = vector.broadcast %318 : vector<1x32xf32> to vector<8x32xf32>
    %320 = arith.addf %317, %319 : vector<8x32xf32>
    %321 = arith.addf %320, %299 : vector<8x32xf32>
    %322 = vector.extract_strided_slice %184 {offsets = [8, 0], sizes = [1, 32], strides = [1, 1]} : vector<10x128xf32> to vector<1x32xf32>
    %323 = vector.extract_strided_slice %184 {offsets = [9, 0], sizes = [1, 32], strides = [1, 1]} : vector<10x128xf32> to vector<1x32xf32>
    %cst_113 = arith.constant dense<0.000000e+00> : vector<8xf32>
    %324 = vector.multi_reduction <add>, %321, %cst_113 [1] : vector<8x32xf32> to vector<8xf32>
    %325 = vector.shape_cast %324 : vector<8xf32> to vector<8x1xf32>
    %cst_114 = arith.constant 3.200000e+01 : f32
    %326 = vector.broadcast %cst_114 : f32 to vector<8x1xf32>
    %327 = arith.divf %325, %326 : vector<8x1xf32>
    %328 = vector.broadcast %327 : vector<8x1xf32> to vector<8x32xf32>
    %329 = arith.subf %321, %328 : vector<8x32xf32>
    %330 = arith.mulf %329, %329 : vector<8x32xf32>
    %cst_115 = arith.constant dense<0.000000e+00> : vector<8xf32>
    %331 = vector.multi_reduction <add>, %330, %cst_115 [1] : vector<8x32xf32> to vector<8xf32>
    %332 = vector.shape_cast %331 : vector<8xf32> to vector<8x1xf32>
    %cst_116 = arith.constant 3.200000e+01 : f32
    %333 = vector.broadcast %cst_116 : f32 to vector<8x1xf32>
    %334 = arith.divf %332, %333 : vector<8x1xf32>
    %335 = vector.broadcast %327 : vector<8x1xf32> to vector<8x32xf32>
    %336 = arith.subf %321, %335 : vector<8x32xf32>
    %cst_117 = arith.constant 9.99999996E-13 : f32
    %337 = vector.broadcast %cst_117 : f32 to vector<8x1xf32>
    %338 = arith.addf %334, %337 : vector<8x1xf32>
    %339 = math.rsqrt %338 : vector<8x1xf32>
    %340 = vector.broadcast %339 : vector<8x1xf32> to vector<8x32xf32>
    %341 = arith.mulf %336, %340 : vector<8x32xf32>
    %342 = vector.broadcast %322 : vector<1x32xf32> to vector<8x32xf32>
    %343 = arith.mulf %341, %342 : vector<8x32xf32>
    %344 = vector.broadcast %323 : vector<1x32xf32> to vector<8x32xf32>
    %345 = arith.addf %343, %344 : vector<8x32xf32>
    %c0_118 = arith.constant 0 : index
    %c0_119 = arith.constant 0 : index
    %c0_120 = arith.constant 0 : index
    %346 = vector.load %arg8[%c0_118, %c0_119, %c0_120] : memref<1x8x32xf32, #tpu.memory_space<vmem>>, vector<1x8x32xf32>
    %347 = vector.shape_cast %346 : vector<1x8x32xf32> to vector<8x32xf32>
    %348 = vector.shape_cast %345 : vector<8x32xf32> to vector<1x8x32xf32>
    tpu.vector_store %arg8[%c0_118, %c0_119, %c0_120], %348 {strides = array<i32>} : memref<1x8x32xf32, #tpu.memory_space<vmem>>, vector<1x8x32xf32>,
    return
  }
  func.func @transform_0(%arg0: i32) -> (i32, i32, i32) {
    %c0_i32 = arith.constant 0 : i32
    %c0_i32_0 = arith.constant 0 : i32
    %c0_i32_1 = arith.constant 0 : i32
    return %arg0, %c0_i32, %c0_i32_0 : i32, i32, i32
  }
  func.func @transform_1(%arg0: i32) -> (i32, i32, i32) {
    %c0_i32 = arith.constant 0 : i32
    %c0_i32_0 = arith.constant 0 : i32
    %c0_i32_1 = arith.constant 0 : i32
    return %arg0, %c0_i32, %c0_i32_0 : i32, i32, i32
  }
  func.func @transform_2(%arg0: i32) -> (i32, i32, i32) {
    %c0_i32 = arith.constant 0 : i32
    %c0_i32_0 = arith.constant 0 : i32
    %c0_i32_1 = arith.constant 0 : i32
    %c0_i32_2 = arith.constant 0 : i32
    return %c0_i32, %c0_i32_0, %c0_i32_1 : i32, i32, i32
  }
  func.func @transform_3(%arg0: i32) -> (i32, i32, i32) {
    %c0_i32 = arith.constant 0 : i32
    %c0_i32_0 = arith.constant 0 : i32
    %c0_i32_1 = arith.constant 0 : i32
    %c0_i32_2 = arith.constant 0 : i32
    return %c0_i32, %c0_i32_0, %c0_i32_1 : i32, i32, i32
  }
  func.func @transform_4(%arg0: i32) -> (i32, i32, i32) {
    %c0_i32 = arith.constant 0 : i32
    %c0_i32_0 = arith.constant 0 : i32
    %c0_i32_1 = arith.constant 0 : i32
    %c0_i32_2 = arith.constant 0 : i32
    return %c0_i32, %c0_i32_0, %c0_i32_1 : i32, i32, i32
  }
  func.func @transform_5(%arg0: i32) -> (i32, i32, i32) {
    %c0_i32 = arith.constant 0 : i32
    %c0_i32_0 = arith.constant 0 : i32
    %c0_i32_1 = arith.constant 0 : i32
    %c0_i32_2 = arith.constant 0 : i32
    return %c0_i32, %c0_i32_0, %c0_i32_1 : i32, i32, i32
  }
  func.func @transform_6(%arg0: i32) -> (i32, i32, i32) {
    %c0_i32 = arith.constant 0 : i32
    %c0_i32_0 = arith.constant 0 : i32
    %c0_i32_1 = arith.constant 0 : i32
    %c0_i32_2 = arith.constant 0 : i32
    return %c0_i32, %c0_i32_0, %c0_i32_1 : i32, i32, i32
  }
  func.func @transform_7(%arg0: i32) -> (i32, i32, i32) {
    %c0_i32 = arith.constant 0 : i32
    %c0_i32_0 = arith.constant 0 : i32
    %c0_i32_1 = arith.constant 0 : i32
    return %arg0, %c0_i32, %c0_i32_0 : i32, i32, i32
  }
}

</mosaic_0001>

<llo_original>
// kernel: tpu_custom_call.1
$region0: #{tpu_custom_call.1}
  #allocation0 [shape = 'u32[]', space=smem, size = 0x4, offset = 0x4, fixed_abs, tag = 'smem constant byte address 0x4 - core index']
  #allocation1 [shape = 'u32[144,128]{1,0:T(1,128)}', space=vmem, size = 0x12000, scoped, tag = 'internal scratch']
  #allocation2 [shape = 'f32[8,32]{1,0:T(8,128)}', space=vmem, size = 0x1000, scoped, tag = 'scratch operand']
  %s0 = inlined_call_operand.vmem [shape: f32[2,8,32], index: 0, kind: input, shape index: {}]
  %s1 = inlined_call_operand.vmem [shape: f32[2,1,8], index: 1, kind: input, shape index: {}]
  %s2 = inlined_call_operand.vmem [shape: f32[2,32,96], index: 2, kind: input, shape index: {}]
  %s3 = inlined_call_operand.vmem [shape: f32[2,32,32], index: 3, kind: input, shape index: {}]
  %s4 = inlined_call_operand.vmem [shape: f32[2,32,128], index: 4, kind: input, shape index: {}]
  %s5 = inlined_call_operand.vmem [shape: f32[2,128,32], index: 5, kind: input, shape index: {}]
  %s6 = inlined_call_operand.vmem [shape: f32[2,10,128], index: 6, kind: input, shape index: {}]
  %s7 = inlined_call_operand.hbm [shape: f32[2,8,32], index: 7, kind: output, shape index: {}]
  %s8 = sld [smem:[#allocation0]]
  $region61: #{tpu_custom_call.1} parent=0
    _
  %s10 = ssub.s32 1, %s8
  %s11 = scalar_select 0, %s10, %s8
  $region1: #{tpu_custom_call.1} parent=0
    #allocation3 [shape = 'u8[8192]{0}', space=vmem, size = 0x2000, scoped, tag = 'output window, operand 0']
    #allocation4 [shape = 's32[2]{0}', space=sflag, size = 0x8, scoped, tag = 'scoped memory for tpu_custom_call.1']
    %12 = vsyncpa [#allocation4], 0
    %s13 = scalar_lea.sflag [#allocation4], 1
    %14 = vsyncpa %s13, 0
    loop: start=0, step=1, limit=4
    $region2: #{tpu_custom_call.1} parent=1 // loop_pre_header
      _
    $region3: #{tpu_custom_call.1} parent=1 // loop_header
      %s16 = sphi 0, %s20
      %p17 = scmp.ge.s32.totalorder %s16, 4
      %s26 = sphi 0, %s28
      %s29 = sphi 0, %s26
      %s30 = sphi 0, %s29
      %s46 = sphi 0, %s30
      %s52 = sphi 0, %s54
      %s55 = sphi 0, %s52
      %s56 = sphi 0, %s55
      %s72 = sphi 0, %s56
      %s76 = sphi 0, %s76
      %s78 = sphi 0, %s76
      %s79 = sphi 0, %s78
      %s93 = sphi 0, %s79
      %s97 = sphi 0, %s97
      %s99 = sphi 0, %s97
      %s100 = sphi 0, %s99
      %s114 = sphi 0, %s100
      %s118 = sphi 0, %s118
      %s120 = sphi 0, %s118
      %s121 = sphi 0, %s120
      %s135 = sphi 0, %s121
      %s139 = sphi 0, %s139
      %s141 = sphi 0, %s139
      %s142 = sphi 0, %s141
      %s156 = sphi 0, %s142
      %s160 = sphi 0, %s160
      %s162 = sphi 0, %s160
      %s163 = sphi 0, %s162
      %s177 = sphi 0, %s163
      %s183 = sphi 0, %s185
      %s186 = sphi 0, %s183
      %s187 = sphi 0, %s186
      %s203 = sphi 0, %s187
    $region4: #{tpu_custom_call.1} parent=1 // loop_header_branch
      %19 = sbr.rel (%p17) target = $region8
    $region5: #{tpu_custom_call.1} parent=1 // loop_body
      %s21 = ssub.s32 %s16, 1
      %s22 = ssub.s32 %s16, 2
      %s23 = sadd.s32 %s16, 1
      %s24 = ssub.s32 %s16, %s23
      %p25 = scmp.eq.s32.totalorder %s24, 0
      %s27 = sadd.s32 %s26, 1
      %s28 = scalar_select %p25, %s26, %s27
      %p31 = pneg %p25
      %p32 = scmp.eq.s32.totalorder %s16, 1
      %p33 = por %p31, %p32
      %p34 = scmp.ne.s32.totalorder %s26, %s29
      %p35 = scmp.eq.s32.totalorder %s16, 0
      %p36 = por %p34, %p35
      %p37 = scmp.ne.s32.totalorder %s26, %s29
      %p38 = scmp.eq.s32.totalorder %s21, 1
      %p39 = por %p37, %p38
      %p40 = scmp.ne.s32.totalorder %s29, %s30
      %p41 = scmp.eq.s32.totalorder %s21, 0
      %p42 = por %p40, %p41
      %p43 = scmp.ne.s32.totalorder %s29, %s30
      %p44 = scmp.eq.s32.totalorder %s22, 1
      %p45 = por %p43, %p44
      %p47 = scmp.ne.s32.totalorder %s30, %s46
      %p48 = scmp.eq.s32.totalorder %s22, 0
      %p49 = por %p47, %p48
      %s50 = ssub.s32 %s16, %s23
      %p51 = scmp.eq.s32.totalorder %s50, 0
      %s53 = sadd.s32 %s52, 1
      %s54 = scalar_select %p51, %s52, %s53
      %p57 = pneg %p51
      %p58 = scmp.eq.s32.totalorder %s16, 1
      %p59 = por %p57, %p58
      %p60 = scmp.ne.s32.totalorder %s52, %s55
      %p61 = scmp.eq.s32.totalorder %s16, 0
      %p62 = por %p60, %p61
      %p63 = scmp.ne.s32.totalorder %s52, %s55
      %p64 = scmp.eq.s32.totalorder %s21, 1
      %p65 = por %p63, %p64
      %p66 = scmp.ne.s32.totalorder %s55, %s56
      %p67 = scmp.eq.s32.totalorder %s21, 0
      %p68 = por %p66, %p67
      %p69 = scmp.ne.s32.totalorder %s55, %s56
      %p70 = scmp.eq.s32.totalorder %s22, 1
      %p71 = por %p69, %p70
      %p73 = scmp.ne.s32.totalorder %s56, %s72
      %p74 = scmp.eq.s32.totalorder %s22, 0
      %p75 = por %p73, %p74
      %s77 = sadd.s32 %s76, 1
      %p80 = scmp.eq.s32.totalorder %s16, 1
      %p81 = scmp.ne.s32.totalorder %s76, %s78
      %p82 = scmp.eq.s32.totalorder %s16, 0
      %p83 = por %p81, %p82
      %p84 = scmp.ne.s32.totalorder %s76, %s78
      %p85 = scmp.eq.s32.totalorder %s21, 1
      %p86 = por %p84, %p85
      %p87 = scmp.ne.s32.totalorder %s78, %s79
      %p88 = scmp.eq.s32.totalorder %s21, 0
      %p89 = por %p87, %p88
      %p90 = scmp.ne.s32.totalorder %s78, %s79
      %p91 = scmp.eq.s32.totalorder %s22, 1
      %p92 = por %p90, %p91
      %p94 = scmp.ne.s32.totalorder %s79, %s93
      %p95 = scmp.eq.s32.totalorder %s22, 0
      %p96 = por %p94, %p95
      %s98 = sadd.s32 %s97, 1
      %p101 = scmp.eq.s32.totalorder %s16, 1
      %p102 = scmp.ne.s32.totalorder %s97, %s99
      %p103 = scmp.eq.s32.totalorder %s16, 0
      %p104 = por %p102, %p103
      %p105 = scmp.ne.s32.totalorder %s97, %s99
      %p106 = scmp.eq.s32.totalorder %s21, 1
      %p107 = por %p105, %p106
      %p108 = scmp.ne.s32.totalorder %s99, %s100
      %p109 = scmp.eq.s32.totalorder %s21, 0
      %p110 = por %p108, %p109
      %p111 = scmp.ne.s32.totalorder %s99, %s100
      %p112 = scmp.eq.s32.totalorder %s22, 1
      %p113 = por %p111, %p112
      %p115 = scmp.ne.s32.totalorder %s100, %s114
      %p116 = scmp.eq.s32.totalorder %s22, 0
      %p117 = por %p115, %p116
      %s119 = sadd.s32 %s118, 1
      %p122 = scmp.eq.s32.totalorder %s16, 1
      %p123 = scmp.ne.s32.totalorder %s118, %s120
      %p124 = scmp.eq.s32.totalorder %s16, 0
      %p125 = por %p123, %p124
      %p126 = scmp.ne.s32.totalorder %s118, %s120
      %p127 = scmp.eq.s32.totalorder %s21, 1
      %p128 = por %p126, %p127
      %p129 = scmp.ne.s32.totalorder %s120, %s121
      %p130 = scmp.eq.s32.totalorder %s21, 0
      %p131 = por %p129, %p130
      %p132 = scmp.ne.s32.totalorder %s120, %s121
      %p133 = scmp.eq.s32.totalorder %s22, 1
      %p134 = por %p132, %p133
      %p136 = scmp.ne.s32.totalorder %s121, %s135
      %p137 = scmp.eq.s32.totalorder %s22, 0
      %p138 = por %p136, %p137
      %s140 = sadd.s32 %s139, 1
      %p143 = scmp.eq.s32.totalorder %s16, 1
      %p144 = scmp.ne.s32.totalorder %s139, %s141
      %p145 = scmp.eq.s32.totalorder %s16, 0
      %p146 = por %p144, %p145
      %p147 = scmp.ne.s32.totalorder %s139, %s141
      %p148 = scmp.eq.s32.totalorder %s21, 1
      %p149 = por %p147, %p148
      %p150 = scmp.ne.s32.totalorder %s141, %s142
      %p151 = scmp.eq.s32.totalorder %s21, 0
      %p152 = por %p150, %p151
      %p153 = scmp.ne.s32.totalorder %s141, %s142
      %p154 = scmp.eq.s32.totalorder %s22, 1
      %p155 = por %p153, %p154
      %p157 = scmp.ne.s32.totalorder %s142, %s156
      %p158 = scmp.eq.s32.totalorder %s22, 0
      %p159 = por %p157, %p158
      %s161 = sadd.s32 %s160, 1
      %p164 = scmp.eq.s32.totalorder %s16, 1
      %p165 = scmp.ne.s32.totalorder %s160, %s162
      %p166 = scmp.eq.s32.totalorder %s16, 0
      %p167 = por %p165, %p166
      %p168 = scmp.ne.s32.totalorder %s160, %s162
      %p169 = scmp.eq.s32.totalorder %s21, 1
      %p170 = por %p168, %p169
      %p171 = scmp.ne.s32.totalorder %s162, %s163
      %p172 = scmp.eq.s32.totalorder %s21, 0
      %p173 = por %p171, %p172
      %p174 = scmp.ne.s32.totalorder %s162, %s163
      %p175 = scmp.eq.s32.totalorder %s22, 1
      %p176 = por %p174, %p175
      %p178 = scmp.ne.s32.totalorder %s163, %s177
      %p179 = scmp.eq.s32.totalorder %s22, 0
      %p180 = por %p178, %p179
      %s181 = ssub.s32 %s16, %s23
      %p182 = scmp.eq.s32.totalorder %s181, 0
      %s184 = sadd.s32 %s183, 1
      %s185 = scalar_select %p182, %s183, %s184
      %p188 = pneg %p182
      %p189 = scmp.eq.s32.totalorder %s16, 1
      %p190 = por %p188, %p189
      %p191 = scmp.ne.s32.totalorder %s183, %s186
      %p192 = scmp.eq.s32.totalorder %s16, 0
      %p193 = por %p191, %p192
      %p194 = scmp.ne.s32.totalorder %s183, %s186
      %p195 = scmp.eq.s32.totalorder %s21, 1
      %p196 = por %p194, %p195
      %p197 = scmp.ne.s32.totalorder %s186, %s187
      %p198 = scmp.eq.s32.totalorder %s21, 0
      %p199 = por %p197, %p198
      %p200 = scmp.ne.s32.totalorder %s186, %s187
      %p201 = scmp.eq.s32.totalorder %s22, 1
      %p202 = por %p200, %p201
      %p204 = scmp.ne.s32.totalorder %s187, %s203
      %p205 = scmp.eq.s32.totalorder %s22, 0
      %p206 = por %p204, %p205
      %p207 = scmp.le.s32.totalorder 1, %s16
      %p208 = scmp.lt.s32.totalorder %s16, 3
      %p209 = pnand %p207, %p208
      %p210 = pneg %p209
      // Predicated region
      $region9: #{tpu_custom_call.1} parent=5 // pred_check
        _
      $region10: #{tpu_custom_call.1} parent=5 // pred_check_branch
        %212 = sbr.rel (%p209) target = $region12
      $region11: #{tpu_custom_call.1} parent=5 // pred_region
        %s213 = ssub.s32 %s16, 1
        // Predicated region
        $region13: #{tpu_custom_call.1} parent=11 // pred_check
          %p214 = pneg %p89
        $region14: #{tpu_custom_call.1} parent=11 // pred_check_branch
          %216 = sbr.rel (%p214) target = $region16
        $region15: #{tpu_custom_call.1} parent=11 // pred_region
          _
        $region16: #{tpu_custom_call.1} parent=11 // pred_fallthru
          _
        // Predicated region
        $region17: #{tpu_custom_call.1} parent=11 // pred_check
          %p217 = pneg %p110
        $region18: #{tpu_custom_call.1} parent=11 // pred_check_branch
          %219 = sbr.rel (%p217) target = $region20
        $region19: #{tpu_custom_call.1} parent=11 // pred_region
          _
        $region20: #{tpu_custom_call.1} parent=11 // pred_fallthru
          _
        // Predicated region
        $region21: #{tpu_custom_call.1} parent=11 // pred_check
          %p220 = pneg %p131
        $region22: #{tpu_custom_call.1} parent=11 // pred_check_branch
          %222 = sbr.rel (%p220) target = $region24
        $region23: #{tpu_custom_call.1} parent=11 // pred_region
          _
        $region24: #{tpu_custom_call.1} parent=11 // pred_fallthru
          _
        // Predicated region
        $region25: #{tpu_custom_call.1} parent=11 // pred_check
          %p223 = pneg %p152
        $region26: #{tpu_custom_call.1} parent=11 // pred_check_branch
          %225 = sbr.rel (%p223) target = $region28
        $region27: #{tpu_custom_call.1} parent=11 // pred_region
          _
        $region28: #{tpu_custom_call.1} parent=11 // pred_fallthru
          _
        // Predicated region
        $region29: #{tpu_custom_call.1} parent=11 // pred_check
          %p226 = pneg %p173
        $region30: #{tpu_custom_call.1} parent=11 // pred_check_branch
          %228 = sbr.rel (%p226) target = $region32
        $region31: #{tpu_custom_call.1} parent=11 // pred_region
          _
        $region32: #{tpu_custom_call.1} parent=11 // pred_fallthru
          _
      $region12: #{tpu_custom_call.1} parent=5 // pred_fallthru
        _
      %p229 = scmp.lt.s32.totalorder %s16, 2
      // Predicated region
      $region33: #{tpu_custom_call.1} parent=5 // pred_check
        %p230 = pneg %p229
      $region34: #{tpu_custom_call.1} parent=5 // pred_check_branch
        %232 = sbr.rel (%p230) target = $region36
      $region35: #{tpu_custom_call.1} parent=5 // pred_region
        // Predicated region
        $region37: #{tpu_custom_call.1} parent=35 // pred_check
          %p233 = pneg %p36
        $region38: #{tpu_custom_call.1} parent=35 // pred_check_branch
          %235 = sbr.rel (%p233) target = $region40
        $region39: #{tpu_custom_call.1} parent=35 // pred_region
          %p236 = scmp.lt.s32.totalorder %s16, 1
          %s237 = scalar_select %p236, %s16, 1
          %s238 = smul.addr %s237, 8
          %s239 = scalar_lea.vmem %s0, %s238
        $region40: #{tpu_custom_call.1} parent=35 // pred_fallthru
          _
        // Predicated region
        $region41: #{tpu_custom_call.1} parent=35 // pred_check
          %p240 = pneg %p62
        $region42: #{tpu_custom_call.1} parent=35 // pred_check_branch
          %242 = sbr.rel (%p240) target = $region44
        $region43: #{tpu_custom_call.1} parent=35 // pred_region
          %p243 = scmp.lt.s32.totalorder %s16, 1
          %s244 = scalar_select %p243, %s16, 1
          %s245 = scalar_lea.vmem %s1, %s244
        $region44: #{tpu_custom_call.1} parent=35 // pred_fallthru
          _
      $region36: #{tpu_custom_call.1} parent=5 // pred_fallthru
        _
      %p246 = scmp.le.s32.totalorder 1, %s16
      %p247 = scmp.lt.s32.totalorder %s16, 3
      %p248 = pnand %p246, %p247
      %p249 = pneg %p248
      // Predicated region
      $region45: #{tpu_custom_call.1} parent=5 // pred_check
        _
      $region46: #{tpu_custom_call.1} parent=5 // pred_check_branch
        %251 = sbr.rel (%p248) target = $region48
      $region47: #{tpu_custom_call.1} parent=5 // pred_region
        %s252 = ssub.s32 %s16, 1
        %p253 = scmp.lt.s32.totalorder %s21, 1
        %s254 = scalar_select %p253, %s21, 1
        %s255 = smul.addr %s254, 8
        %s256 = scalar_lea.vmem %s0, %s255
        %p257 = pneg %p42
        %p258 = pneg %p39
        %p259 = scmp.lt.s32.totalorder %s21, 1
        %s260 = scalar_select %p259, %s21, 1
        %s261 = scalar_lea.vmem %s1, %s260
        %p262 = pneg %p68
        %p263 = pneg %p65
        %p264 = pneg %p89
        %p265 = pneg %p86
        %p266 = pneg %p110
        %p267 = pneg %p107
        %p268 = pneg %p131
        %p269 = pneg %p128
        %p270 = pneg %p152
        %p271 = pneg %p149
        %p272 = pneg %p173
        %p273 = pneg %p170
        %p274 = pneg %p199
        %p275 = pneg %p196
        %s276 = sand.u32 %s186, 1
        %s277 = scalar_lea.sflag [#allocation4], %s276
        %s278 = sand.u32 %s186, 1
        %s279 = smul.addr %s278, 8
        %s280 = scalar_lea.vmem [#allocation3], %s279
        %p281 = scmp.lt.s32.totalorder %s21, 1
        %s282 = scalar_select %p281, %s21, 1
        %s283 = smul.addr %s282, 8
        %s284 = scalar_lea.vmem %s0, %s283
        %p285 = scmp.lt.s32.totalorder %s21, 1
        %s286 = scalar_select %p285, %s21, 1
        %s287 = scalar_lea.vmem %s1, %s286
        %v288 = vld [vmem:[%s284] sm:$0xff]
        %v289 = vld [vmem:[%s287] sm:$0x1]
        %v290 = vld [vmem:[%s2] sm:$0xff]
        %v291 = vld [vmem:[%s2 + $0x8] sm:$0xff]
        %v292 = vld [vmem:[%s2 + $0x10] sm:$0xff]
        %v293 = vld [vmem:[%s2 + $0x18] sm:$0xff]
        %v294 = vld [vmem:[%s3] sm:$0xff]
        %v295 = vld [vmem:[%s3 + $0x8] sm:$0xff]
        %v296 = vld [vmem:[%s3 + $0x10] sm:$0xff]
        %v297 = vld [vmem:[%s3 + $0x18] sm:$0xff]
        %v298 = vld [vmem:[%s4] sm:$0xff]
        %v299 = vld [vmem:[%s4 + $0x8] sm:$0xff]
        %v300 = vld [vmem:[%s4 + $0x10] sm:$0xff]
        %v301 = vld [vmem:[%s4 + $0x18] sm:$0xff]
        %v302 = vld [vmem:[%s5] sm:$0xff]
        %v303 = vld [vmem:[%s5 + $0x8] sm:$0xff]
        %v304 = vld [vmem:[%s5 + $0x10] sm:$0xff]
        %v305 = vld [vmem:[%s5 + $0x18] sm:$0xff]
        %v306 = vld [vmem:[%s5 + $0x20] sm:$0xff]
        %v307 = vld [vmem:[%s5 + $0x28] sm:$0xff]
        %v308 = vld [vmem:[%s5 + $0x30] sm:$0xff]
        %v309 = vld [vmem:[%s5 + $0x38] sm:$0xff]
        %v310 = vld [vmem:[%s5 + $0x40] sm:$0xff]
        %v311 = vld [vmem:[%s5 + $0x48] sm:$0xff]
        %v312 = vld [vmem:[%s5 + $0x50] sm:$0xff]
        %v313 = vld [vmem:[%s5 + $0x58] sm:$0xff]
        %v314 = vld [vmem:[%s5 + $0x60] sm:$0xff]
        %v315 = vld [vmem:[%s5 + $0x68] sm:$0xff]
        %v316 = vld [vmem:[%s5 + $0x70] sm:$0xff]
        %v317 = vld [vmem:[%s5 + $0x78] sm:$0xff]
        %v318 = vld [vmem:[%s6] sm:$0xff]
        %v319 = vld [vmem:[%s6 + $0x8] sm:$0x3]
        %vm320 = vcmask 261120
        %v322 = vsel %vm320, %v288, 0
        %324 = vmatprep.subr.mxu0 0.0
        %325 = vmatpush1.msra.mxu0 0.0
        %326 = vmatprep.subr.mxu0 0.0
        %327 = vmatpush1.msra.mxu0 0.0
        %328 = vmatprep.subr.mxu0 0.0
        %329 = vmatpush1.msra.mxu0 0.0
        %330 = vmatprep.subr.mxu0 0.0
        %331 = vmatpush1.msra.mxu0 0.0
        %332 = vmatprep.subr.mxu0 0.0
        %333 = vmatpush1.msra.mxu0 0.0
        %334 = vmatprep.subr.mxu0 0.0
        %335 = vmatpush1.msra.mxu0 0.0
        %336 = vmatprep.subr.mxu0 0.0
        %337 = vmatpush1.msra.mxu0 0.0
        %338 = vmatprep.subr.mxu0 0.0
        %339 = vmatpush1.msra.mxu0 0.0
        %340 = vmatprep.subr.mxu0 0.0
        %341 = vmatpush1.msra.mxu0 0.0
        %342 = vmatprep.subr.mxu0 0.0
        %343 = vmatpush1.msra.mxu0 0.0
        %344 = vmatprep.subr.mxu0 0.0
        %345 = vmatpush1.msra.mxu0 0.0
        %346 = vmatprep.subr.mxu0 0.0
        %347 = vmatpush1.msra.mxu0 0.0
        %348 = vmatprep.subr.mxu0 0.0
        %349 = vmatpush1.msra.mxu0 %v293
        %350 = vmatprep.subr.mxu0 0.0
        %351 = vmatpush1.msra.mxu0 %v292
        %352 = vmatprep.subr.mxu0 0.0
        %353 = vmatpush1.msra.mxu0 %v291
        %354 = vmatprep.subr.mxu0 0.0
        %355 = vmatpush1.msra.mxu0 %v290
        %356 = vmatprep.subr.mxu0 0.0
        %357 = vmatpush2.msra.mxu0 0.0
        %358 = vmatprep.subr.mxu0 0.0
        %359 = vmatpush2.msra.mxu0 0.0
        %360 = vmatprep.subr.mxu0 0.0
        %361 = vmatpush2.msra.mxu0 0.0
        %362 = vmatprep.subr.mxu0 0.0
        %363 = vmatpush2.msra.mxu0 0.0
        %364 = vmatprep.subr.mxu0 0.0
        %365 = vmatpush2.msra.mxu0 0.0
        %366 = vmatprep.subr.mxu0 0.0
        %367 = vmatpush2.msra.mxu0 0.0
        %368 = vmatprep.subr.mxu0 0.0
        %369 = vmatpush2.msra.mxu0 0.0
        %370 = vmatprep.subr.mxu0 0.0
        %371 = vmatpush2.msra.mxu0 0.0
        %372 = vmatprep.subr.mxu0 0.0
        %373 = vmatpush2.msra.mxu0 0.0
        %374 = vmatprep.subr.mxu0 0.0
        %375 = vmatpush2.msra.mxu0 0.0
        %376 = vmatprep.subr.mxu0 0.0
        %377 = vmatpush2.msra.mxu0 0.0
        %378 = vmatprep.subr.mxu0 0.0
        %379 = vmatpush2.msra.mxu0 0.0
        %380 = vmatprep.subr.mxu0 0.0
        %381 = vmatpush2.msra.mxu0 0.0
        %382 = vmatprep.subr.mxu0 0.0
        %383 = vmatpush2.msra.mxu0 0.0
        %384 = vmatprep.subr.mxu0 0.0
        %385 = vmatpush2.msra.mxu0 0.0
        %386 = vmatprep.subr.mxu0 0.0
        %387 = vmatpush2.msra.mxu0 0.0
        %388 = vmatprep.mubr.f32.mxu0 0.0
        %389 = vmatmul.mubr.f32.gmra.mxu0 %v322
        %v390 = vpop.f32.mrf.mxu0
        %v391 = vadd.f32 0.0, %v390
        %v392 = vpop.f32.mrf.mxu0
        %393 = vdwg.mxu0
        %v394 = vlaneseq
        %v395 = vshrl.u32 %v394, 7
        %v396 = vsub.s32 0, %v395
        %v397 = vrot.slane %v318, %v396
        %v398 = vadd.f32 %v391, %v397
        %v399 = vlaneseq
        %v400 = vshrl.u32 %v399, 7
        %v401 = vsub.s32 1, %v400
        %v402 = vrot.slane %v318, %v401
        %404 = vrot.lane.b32.xlu0 %v402, 32
        %v405 = vpop.permute.xlu0 %404
        %v407 = vadd.f32 %v391, %v405
        %v408 = vlaneseq
        %v409 = vshrl.u32 %v408, 7
        %v410 = vsub.s32 2, %v409
        %v411 = vrot.slane %v318, %v410
        %413 = vrot.lane.b32.xlu0 %v411, 64
        %v414 = vpop.permute.xlu0 %413
        %v416 = vadd.f32 %v391, %v414
        %v418 = vlaneseq
        %v419 = vshrl.u32 %v418, 7
        %v420 = vsub.s32 0, %v419
        %v421 = vrot.slane %v289, %v420
        %424 = vrot.lane.b32.xlu0 %v407, 96
        %v425 = vpop.permute.xlu0 %424
        %vm426 = vcmask 64512
        %v428 = vsel %vm426, %v398, 0
        %v430 = vsel %vm426, %v425, 0
        %432 = vmatprep.subr.mxu0 0.0
        %433 = vmatpush1.xpose.msra.mxu0 0.0
        %434 = vmatprep.subr.mxu0 0.0
        %435 = vmatpush1.xpose.msra.mxu0 0.0
        %436 = vmatprep.subr.mxu0 0.0
        %437 = vmatpush1.xpose.msra.mxu0 0.0
        %438 = vmatprep.subr.mxu0 0.0
        %439 = vmatpush1.xpose.msra.mxu0 0.0
        %440 = vmatprep.subr.mxu0 0.0
        %441 = vmatpush1.xpose.msra.mxu0 0.0
        %442 = vmatprep.subr.mxu0 0.0
        %443 = vmatpush1.xpose.msra.mxu0 0.0
        %444 = vmatprep.subr.mxu0 0.0
        %445 = vmatpush1.xpose.msra.mxu0 0.0
        %446 = vmatprep.subr.mxu0 0.0
        %447 = vmatpush1.xpose.msra.mxu0 0.0
        %448 = vmatprep.subr.mxu0 0.0
        %449 = vmatpush1.xpose.msra.mxu0 0.0
        %450 = vmatprep.subr.mxu0 0.0
        %451 = vmatpush1.xpose.msra.mxu0 0.0
        %452 = vmatprep.subr.mxu0 0.0
        %453 = vmatpush1.xpose.msra.mxu0 0.0
        %454 = vmatprep.subr.mxu0 0.0
        %455 = vmatpush1.xpose.msra.mxu0 0.0
        %456 = vmatprep.subr.mxu0 0.0
        %457 = vmatpush1.xpose.msra.mxu0 0.0
        %458 = vmatprep.subr.mxu0 0.0
        %459 = vmatpush1.xpose.msra.mxu0 0.0
        %460 = vmatprep.subr.mxu0 0.0
        %461 = vmatpush1.xpose.msra.mxu0 0.0
        %462 = vmatprep.subr.mxu0 0.0
        %463 = vmatpush1.xpose.msra.mxu0 %v430
        %464 = vmatprep.subr.mxu0 0.0
        %465 = vmatpush2.xpose.msra.mxu0 0.0
        %466 = vmatprep.subr.mxu0 0.0
        %467 = vmatpush2.xpose.msra.mxu0 0.0
        %468 = vmatprep.subr.mxu0 0.0
        %469 = vmatpush2.xpose.msra.mxu0 0.0
        %470 = vmatprep.subr.mxu0 0.0
        %471 = vmatpush2.xpose.msra.mxu0 0.0
        %472 = vmatprep.subr.mxu0 0.0
        %473 = vmatpush2.xpose.msra.mxu0 0.0
        %474 = vmatprep.subr.mxu0 0.0
        %475 = vmatpush2.xpose.msra.mxu0 0.0
        %476 = vmatprep.subr.mxu0 0.0
        %477 = vmatpush2.xpose.msra.mxu0 0.0
        %478 = vmatprep.subr.mxu0 0.0
        %479 = vmatpush2.xpose.msra.mxu0 0.0
        %480 = vmatprep.subr.mxu0 0.0
        %481 = vmatpush2.xpose.msra.mxu0 0.0
        %482 = vmatprep.subr.mxu0 0.0
        %483 = vmatpush2.xpose.msra.mxu0 0.0
        %484 = vmatprep.subr.mxu0 0.0
        %485 = vmatpush2.xpose.msra.mxu0 0.0
        %486 = vmatprep.subr.mxu0 0.0
        %487 = vmatpush2.xpose.msra.mxu0 0.0
        %488 = vmatprep.subr.mxu0 0.0
        %489 = vmatpush2.xpose.msra.mxu0 0.0
        %490 = vmatprep.subr.mxu0 0.0
        %491 = vmatpush2.xpose.msra.mxu0 0.0
        %492 = vmatprep.subr.mxu0 0.0
        %493 = vmatpush2.xpose.msra.mxu0 0.0
        %494 = vmatprep.subr.mxu0 0.0
        %495 = vmatpush2.xpose.msra.mxu0 0.0
        %496 = vmatprep.mubr.f32.mxu0 0.0
        %497 = vmatmul.mubr.f32.gmra.mxu0 %v428
        %v498 = vpop.f32.mrf.mxu0
        %v499 = vadd.f32 %v421, %v498
        %v500 = vpop.f32.mrf.mxu0
        %501 = vdwg.mxu0
        %v502 = vsel %vm426, %v499, -inf
        %503 = vmax.xlane.f32.xlu0 %v502
        %v504 = vpop.xlane.xlu0 %503
        %v505 = vsub.f32 %v499, %v504
        %v506 = vmul.f32 %v505, 1.442695
        %v507 = vpow.pop %v506
        %v508 = vsel %vm426, %v507, 0.0
        %509 = vadd.xlane.f32.xlu0 %v508
        %v510 = vpop.xlane.xlu0 %509
        %v511 = vrcp.pop %v510
        %v512 = vmul.f32 %v507, %v511
        %514 = vrot.lane.b32.xlu0 %v416, 64
        %v515 = vpop.permute.xlu0 %514
        %v518 = vsel %vm426, %v512, 0
        %520 = vmatprep.subr.mxu0 0.0
        %521 = vmatpush1.msra.mxu0 0.0
        %522 = vmatprep.subr.mxu0 0.0
        %523 = vmatpush1.msra.mxu0 0.0
        %524 = vmatprep.subr.mxu0 0.0
        %525 = vmatpush1.msra.mxu0 0.0
        %526 = vmatprep.subr.mxu0 0.0
        %527 = vmatpush1.msra.mxu0 0.0
        %528 = vmatprep.subr.mxu0 0.0
        %529 = vmatpush1.msra.mxu0 0.0
        %530 = vmatprep.subr.mxu0 0.0
        %531 = vmatpush1.msra.mxu0 0.0
        %532 = vmatprep.subr.mxu0 0.0
        %533 = vmatpush1.msra.mxu0 0.0
        %534 = vmatprep.subr.mxu0 0.0
        %535 = vmatpush1.msra.mxu0 0.0
        %536 = vmatprep.subr.mxu0 0.0
        %537 = vmatpush1.msra.mxu0 0.0
        %538 = vmatprep.subr.mxu0 0.0
        %539 = vmatpush1.msra.mxu0 0.0
        %540 = vmatprep.subr.mxu0 0.0
        %541 = vmatpush1.msra.mxu0 0.0
        %542 = vmatprep.subr.mxu0 0.0
        %543 = vmatpush1.msra.mxu0 0.0
        %544 = vmatprep.subr.mxu0 0.0
        %545 = vmatpush1.msra.mxu0 0.0
        %546 = vmatprep.subr.mxu0 0.0
        %547 = vmatpush1.msra.mxu0 0.0
        %548 = vmatprep.subr.mxu0 0.0
        %549 = vmatpush1.msra.mxu0 0.0
        %550 = vmatprep.subr.mxu0 0.0
        %551 = vmatpush1.msra.mxu0 %v515
        %552 = vmatprep.subr.mxu0 0.0
        %553 = vmatpush2.msra.mxu0 0.0
        %554 = vmatprep.subr.mxu0 0.0
        %555 = vmatpush2.msra.mxu0 0.0
        %556 = vmatprep.subr.mxu0 0.0
        %557 = vmatpush2.msra.mxu0 0.0
        %558 = vmatprep.subr.mxu0 0.0
        %559 = vmatpush2.msra.mxu0 0.0
        %560 = vmatprep.subr.mxu0 0.0
        %561 = vmatpush2.msra.mxu0 0.0
        %562 = vmatprep.subr.mxu0 0.0
        %563 = vmatpush2.msra.mxu0 0.0
        %564 = vmatprep.subr.mxu0 0.0
        %565 = vmatpush2.msra.mxu0 0.0
        %566 = vmatprep.subr.mxu0 0.0
        %567 = vmatpush2.msra.mxu0 0.0
        %568 = vmatprep.subr.mxu0 0.0
        %569 = vmatpush2.msra.mxu0 0.0
        %570 = vmatprep.subr.mxu0 0.0
        %571 = vmatpush2.msra.mxu0 0.0
        %572 = vmatprep.subr.mxu0 0.0
        %573 = vmatpush2.msra.mxu0 0.0
        %574 = vmatprep.subr.mxu0 0.0
        %575 = vmatpush2.msra.mxu0 0.0
        %576 = vmatprep.subr.mxu0 0.0
        %577 = vmatpush2.msra.mxu0 0.0
        %578 = vmatprep.subr.mxu0 0.0
        %579 = vmatpush2.msra.mxu0 0.0
        %580 = vmatprep.subr.mxu0 0.0
        %581 = vmatpush2.msra.mxu0 0.0
        %582 = vmatprep.subr.mxu0 0.0
        %583 = vmatpush2.msra.mxu0 0.0
        %584 = vmatprep.mubr.f32.mxu0 0.0
        %585 = vmatmul.mubr.f32.gmra.mxu0 %v518
        %v586 = vpop.f32.mrf.mxu0
        %v587 = vadd.f32 0.0, %v586
        %v588 = vpop.f32.mrf.mxu0
        %589 = vdwg.mxu0
        %590 = vst.msk [vmem:[#allocation2] sm:$0xff] %vm426, %v587
        %591 = vrot.lane.b32.xlu0 %v398, 120
        %v592 = vpop.permute.xlu0 %591
        %593 = vrot.lane.b32.xlu0 %v407, 88
        %v594 = vpop.permute.xlu0 %593
        %v595 = vsel %vm426, %v592, 0
        %v597 = vsel %vm426, %v594, 0
        %599 = vmatprep.subr.mxu0 0.0
        %600 = vmatpush1.xpose.msra.mxu0 0.0
        %601 = vmatprep.subr.mxu0 0.0
        %602 = vmatpush1.xpose.msra.mxu0 0.0
        %603 = vmatprep.subr.mxu0 0.0
        %604 = vmatpush1.xpose.msra.mxu0 0.0
        %605 = vmatprep.subr.mxu0 0.0
        %606 = vmatpush1.xpose.msra.mxu0 0.0
        %607 = vmatprep.subr.mxu0 0.0
        %608 = vmatpush1.xpose.msra.mxu0 0.0
        %609 = vmatprep.subr.mxu0 0.0
        %610 = vmatpush1.xpose.msra.mxu0 0.0
        %611 = vmatprep.subr.mxu0 0.0
        %612 = vmatpush1.xpose.msra.mxu0 0.0
        %613 = vmatprep.subr.mxu0 0.0
        %614 = vmatpush1.xpose.msra.mxu0 0.0
        %615 = vmatprep.subr.mxu0 0.0
        %616 = vmatpush1.xpose.msra.mxu0 0.0
        %617 = vmatprep.subr.mxu0 0.0
        %618 = vmatpush1.xpose.msra.mxu0 0.0
        %619 = vmatprep.subr.mxu0 0.0
        %620 = vmatpush1.xpose.msra.mxu0 0.0
        %621 = vmatprep.subr.mxu0 0.0
        %622 = vmatpush1.xpose.msra.mxu0 0.0
        %623 = vmatprep.subr.mxu0 0.0
        %624 = vmatpush1.xpose.msra.mxu0 0.0
        %625 = vmatprep.subr.mxu0 0.0
        %626 = vmatpush1.xpose.msra.mxu0 0.0
        %627 = vmatprep.subr.mxu0 0.0
        %628 = vmatpush1.xpose.msra.mxu0 0.0
        %629 = vmatprep.subr.mxu0 0.0
        %630 = vmatpush1.xpose.msra.mxu0 %v597
        %631 = vmatprep.subr.mxu0 0.0
        %632 = vmatpush2.xpose.msra.mxu0 0.0
        %633 = vmatprep.subr.mxu0 0.0
        %634 = vmatpush2.xpose.msra.mxu0 0.0
        %635 = vmatprep.subr.mxu0 0.0
        %636 = vmatpush2.xpose.msra.mxu0 0.0
        %637 = vmatprep.subr.mxu0 0.0
        %638 = vmatpush2.xpose.msra.mxu0 0.0
        %639 = vmatprep.subr.mxu0 0.0
        %640 = vmatpush2.xpose.msra.mxu0 0.0
        %641 = vmatprep.subr.mxu0 0.0
        %642 = vmatpush2.xpose.msra.mxu0 0.0
        %643 = vmatprep.subr.mxu0 0.0
        %644 = vmatpush2.xpose.msra.mxu0 0.0
        %645 = vmatprep.subr.mxu0 0.0
        %646 = vmatpush2.xpose.msra.mxu0 0.0
        %647 = vmatprep.subr.mxu0 0.0
        %648 = vmatpush2.xpose.msra.mxu0 0.0
        %649 = vmatprep.subr.mxu0 0.0
        %650 = vmatpush2.xpose.msra.mxu0 0.0
        %651 = vmatprep.subr.mxu0 0.0
        %652 = vmatpush2.xpose.msra.mxu0 0.0
        %653 = vmatprep.subr.mxu0 0.0
        %654 = vmatpush2.xpose.msra.mxu0 0.0
        %655 = vmatprep.subr.mxu0 0.0
        %656 = vmatpush2.xpose.msra.mxu0 0.0
        %657 = vmatprep.subr.mxu0 0.0
        %658 = vmatpush2.xpose.msra.mxu0 0.0
        %659 = vmatprep.subr.mxu0 0.0
        %660 = vmatpush2.xpose.msra.mxu0 0.0
        %661 = vmatprep.subr.mxu0 0.0
        %662 = vmatpush2.xpose.msra.mxu0 0.0
        %663 = vmatprep.mubr.f32.mxu0 0.0
        %664 = vmatmul.mubr.f32.gmra.mxu0 %v595
        %v665 = vpop.f32.mrf.mxu0
        %v666 = vadd.f32 %v421, %v665
        %v667 = vpop.f32.mrf.mxu0
        %668 = vdwg.mxu0
        %v669 = vsel %vm426, %v666, -inf
        %670 = vmax.xlane.f32.xlu0 %v669
        %v671 = vpop.xlane.xlu0 %670
        %v672 = vsub.f32 %v666, %v671
        %v673 = vmul.f32 %v672, 1.442695
        %v674 = vpow.pop %v673
        %v675 = vsel %vm426, %v674, 0.0
        %676 = vadd.xlane.f32.xlu0 %v675
        %v677 = vpop.xlane.xlu0 %676
        %v678 = vrcp.pop %v677
        %v679 = vmul.f32 %v674, %v678
        %680 = vrot.lane.b32.xlu0 %v416, 56
        %v681 = vpop.permute.xlu0 %680
        %v684 = vsel %vm426, %v679, 0
        %686 = vmatprep.subr.mxu0 0.0
        %687 = vmatpush1.msra.mxu0 0.0
        %688 = vmatprep.subr.mxu0 0.0
        %689 = vmatpush1.msra.mxu0 0.0
        %690 = vmatprep.subr.mxu0 0.0
        %691 = vmatpush1.msra.mxu0 0.0
        %692 = vmatprep.subr.mxu0 0.0
        %693 = vmatpush1.msra.mxu0 0.0
        %694 = vmatprep.subr.mxu0 0.0
        %695 = vmatpush1.msra.mxu0 0.0
        %696 = vmatprep.subr.mxu0 0.0
        %697 = vmatpush1.msra.mxu0 0.0
        %698 = vmatprep.subr.mxu0 0.0
        %699 = vmatpush1.msra.mxu0 0.0
        %700 = vmatprep.subr.mxu0 0.0
        %701 = vmatpush1.msra.mxu0 0.0
        %702 = vmatprep.subr.mxu0 0.0
        %703 = vmatpush1.msra.mxu0 0.0
        %704 = vmatprep.subr.mxu0 0.0
        %705 = vmatpush1.msra.mxu0 0.0
        %706 = vmatprep.subr.mxu0 0.0
        %707 = vmatpush1.msra.mxu0 0.0
        %708 = vmatprep.subr.mxu0 0.0
        %709 = vmatpush1.msra.mxu0 0.0
        %710 = vmatprep.subr.mxu0 0.0
        %711 = vmatpush1.msra.mxu0 0.0
        %712 = vmatprep.subr.mxu0 0.0
        %713 = vmatpush1.msra.mxu0 0.0
        %714 = vmatprep.subr.mxu0 0.0
        %715 = vmatpush1.msra.mxu0 0.0
        %716 = vmatprep.subr.mxu0 0.0
        %717 = vmatpush1.msra.mxu0 %v681
        %718 = vmatprep.subr.mxu0 0.0
        %719 = vmatpush2.msra.mxu0 0.0
        %720 = vmatprep.subr.mxu0 0.0
        %721 = vmatpush2.msra.mxu0 0.0
        %722 = vmatprep.subr.mxu0 0.0
        %723 = vmatpush2.msra.mxu0 0.0
        %724 = vmatprep.subr.mxu0 0.0
        %725 = vmatpush2.msra.mxu0 0.0
        %726 = vmatprep.subr.mxu0 0.0
        %727 = vmatpush2.msra.mxu0 0.0
        %728 = vmatprep.subr.mxu0 0.0
        %729 = vmatpush2.msra.mxu0 0.0
        %730 = vmatprep.subr.mxu0 0.0
        %731 = vmatpush2.msra.mxu0 0.0
        %732 = vmatprep.subr.mxu0 0.0
        %733 = vmatpush2.msra.mxu0 0.0
        %734 = vmatprep.subr.mxu0 0.0
        %735 = vmatpush2.msra.mxu0 0.0
        %736 = vmatprep.subr.mxu0 0.0
        %737 = vmatpush2.msra.mxu0 0.0
        %738 = vmatprep.subr.mxu0 0.0
        %739 = vmatpush2.msra.mxu0 0.0
        %740 = vmatprep.subr.mxu0 0.0
        %741 = vmatpush2.msra.mxu0 0.0
        %742 = vmatprep.subr.mxu0 0.0
        %743 = vmatpush2.msra.mxu0 0.0
        %744 = vmatprep.subr.mxu0 0.0
        %745 = vmatpush2.msra.mxu0 0.0
        %746 = vmatprep.subr.mxu0 0.0
        %747 = vmatpush2.msra.mxu0 0.0
        %748 = vmatprep.subr.mxu0 0.0
        %749 = vmatpush2.msra.mxu0 0.0
        %750 = vmatprep.mubr.f32.mxu0 0.0
        %751 = vmatmul.mubr.f32.gmra.mxu0 %v684
        %v752 = vpop.f32.mrf.mxu0
        %v753 = vadd.f32 0.0, %v752
        %v754 = vpop.f32.mrf.mxu0
        %755 = vdwg.mxu0
        %757 = vrot.lane.b32.xlu0 %v753, 8
        %v758 = vpop.permute.xlu0 %757
        %vm760 = vcmask 130112
        %761 = vst.msk [vmem:[#allocation2] sm:$0xff] %vm760, %v758
        %762 = vrot.lane.b32.xlu0 %v398, 112
        %v763 = vpop.permute.xlu0 %762
        %764 = vrot.lane.b32.xlu0 %v407, 80
        %v765 = vpop.permute.xlu0 %764
        %v766 = vsel %vm426, %v763, 0
        %v768 = vsel %vm426, %v765, 0
        %770 = vmatprep.subr.mxu0 0.0
        %771 = vmatpush1.xpose.msra.mxu0 0.0
        %772 = vmatprep.subr.mxu0 0.0
        %773 = vmatpush1.xpose.msra.mxu0 0.0
        %774 = vmatprep.subr.mxu0 0.0
        %775 = vmatpush1.xpose.msra.mxu0 0.0
        %776 = vmatprep.subr.mxu0 0.0
        %777 = vmatpush1.xpose.msra.mxu0 0.0
        %778 = vmatprep.subr.mxu0 0.0
        %779 = vmatpush1.xpose.msra.mxu0 0.0
        %780 = vmatprep.subr.mxu0 0.0
        %781 = vmatpush1.xpose.msra.mxu0 0.0
        %782 = vmatprep.subr.mxu0 0.0
        %783 = vmatpush1.xpose.msra.mxu0 0.0
        %784 = vmatprep.subr.mxu0 0.0
        %785 = vmatpush1.xpose.msra.mxu0 0.0
        %786 = vmatprep.subr.mxu0 0.0
        %787 = vmatpush1.xpose.msra.mxu0 0.0
        %788 = vmatprep.subr.mxu0 0.0
        %789 = vmatpush1.xpose.msra.mxu0 0.0
        %790 = vmatprep.subr.mxu0 0.0
        %791 = vmatpush1.xpose.msra.mxu0 0.0
        %792 = vmatprep.subr.mxu0 0.0
        %793 = vmatpush1.xpose.msra.mxu0 0.0
        %794 = vmatprep.subr.mxu0 0.0
        %795 = vmatpush1.xpose.msra.mxu0 0.0
        %796 = vmatprep.subr.mxu0 0.0
        %797 = vmatpush1.xpose.msra.mxu0 0.0
        %798 = vmatprep.subr.mxu0 0.0
        %799 = vmatpush1.xpose.msra.mxu0 0.0
        %800 = vmatprep.subr.mxu0 0.0
        %801 = vmatpush1.xpose.msra.mxu0 %v768
        %802 = vmatprep.subr.mxu0 0.0
        %803 = vmatpush2.xpose.msra.mxu0 0.0
        %804 = vmatprep.subr.mxu0 0.0
        %805 = vmatpush2.xpose.msra.mxu0 0.0
        %806 = vmatprep.subr.mxu0 0.0
        %807 = vmatpush2.xpose.msra.mxu0 0.0
        %808 = vmatprep.subr.mxu0 0.0
        %809 = vmatpush2.xpose.msra.mxu0 0.0
        %810 = vmatprep.subr.mxu0 0.0
        %811 = vmatpush2.xpose.msra.mxu0 0.0
        %812 = vmatprep.subr.mxu0 0.0
        %813 = vmatpush2.xpose.msra.mxu0 0.0
        %814 = vmatprep.subr.mxu0 0.0
        %815 = vmatpush2.xpose.msra.mxu0 0.0
        %816 = vmatprep.subr.mxu0 0.0
        %817 = vmatpush2.xpose.msra.mxu0 0.0
        %818 = vmatprep.subr.mxu0 0.0
        %819 = vmatpush2.xpose.msra.mxu0 0.0
        %820 = vmatprep.subr.mxu0 0.0
        %821 = vmatpush2.xpose.msra.mxu0 0.0
        %822 = vmatprep.subr.mxu0 0.0
        %823 = vmatpush2.xpose.msra.mxu0 0.0
        %824 = vmatprep.subr.mxu0 0.0
        %825 = vmatpush2.xpose.msra.mxu0 0.0
        %826 = vmatprep.subr.mxu0 0.0
        %827 = vmatpush2.xpose.msra.mxu0 0.0
        %828 = vmatprep.subr.mxu0 0.0
        %829 = vmatpush2.xpose.msra.mxu0 0.0
        %830 = vmatprep.subr.mxu0 0.0
        %831 = vmatpush2.xpose.msra.mxu0 0.0
        %832 = vmatprep.subr.mxu0 0.0
        %833 = vmatpush2.xpose.msra.mxu0 0.0
        %834 = vmatprep.mubr.f32.mxu0 0.0
        %835 = vmatmul.mubr.f32.gmra.mxu0 %v766
        %v836 = vpop.f32.mrf.mxu0
        %v837 = vadd.f32 %v421, %v836
        %v838 = vpop.f32.mrf.mxu0
        %839 = vdwg.mxu0
        %v840 = vsel %vm426, %v837, -inf
        %841 = vmax.xlane.f32.xlu0 %v840
        %v842 = vpop.xlane.xlu0 %841
        %v843 = vsub.f32 %v837, %v842
        %v844 = vmul.f32 %v843, 1.442695
        %v845 = vpow.pop %v844
        %v846 = vsel %vm426, %v845, 0.0
        %847 = vadd.xlane.f32.xlu0 %v846
        %v848 = vpop.xlane.xlu0 %847
        %v849 = vrcp.pop %v848
        %v850 = vmul.f32 %v845, %v849
        %851 = vrot.lane.b32.xlu0 %v416, 48
        %v852 = vpop.permute.xlu0 %851
        %v855 = vsel %vm426, %v850, 0
        %857 = vmatprep.subr.mxu0 0.0
        %858 = vmatpush1.msra.mxu0 0.0
        %859 = vmatprep.subr.mxu0 0.0
        %860 = vmatpush1.msra.mxu0 0.0
        %861 = vmatprep.subr.mxu0 0.0
        %862 = vmatpush1.msra.mxu0 0.0
        %863 = vmatprep.subr.mxu0 0.0
        %864 = vmatpush1.msra.mxu0 0.0
        %865 = vmatprep.subr.mxu0 0.0
        %866 = vmatpush1.msra.mxu0 0.0
        %867 = vmatprep.subr.mxu0 0.0
        %868 = vmatpush1.msra.mxu0 0.0
        %869 = vmatprep.subr.mxu0 0.0
        %870 = vmatpush1.msra.mxu0 0.0
        %871 = vmatprep.subr.mxu0 0.0
        %872 = vmatpush1.msra.mxu0 0.0
        %873 = vmatprep.subr.mxu0 0.0
        %874 = vmatpush1.msra.mxu0 0.0
        %875 = vmatprep.subr.mxu0 0.0
        %876 = vmatpush1.msra.mxu0 0.0
        %877 = vmatprep.subr.mxu0 0.0
        %878 = vmatpush1.msra.mxu0 0.0
        %879 = vmatprep.subr.mxu0 0.0
        %880 = vmatpush1.msra.mxu0 0.0
        %881 = vmatprep.subr.mxu0 0.0
        %882 = vmatpush1.msra.mxu0 0.0
        %883 = vmatprep.subr.mxu0 0.0
        %884 = vmatpush1.msra.mxu0 0.0
        %885 = vmatprep.subr.mxu0 0.0
        %886 = vmatpush1.msra.mxu0 0.0
        %887 = vmatprep.subr.mxu0 0.0
        %888 = vmatpush1.msra.mxu0 %v852
        %889 = vmatprep.subr.mxu0 0.0
        %890 = vmatpush2.msra.mxu0 0.0
        %891 = vmatprep.subr.mxu0 0.0
        %892 = vmatpush2.msra.mxu0 0.0
        %893 = vmatprep.subr.mxu0 0.0
        %894 = vmatpush2.msra.mxu0 0.0
        %895 = vmatprep.subr.mxu0 0.0
        %896 = vmatpush2.msra.mxu0 0.0
        %897 = vmatprep.subr.mxu0 0.0
        %898 = vmatpush2.msra.mxu0 0.0
        %899 = vmatprep.subr.mxu0 0.0
        %900 = vmatpush2.msra.mxu0 0.0
        %901 = vmatprep.subr.mxu0 0.0
        %902 = vmatpush2.msra.mxu0 0.0
        %903 = vmatprep.subr.mxu0 0.0
        %904 = vmatpush2.msra.mxu0 0.0
        %905 = vmatprep.subr.mxu0 0.0
        %906 = vmatpush2.msra.mxu0 0.0
        %907 = vmatprep.subr.mxu0 0.0
        %908 = vmatpush2.msra.mxu0 0.0
        %909 = vmatprep.subr.mxu0 0.0
        %910 = vmatpush2.msra.mxu0 0.0
        %911 = vmatprep.subr.mxu0 0.0
        %912 = vmatpush2.msra.mxu0 0.0
        %913 = vmatprep.subr.mxu0 0.0
        %914 = vmatpush2.msra.mxu0 0.0
        %915 = vmatprep.subr.mxu0 0.0
        %916 = vmatpush2.msra.mxu0 0.0
        %917 = vmatprep.subr.mxu0 0.0
        %918 = vmatpush2.msra.mxu0 0.0
        %919 = vmatprep.subr.mxu0 0.0
        %920 = vmatpush2.msra.mxu0 0.0
        %921 = vmatprep.mubr.f32.mxu0 0.0
        %922 = vmatmul.mubr.f32.gmra.mxu0 %v855
        %v923 = vpop.f32.mrf.mxu0
        %v924 = vadd.f32 0.0, %v923
        %v925 = vpop.f32.mrf.mxu0
        %926 = vdwg.mxu0
        %928 = vrot.lane.b32.xlu0 %v924, 16
        %v929 = vpop.permute.xlu0 %928
        %vm931 = vcmask 195712
        %932 = vst.msk [vmem:[#allocation2] sm:$0xff] %vm931, %v929
        %933 = vrot.lane.b32.xlu0 %v398, 104
        %v934 = vpop.permute.xlu0 %933
        %935 = vrot.lane.b32.xlu0 %v407, 72
        %v936 = vpop.permute.xlu0 %935
        %v937 = vsel %vm426, %v934, 0
        %v939 = vsel %vm426, %v936, 0
        %941 = vmatprep.subr.mxu0 0.0
        %942 = vmatpush1.xpose.msra.mxu0 0.0
        %943 = vmatprep.subr.mxu0 0.0
        %944 = vmatpush1.xpose.msra.mxu0 0.0
        %945 = vmatprep.subr.mxu0 0.0
        %946 = vmatpush1.xpose.msra.mxu0 0.0
        %947 = vmatprep.subr.mxu0 0.0
        %948 = vmatpush1.xpose.msra.mxu0 0.0
        %949 = vmatprep.subr.mxu0 0.0
        %950 = vmatpush1.xpose.msra.mxu0 0.0
        %951 = vmatprep.subr.mxu0 0.0
        %952 = vmatpush1.xpose.msra.mxu0 0.0
        %953 = vmatprep.subr.mxu0 0.0
        %954 = vmatpush1.xpose.msra.mxu0 0.0
        %955 = vmatprep.subr.mxu0 0.0
        %956 = vmatpush1.xpose.msra.mxu0 0.0
        %957 = vmatprep.subr.mxu0 0.0
        %958 = vmatpush1.xpose.msra.mxu0 0.0
        %959 = vmatprep.subr.mxu0 0.0
        %960 = vmatpush1.xpose.msra.mxu0 0.0
        %961 = vmatprep.subr.mxu0 0.0
        %962 = vmatpush1.xpose.msra.mxu0 0.0
        %963 = vmatprep.subr.mxu0 0.0
        %964 = vmatpush1.xpose.msra.mxu0 0.0
        %965 = vmatprep.subr.mxu0 0.0
        %966 = vmatpush1.xpose.msra.mxu0 0.0
        %967 = vmatprep.subr.mxu0 0.0
        %968 = vmatpush1.xpose.msra.mxu0 0.0
        %969 = vmatprep.subr.mxu0 0.0
        %970 = vmatpush1.xpose.msra.mxu0 0.0
        %971 = vmatprep.subr.mxu0 0.0
        %972 = vmatpush1.xpose.msra.mxu0 %v939
        %973 = vmatprep.subr.mxu0 0.0
        %974 = vmatpush2.xpose.msra.mxu0 0.0
        %975 = vmatprep.subr.mxu0 0.0
        %976 = vmatpush2.xpose.msra.mxu0 0.0
        %977 = vmatprep.subr.mxu0 0.0
        %978 = vmatpush2.xpose.msra.mxu0 0.0
        %979 = vmatprep.subr.mxu0 0.0
        %980 = vmatpush2.xpose.msra.mxu0 0.0
        %981 = vmatprep.subr.mxu0 0.0
        %982 = vmatpush2.xpose.msra.mxu0 0.0
        %983 = vmatprep.subr.mxu0 0.0
        %984 = vmatpush2.xpose.msra.mxu0 0.0
        %985 = vmatprep.subr.mxu0 0.0
        %986 = vmatpush2.xpose.msra.mxu0 0.0
        %987 = vmatprep.subr.mxu0 0.0
        %988 = vmatpush2.xpose.msra.mxu0 0.0
        %989 = vmatprep.subr.mxu0 0.0
        %990 = vmatpush2.xpose.msra.mxu0 0.0
        %991 = vmatprep.subr.mxu0 0.0
        %992 = vmatpush2.xpose.msra.mxu0 0.0
        %993 = vmatprep.subr.mxu0 0.0
        %994 = vmatpush2.xpose.msra.mxu0 0.0
        %995 = vmatprep.subr.mxu0 0.0
        %996 = vmatpush2.xpose.msra.mxu0 0.0
        %997 = vmatprep.subr.mxu0 0.0
        %998 = vmatpush2.xpose.msra.mxu0 0.0
        %999 = vmatprep.subr.mxu0 0.0
        %1000 = vmatpush2.xpose.msra.mxu0 0.0
        %1001 = vmatprep.subr.mxu0 0.0
        %1002 = vmatpush2.xpose.msra.mxu0 0.0
        %1003 = vmatprep.subr.mxu0 0.0
        %1004 = vmatpush2.xpose.msra.mxu0 0.0
        %1005 = vmatprep.mubr.f32.mxu0 0.0
        %1006 = vmatmul.mubr.f32.gmra.mxu0 %v937
        %v1007 = vpop.f32.mrf.mxu0
        %v1008 = vadd.f32 %v421, %v1007
        %v1009 = vpop.f32.mrf.mxu0
        %1010 = vdwg.mxu0
        %v1011 = vsel %vm426, %v1008, -inf
        %1012 = vmax.xlane.f32.xlu0 %v1011
        %v1013 = vpop.xlane.xlu0 %1012
        %v1014 = vsub.f32 %v1008, %v1013
        %v1015 = vmul.f32 %v1014, 1.442695
        %v1016 = vpow.pop %v1015
        %v1017 = vsel %vm426, %v1016, 0.0
        %1018 = vadd.xlane.f32.xlu0 %v1017
        %v1019 = vpop.xlane.xlu0 %1018
        %v1020 = vrcp.pop %v1019
        %v1021 = vmul.f32 %v1016, %v1020
        %1022 = vrot.lane.b32.xlu0 %v416, 40
        %v1023 = vpop.permute.xlu0 %1022
        %v1026 = vsel %vm426, %v1021, 0
        %1028 = vmatprep.subr.mxu0 0.0
        %1029 = vmatpush1.msra.mxu0 0.0
        %1030 = vmatprep.subr.mxu0 0.0
        %1031 = vmatpush1.msra.mxu0 0.0
        %1032 = vmatprep.subr.mxu0 0.0
        %1033 = vmatpush1.msra.mxu0 0.0
        %1034 = vmatprep.subr.mxu0 0.0
        %1035 = vmatpush1.msra.mxu0 0.0
        %1036 = vmatprep.subr.mxu0 0.0
        %1037 = vmatpush1.msra.mxu0 0.0
        %1038 = vmatprep.subr.mxu0 0.0
        %1039 = vmatpush1.msra.mxu0 0.0
        %1040 = vmatprep.subr.mxu0 0.0
        %1041 = vmatpush1.msra.mxu0 0.0
        %1042 = vmatprep.subr.mxu0 0.0
        %1043 = vmatpush1.msra.mxu0 0.0
        %1044 = vmatprep.subr.mxu0 0.0
        %1045 = vmatpush1.msra.mxu0 0.0
        %1046 = vmatprep.subr.mxu0 0.0
        %1047 = vmatpush1.msra.mxu0 0.0
        %1048 = vmatprep.subr.mxu0 0.0
        %1049 = vmatpush1.msra.mxu0 0.0
        %1050 = vmatprep.subr.mxu0 0.0
        %1051 = vmatpush1.msra.mxu0 0.0
        %1052 = vmatprep.subr.mxu0 0.0
        %1053 = vmatpush1.msra.mxu0 0.0
        %1054 = vmatprep.subr.mxu0 0.0
        %1055 = vmatpush1.msra.mxu0 0.0
        %1056 = vmatprep.subr.mxu0 0.0
        %1057 = vmatpush1.msra.mxu0 0.0
        %1058 = vmatprep.subr.mxu0 0.0
        %1059 = vmatpush1.msra.mxu0 %v1023
        %1060 = vmatprep.subr.mxu0 0.0
        %1061 = vmatpush2.msra.mxu0 0.0
        %1062 = vmatprep.subr.mxu0 0.0
        %1063 = vmatpush2.msra.mxu0 0.0
        %1064 = vmatprep.subr.mxu0 0.0
        %1065 = vmatpush2.msra.mxu0 0.0
        %1066 = vmatprep.subr.mxu0 0.0
        %1067 = vmatpush2.msra.mxu0 0.0
        %1068 = vmatprep.subr.mxu0 0.0
        %1069 = vmatpush2.msra.mxu0 0.0
        %1070 = vmatprep.subr.mxu0 0.0
        %1071 = vmatpush2.msra.mxu0 0.0
        %1072 = vmatprep.subr.mxu0 0.0
        %1073 = vmatpush2.msra.mxu0 0.0
        %1074 = vmatprep.subr.mxu0 0.0
        %1075 = vmatpush2.msra.mxu0 0.0
        %1076 = vmatprep.subr.mxu0 0.0
        %1077 = vmatpush2.msra.mxu0 0.0
        %1078 = vmatprep.subr.mxu0 0.0
        %1079 = vmatpush2.msra.mxu0 0.0
        %1080 = vmatprep.subr.mxu0 0.0
        %1081 = vmatpush2.msra.mxu0 0.0
        %1082 = vmatprep.subr.mxu0 0.0
        %1083 = vmatpush2.msra.mxu0 0.0
        %1084 = vmatprep.subr.mxu0 0.0
        %1085 = vmatpush2.msra.mxu0 0.0
        %1086 = vmatprep.subr.mxu0 0.0
        %1087 = vmatpush2.msra.mxu0 0.0
        %1088 = vmatprep.subr.mxu0 0.0
        %1089 = vmatpush2.msra.mxu0 0.0
        %1090 = vmatprep.subr.mxu0 0.0
        %1091 = vmatpush2.msra.mxu0 0.0
        %1092 = vmatprep.mubr.f32.mxu0 0.0
        %1093 = vmatmul.mubr.f32.gmra.mxu0 %v1026
        %v1094 = vpop.f32.mrf.mxu0
        %v1095 = vadd.f32 0.0, %v1094
        %v1096 = vpop.f32.mrf.mxu0
        %1097 = vdwg.mxu0
        %1099 = vrot.lane.b32.xlu0 %v1095, 24
        %v1100 = vpop.permute.xlu0 %1099
        %vm1102 = vcmask 261312
        %1103 = vst.msk [vmem:[#allocation2] sm:$0xff] %vm1102, %v1100
        %v1104 = vld [vmem:[#allocation2] sm:$0xff]
        %v1105 = vlaneseq
        %v1106 = vshrl.u32 %v1105, 7
        %v1107 = vsub.s32 3, %v1106
        %v1108 = vrot.slane %v318, %v1107
        %v1110 = vsel %vm320, %v1104, 0
        %1112 = vmatprep.subr.mxu0 0.0
        %1113 = vmatpush1.msra.mxu0 0.0
        %1114 = vmatprep.subr.mxu0 0.0
        %1115 = vmatpush1.msra.mxu0 0.0
        %1116 = vmatprep.subr.mxu0 0.0
        %1117 = vmatpush1.msra.mxu0 0.0
        %1118 = vmatprep.subr.mxu0 0.0
        %1119 = vmatpush1.msra.mxu0 0.0
        %1120 = vmatprep.subr.mxu0 0.0
        %1121 = vmatpush1.msra.mxu0 0.0
        %1122 = vmatprep.subr.mxu0 0.0
        %1123 = vmatpush1.msra.mxu0 0.0
        %1124 = vmatprep.subr.mxu0 0.0
        %1125 = vmatpush1.msra.mxu0 0.0
        %1126 = vmatprep.subr.mxu0 0.0
        %1127 = vmatpush1.msra.mxu0 0.0
        %1128 = vmatprep.subr.mxu0 0.0
        %1129 = vmatpush1.msra.mxu0 0.0
        %1130 = vmatprep.subr.mxu0 0.0
        %1131 = vmatpush1.msra.mxu0 0.0
        %1132 = vmatprep.subr.mxu0 0.0
        %1133 = vmatpush1.msra.mxu0 0.0
        %1134 = vmatprep.subr.mxu0 0.0
        %1135 = vmatpush1.msra.mxu0 0.0
        %1136 = vmatprep.subr.mxu0 0.0
        %1137 = vmatpush1.msra.mxu0 %v297
        %1138 = vmatprep.subr.mxu0 0.0
        %1139 = vmatpush1.msra.mxu0 %v296
        %1140 = vmatprep.subr.mxu0 0.0
        %1141 = vmatpush1.msra.mxu0 %v295
        %1142 = vmatprep.subr.mxu0 0.0
        %1143 = vmatpush1.msra.mxu0 %v294
        %1144 = vmatprep.subr.mxu0 0.0
        %1145 = vmatpush2.msra.mxu0 0.0
        %1146 = vmatprep.subr.mxu0 0.0
        %1147 = vmatpush2.msra.mxu0 0.0
        %1148 = vmatprep.subr.mxu0 0.0
        %1149 = vmatpush2.msra.mxu0 0.0
        %1150 = vmatprep.subr.mxu0 0.0
        %1151 = vmatpush2.msra.mxu0 0.0
        %1152 = vmatprep.subr.mxu0 0.0
        %1153 = vmatpush2.msra.mxu0 0.0
        %1154 = vmatprep.subr.mxu0 0.0
        %1155 = vmatpush2.msra.mxu0 0.0
        %1156 = vmatprep.subr.mxu0 0.0
        %1157 = vmatpush2.msra.mxu0 0.0
        %1158 = vmatprep.subr.mxu0 0.0
        %1159 = vmatpush2.msra.mxu0 0.0
        %1160 = vmatprep.subr.mxu0 0.0
        %1161 = vmatpush2.msra.mxu0 0.0
        %1162 = vmatprep.subr.mxu0 0.0
        %1163 = vmatpush2.msra.mxu0 0.0
        %1164 = vmatprep.subr.mxu0 0.0
        %1165 = vmatpush2.msra.mxu0 0.0
        %1166 = vmatprep.subr.mxu0 0.0
        %1167 = vmatpush2.msra.mxu0 0.0
        %1168 = vmatprep.subr.mxu0 0.0
        %1169 = vmatpush2.msra.mxu0 0.0
        %1170 = vmatprep.subr.mxu0 0.0
        %1171 = vmatpush2.msra.mxu0 0.0
        %1172 = vmatprep.subr.mxu0 0.0
        %1173 = vmatpush2.msra.mxu0 0.0
        %1174 = vmatprep.subr.mxu0 0.0
        %1175 = vmatpush2.msra.mxu0 0.0
        %1176 = vmatprep.mubr.f32.mxu0 0.0
        %1177 = vmatmul.mubr.f32.gmra.mxu0 %v1110
        %v1178 = vpop.f32.mrf.mxu0
        %v1179 = vadd.f32 %v1108, %v1178
        %v1180 = vpop.f32.mrf.mxu0
        %1181 = vdwg.mxu0
        %v1182 = vadd.f32 %v1179, %v288
        %v1183 = vsel %vm320, %v1182, 0.0
        %1184 = vadd.xlane.f32.xlu0 %v1183
        %v1185 = vpop.xlane.xlu0 %1184
        %v1186 = vrcp.pop 32.0
        %v1187 = vmul.f32 %v1185, %v1186
        %v1188 = vsub.f32 %v1182, %v1187
        %v1189 = vmul.f32 %v1188, %v1188
        %v1190 = vsel %vm320, %v1189, 0.0
        %1191 = vadd.xlane.f32.xlu0 %v1190
        %v1192 = vpop.xlane.xlu0 %1191
        %v1193 = vmul.f32 %v1192, %v1186
        %v1194 = vadd.f32 %v1193, 1e-12
        %v1195 = vrsqrt.pop %v1194
        %v1196 = vmul.f32 %v1188, %v1195
        %v1197 = vlaneseq
        %v1198 = vshrl.u32 %v1197, 7
        %v1199 = vsub.s32 5, %v1198
        %v1200 = vrot.slane %v318, %v1199
        %v1201 = vmul.f32 %v1196, %v1200
        %v1202 = vlaneseq
        %v1203 = vshrl.u32 %v1202, 7
        %v1204 = vsub.s32 6, %v1203
        %v1205 = vrot.slane %v318, %v1204
        %v1206 = vadd.f32 %v1201, %v1205
        %v1207 = vlaneseq
        %v1208 = vshrl.u32 %v1207, 7
        %v1209 = vsub.s32 4, %v1208
        %v1210 = vrot.slane %v318, %v1209
        %v1212 = vsel %vm320, %v1206, 0
        %1214 = vmatprep.subr.mxu0 0.0
        %1215 = vmatpush1.msra.mxu0 0.0
        %1216 = vmatprep.subr.mxu0 0.0
        %1217 = vmatpush1.msra.mxu0 0.0
        %1218 = vmatprep.subr.mxu0 0.0
        %1219 = vmatpush1.msra.mxu0 0.0
        %1220 = vmatprep.subr.mxu0 0.0
        %1221 = vmatpush1.msra.mxu0 0.0
        %1222 = vmatprep.subr.mxu0 0.0
        %1223 = vmatpush1.msra.mxu0 0.0
        %1224 = vmatprep.subr.mxu0 0.0
        %1225 = vmatpush1.msra.mxu0 0.0
        %1226 = vmatprep.subr.mxu0 0.0
        %1227 = vmatpush1.msra.mxu0 0.0
        %1228 = vmatprep.subr.mxu0 0.0
        %1229 = vmatpush1.msra.mxu0 0.0
        %1230 = vmatprep.subr.mxu0 0.0
        %1231 = vmatpush1.msra.mxu0 0.0
        %1232 = vmatprep.subr.mxu0 0.0
        %1233 = vmatpush1.msra.mxu0 0.0
        %1234 = vmatprep.subr.mxu0 0.0
        %1235 = vmatpush1.msra.mxu0 0.0
        %1236 = vmatprep.subr.mxu0 0.0
        %1237 = vmatpush1.msra.mxu0 0.0
        %1238 = vmatprep.subr.mxu0 0.0
        %1239 = vmatpush1.msra.mxu0 %v301
        %1240 = vmatprep.subr.mxu0 0.0
        %1241 = vmatpush1.msra.mxu0 %v300
        %1242 = vmatprep.subr.mxu0 0.0
        %1243 = vmatpush1.msra.mxu0 %v299
        %1244 = vmatprep.subr.mxu0 0.0
        %1245 = vmatpush1.msra.mxu0 %v298
        %1246 = vmatprep.subr.mxu0 0.0
        %1247 = vmatpush2.msra.mxu0 0.0
        %1248 = vmatprep.subr.mxu0 0.0
        %1249 = vmatpush2.msra.mxu0 0.0
        %1250 = vmatprep.subr.mxu0 0.0
        %1251 = vmatpush2.msra.mxu0 0.0
        %1252 = vmatprep.subr.mxu0 0.0
        %1253 = vmatpush2.msra.mxu0 0.0
        %1254 = vmatprep.subr.mxu0 0.0
        %1255 = vmatpush2.msra.mxu0 0.0
        %1256 = vmatprep.subr.mxu0 0.0
        %1257 = vmatpush2.msra.mxu0 0.0
        %1258 = vmatprep.subr.mxu0 0.0
        %1259 = vmatpush2.msra.mxu0 0.0
        %1260 = vmatprep.subr.mxu0 0.0
        %1261 = vmatpush2.msra.mxu0 0.0
        %1262 = vmatprep.subr.mxu0 0.0
        %1263 = vmatpush2.msra.mxu0 0.0
        %1264 = vmatprep.subr.mxu0 0.0
        %1265 = vmatpush2.msra.mxu0 0.0
        %1266 = vmatprep.subr.mxu0 0.0
        %1267 = vmatpush2.msra.mxu0 0.0
        %1268 = vmatprep.subr.mxu0 0.0
        %1269 = vmatpush2.msra.mxu0 0.0
        %1270 = vmatprep.subr.mxu0 0.0
        %1271 = vmatpush2.msra.mxu0 0.0
        %1272 = vmatprep.subr.mxu0 0.0
        %1273 = vmatpush2.msra.mxu0 0.0
        %1274 = vmatprep.subr.mxu0 0.0
        %1275 = vmatpush2.msra.mxu0 0.0
        %1276 = vmatprep.subr.mxu0 0.0
        %1277 = vmatpush2.msra.mxu0 0.0
        %1278 = vmatprep.mubr.f32.mxu0 0.0
        %1279 = vmatmul.mubr.f32.gmra.mxu0 %v1212
        %v1280 = vpop.f32.mrf.mxu0
        %v1281 = vadd.f32 %v1210, %v1280
        %v1282 = vpop.f32.mrf.mxu0
        %1283 = vdwg.mxu0
        %v1284 = vmul.f32 %v1281, 0.5
        %v1285 = vmul.f32 %v1281, 0.044715
        %v1286 = vmul.f32 %v1285, %v1281
        %v1287 = vmul.f32 %v1286, %v1281
        %v1288 = vadd.f32 %v1281, %v1287
        %v1289 = vmul.f32 %v1288, 0.7978846
        %v1290 = vtanh.pop %v1289
        %v1291 = vadd.f32 %v1290, 1.0
        %v1292 = vmul.f32 %v1284, %v1291
        %v1293 = vlaneseq
        %v1294 = vshrl.u32 %v1293, 7
        %v1295 = vsub.s32 7, %v1294
        %v1296 = vrot.slane %v318, %v1295
        %1297 = vmatprep.subr.mxu0 0.0
        %1298 = vmatpush1.msra.mxu0 %v317
        %1299 = vmatprep.subr.mxu0 0.0
        %1300 = vmatpush1.msra.mxu0 %v316
        %1301 = vmatprep.subr.mxu0 0.0
        %1302 = vmatpush1.msra.mxu0 %v315
        %1303 = vmatprep.subr.mxu0 0.0
        %1304 = vmatpush1.msra.mxu0 %v314
        %1305 = vmatprep.subr.mxu0 0.0
        %1306 = vmatpush1.msra.mxu0 %v313
        %1307 = vmatprep.subr.mxu0 0.0
        %1308 = vmatpush1.msra.mxu0 %v312
        %1309 = vmatprep.subr.mxu0 0.0
        %1310 = vmatpush1.msra.mxu0 %v311
        %1311 = vmatprep.subr.mxu0 0.0
        %1312 = vmatpush1.msra.mxu0 %v310
        %1313 = vmatprep.subr.mxu0 0.0
        %1314 = vmatpush1.msra.mxu0 %v309
        %1315 = vmatprep.subr.mxu0 0.0
        %1316 = vmatpush1.msra.mxu0 %v308
        %1317 = vmatprep.subr.mxu0 0.0
        %1318 = vmatpush1.msra.mxu0 %v307
        %1319 = vmatprep.subr.mxu0 0.0
        %1320 = vmatpush1.msra.mxu0 %v306
        %1321 = vmatprep.subr.mxu0 0.0
        %1322 = vmatpush1.msra.mxu0 %v305
        %1323 = vmatprep.subr.mxu0 0.0
        %1324 = vmatpush1.msra.mxu0 %v304
        %1325 = vmatprep.subr.mxu0 0.0
        %1326 = vmatpush1.msra.mxu0 %v303
        %1327 = vmatprep.subr.mxu0 0.0
        %1328 = vmatpush1.msra.mxu0 %v302
        %1329 = vmatprep.subr.mxu0 0.0
        %1330 = vmatpush2.msra.mxu0 0.0
        %1331 = vmatprep.subr.mxu0 0.0
        %1332 = vmatpush2.msra.mxu0 0.0
        %1333 = vmatprep.subr.mxu0 0.0
        %1334 = vmatpush2.msra.mxu0 0.0
        %1335 = vmatprep.subr.mxu0 0.0
        %1336 = vmatpush2.msra.mxu0 0.0
        %1337 = vmatprep.subr.mxu0 0.0
        %1338 = vmatpush2.msra.mxu0 0.0
        %1339 = vmatprep.subr.mxu0 0.0
        %1340 = vmatpush2.msra.mxu0 0.0
        %1341 = vmatprep.subr.mxu0 0.0
        %1342 = vmatpush2.msra.mxu0 0.0
        %1343 = vmatprep.subr.mxu0 0.0
        %1344 = vmatpush2.msra.mxu0 0.0
        %1345 = vmatprep.subr.mxu0 0.0
        %1346 = vmatpush2.msra.mxu0 0.0
        %1347 = vmatprep.subr.mxu0 0.0
        %1348 = vmatpush2.msra.mxu0 0.0
        %1349 = vmatprep.subr.mxu0 0.0
        %1350 = vmatpush2.msra.mxu0 0.0
        %1351 = vmatprep.subr.mxu0 0.0
        %1352 = vmatpush2.msra.mxu0 0.0
        %1353 = vmatprep.subr.mxu0 0.0
        %1354 = vmatpush2.msra.mxu0 0.0
        %1355 = vmatprep.subr.mxu0 0.0
        %1356 = vmatpush2.msra.mxu0 0.0
        %1357 = vmatprep.subr.mxu0 0.0
        %1358 = vmatpush2.msra.mxu0 0.0
        %1359 = vmatprep.subr.mxu0 0.0
        %1360 = vmatpush2.msra.mxu0 0.0
        %1361 = vmatprep.mubr.f32.mxu0 0.0
        %1362 = vmatmul.mubr.f32.gmra.mxu0 %v1292
        %v1363 = vpop.f32.mrf.mxu0
        %v1364 = vadd.f32 %v1296, %v1363
        %v1365 = vpop.f32.mrf.mxu0
        %1366 = vdwg.mxu0
        %v1367 = vadd.f32 %v1364, %v1206
        %v1368 = vsel %vm320, %v1367, 0.0
        %1369 = vadd.xlane.f32.xlu0 %v1368
        %v1370 = vpop.xlane.xlu0 %1369
        %v1371 = vmul.f32 %v1370, %v1186
        %v1372 = vsub.f32 %v1367, %v1371
        %v1373 = vmul.f32 %v1372, %v1372
        %v1374 = vsel %vm320, %v1373, 0.0
        %1375 = vadd.xlane.f32.xlu0 %v1374
        %v1376 = vpop.xlane.xlu0 %1375
        %v1377 = vmul.f32 %v1376, %v1186
        %v1378 = vadd.f32 %v1377, 1e-12
        %v1379 = vrsqrt.pop %v1378
        %v1380 = vmul.f32 %v1372, %v1379
        %v1381 = vlaneseq
        %v1382 = vshrl.u32 %v1381, 7
        %v1383 = vsub.s32 0, %v1382
        %v1384 = vrot.slane %v319, %v1383
        %v1385 = vmul.f32 %v1380, %v1384
        %v1386 = vlaneseq
        %v1387 = vshrl.u32 %v1386, 7
        %v1388 = vsub.s32 1, %v1387
        %v1389 = vrot.slane %v319, %v1388
        %v1390 = vadd.f32 %v1385, %v1389
        %s1391 = scalar_lea.vmem %s2, 32
        %v1392 = vld [vmem:[%s1391] sm:$0xff]
        %v1393 = vld [vmem:[%s1391 + $0x8] sm:$0xff]
        %v1394 = vld [vmem:[%s1391 + $0x10] sm:$0xff]
        %v1395 = vld [vmem:[%s1391 + $0x18] sm:$0xff]
        %s1396 = scalar_lea.vmem %s3, 32
        %v1397 = vld [vmem:[%s1396] sm:$0xff]
        %v1398 = vld [vmem:[%s1396 + $0x8] sm:$0xff]
        %v1399 = vld [vmem:[%s1396 + $0x10] sm:$0xff]
        %v1400 = vld [vmem:[%s1396 + $0x18] sm:$0xff]
        %s1401 = scalar_lea.vmem %s4, 32
        %v1402 = vld [vmem:[%s1401] sm:$0xff]
        %v1403 = vld [vmem:[%s1401 + $0x8] sm:$0xff]
        %v1404 = vld [vmem:[%s1401 + $0x10] sm:$0xff]
        %v1405 = vld [vmem:[%s1401 + $0x18] sm:$0xff]
        %s1406 = scalar_lea.vmem %s5, 128
        %v1407 = vld [vmem:[%s1406] sm:$0xff]
        %v1408 = vld [vmem:[%s1406 + $0x8] sm:$0xff]
        %v1409 = vld [vmem:[%s1406 + $0x10] sm:$0xff]
        %v1410 = vld [vmem:[%s1406 + $0x18] sm:$0xff]
        %v1411 = vld [vmem:[%s1406 + $0x20] sm:$0xff]
        %v1412 = vld [vmem:[%s1406 + $0x28] sm:$0xff]
        %v1413 = vld [vmem:[%s1406 + $0x30] sm:$0xff]
        %v1414 = vld [vmem:[%s1406 + $0x38] sm:$0xff]
        %v1415 = vld [vmem:[%s1406 + $0x40] sm:$0xff]
        %v1416 = vld [vmem:[%s1406 + $0x48] sm:$0xff]
        %v1417 = vld [vmem:[%s1406 + $0x50] sm:$0xff]
        %v1418 = vld [vmem:[%s1406 + $0x58] sm:$0xff]
        %v1419 = vld [vmem:[%s1406 + $0x60] sm:$0xff]
        %v1420 = vld [vmem:[%s1406 + $0x68] sm:$0xff]
        %v1421 = vld [vmem:[%s1406 + $0x70] sm:$0xff]
        %v1422 = vld [vmem:[%s1406 + $0x78] sm:$0xff]
        %s1423 = scalar_lea.vmem %s6, 16
        %v1424 = vld [vmem:[%s1423] sm:$0xff]
        %v1425 = vld [vmem:[%s1423 + $0x8] sm:$0x3]
        %v1427 = vsel %vm320, %v1390, 0
        %1429 = vmatprep.subr.mxu0 0.0
        %1430 = vmatpush1.msra.mxu0 0.0
        %1431 = vmatprep.subr.mxu0 0.0
        %1432 = vmatpush1.msra.mxu0 0.0
        %1433 = vmatprep.subr.mxu0 0.0
        %1434 = vmatpush1.msra.mxu0 0.0
        %1435 = vmatprep.subr.mxu0 0.0
        %1436 = vmatpush1.msra.mxu0 0.0
        %1437 = vmatprep.subr.mxu0 0.0
        %1438 = vmatpush1.msra.mxu0 0.0
        %1439 = vmatprep.subr.mxu0 0.0
        %1440 = vmatpush1.msra.mxu0 0.0
        %1441 = vmatprep.subr.mxu0 0.0
        %1442 = vmatpush1.msra.mxu0 0.0
        %1443 = vmatprep.subr.mxu0 0.0
        %1444 = vmatpush1.msra.mxu0 0.0
        %1445 = vmatprep.subr.mxu0 0.0
        %1446 = vmatpush1.msra.mxu0 0.0
        %1447 = vmatprep.subr.mxu0 0.0
        %1448 = vmatpush1.msra.mxu0 0.0
        %1449 = vmatprep.subr.mxu0 0.0
        %1450 = vmatpush1.msra.mxu0 0.0
        %1451 = vmatprep.subr.mxu0 0.0
        %1452 = vmatpush1.msra.mxu0 0.0
        %1453 = vmatprep.subr.mxu0 0.0
        %1454 = vmatpush1.msra.mxu0 %v1395
        %1455 = vmatprep.subr.mxu0 0.0
        %1456 = vmatpush1.msra.mxu0 %v1394
        %1457 = vmatprep.subr.mxu0 0.0
        %1458 = vmatpush1.msra.mxu0 %v1393
        %1459 = vmatprep.subr.mxu0 0.0
        %1460 = vmatpush1.msra.mxu0 %v1392
        %1461 = vmatprep.subr.mxu0 0.0
        %1462 = vmatpush2.msra.mxu0 0.0
        %1463 = vmatprep.subr.mxu0 0.0
        %1464 = vmatpush2.msra.mxu0 0.0
        %1465 = vmatprep.subr.mxu0 0.0
        %1466 = vmatpush2.msra.mxu0 0.0
        %1467 = vmatprep.subr.mxu0 0.0
        %1468 = vmatpush2.msra.mxu0 0.0
        %1469 = vmatprep.subr.mxu0 0.0
        %1470 = vmatpush2.msra.mxu0 0.0
        %1471 = vmatprep.subr.mxu0 0.0
        %1472 = vmatpush2.msra.mxu0 0.0
        %1473 = vmatprep.subr.mxu0 0.0
        %1474 = vmatpush2.msra.mxu0 0.0
        %1475 = vmatprep.subr.mxu0 0.0
        %1476 = vmatpush2.msra.mxu0 0.0
        %1477 = vmatprep.subr.mxu0 0.0
        %1478 = vmatpush2.msra.mxu0 0.0
        %1479 = vmatprep.subr.mxu0 0.0
        %1480 = vmatpush2.msra.mxu0 0.0
        %1481 = vmatprep.subr.mxu0 0.0
        %1482 = vmatpush2.msra.mxu0 0.0
        %1483 = vmatprep.subr.mxu0 0.0
        %1484 = vmatpush2.msra.mxu0 0.0
        %1485 = vmatprep.subr.mxu0 0.0
        %1486 = vmatpush2.msra.mxu0 0.0
        %1487 = vmatprep.subr.mxu0 0.0
        %1488 = vmatpush2.msra.mxu0 0.0
        %1489 = vmatprep.subr.mxu0 0.0
        %1490 = vmatpush2.msra.mxu0 0.0
        %1491 = vmatprep.subr.mxu0 0.0
        %1492 = vmatpush2.msra.mxu0 0.0
        %1493 = vmatprep.mubr.f32.mxu0 0.0
        %1494 = vmatmul.mubr.f32.gmra.mxu0 %v1427
        %v1495 = vpop.f32.mrf.mxu0
        %v1496 = vadd.f32 0.0, %v1495
        %v1497 = vpop.f32.mrf.mxu0
        %1498 = vdwg.mxu0
        %v1499 = vlaneseq
        %v1500 = vshrl.u32 %v1499, 7
        %v1501 = vsub.s32 0, %v1500
        %v1502 = vrot.slane %v1424, %v1501
        %v1503 = vadd.f32 %v1496, %v1502
        %v1504 = vlaneseq
        %v1505 = vshrl.u32 %v1504, 7
        %v1506 = vsub.s32 1, %v1505
        %v1507 = vrot.slane %v1424, %v1506
        %1509 = vrot.lane.b32.xlu0 %v1507, 32
        %v1510 = vpop.permute.xlu0 %1509
        %v1512 = vadd.f32 %v1496, %v1510
        %v1513 = vlaneseq
        %v1514 = vshrl.u32 %v1513, 7
        %v1515 = vsub.s32 2, %v1514
        %v1516 = vrot.slane %v1424, %v1515
        %1518 = vrot.lane.b32.xlu0 %v1516, 64
        %v1519 = vpop.permute.xlu0 %1518
        %v1521 = vadd.f32 %v1496, %v1519
        %1523 = vrot.lane.b32.xlu0 %v1512, 96
        %v1524 = vpop.permute.xlu0 %1523
        %v1526 = vsel %vm426, %v1503, 0
        %v1528 = vsel %vm426, %v1524, 0
        %1530 = vmatprep.subr.mxu0 0.0
        %1531 = vmatpush1.xpose.msra.mxu0 0.0
        %1532 = vmatprep.subr.mxu0 0.0
        %1533 = vmatpush1.xpose.msra.mxu0 0.0
        %1534 = vmatprep.subr.mxu0 0.0
        %1535 = vmatpush1.xpose.msra.mxu0 0.0
        %1536 = vmatprep.subr.mxu0 0.0
        %1537 = vmatpush1.xpose.msra.mxu0 0.0
        %1538 = vmatprep.subr.mxu0 0.0
        %1539 = vmatpush1.xpose.msra.mxu0 0.0
        %1540 = vmatprep.subr.mxu0 0.0
        %1541 = vmatpush1.xpose.msra.mxu0 0.0
        %1542 = vmatprep.subr.mxu0 0.0
        %1543 = vmatpush1.xpose.msra.mxu0 0.0
        %1544 = vmatprep.subr.mxu0 0.0
        %1545 = vmatpush1.xpose.msra.mxu0 0.0
        %1546 = vmatprep.subr.mxu0 0.0
        %1547 = vmatpush1.xpose.msra.mxu0 0.0
        %1548 = vmatprep.subr.mxu0 0.0
        %1549 = vmatpush1.xpose.msra.mxu0 0.0
        %1550 = vmatprep.subr.mxu0 0.0
        %1551 = vmatpush1.xpose.msra.mxu0 0.0
        %1552 = vmatprep.subr.mxu0 0.0
        %1553 = vmatpush1.xpose.msra.mxu0 0.0
        %1554 = vmatprep.subr.mxu0 0.0
        %1555 = vmatpush1.xpose.msra.mxu0 0.0
        %1556 = vmatprep.subr.mxu0 0.0
        %1557 = vmatpush1.xpose.msra.mxu0 0.0
        %1558 = vmatprep.subr.mxu0 0.0
        %1559 = vmatpush1.xpose.msra.mxu0 0.0
        %1560 = vmatprep.subr.mxu0 0.0
        %1561 = vmatpush1.xpose.msra.mxu0 %v1528
        %1562 = vmatprep.subr.mxu0 0.0
        %1563 = vmatpush2.xpose.msra.mxu0 0.0
        %1564 = vmatprep.subr.mxu0 0.0
        %1565 = vmatpush2.xpose.msra.mxu0 0.0
        %1566 = vmatprep.subr.mxu0 0.0
        %1567 = vmatpush2.xpose.msra.mxu0 0.0
        %1568 = vmatprep.subr.mxu0 0.0
        %1569 = vmatpush2.xpose.msra.mxu0 0.0
        %1570 = vmatprep.subr.mxu0 0.0
        %1571 = vmatpush2.xpose.msra.mxu0 0.0
        %1572 = vmatprep.subr.mxu0 0.0
        %1573 = vmatpush2.xpose.msra.mxu0 0.0
        %1574 = vmatprep.subr.mxu0 0.0
        %1575 = vmatpush2.xpose.msra.mxu0 0.0
        %1576 = vmatprep.subr.mxu0 0.0
        %1577 = vmatpush2.xpose.msra.mxu0 0.0
        %1578 = vmatprep.subr.mxu0 0.0
        %1579 = vmatpush2.xpose.msra.mxu0 0.0
        %1580 = vmatprep.subr.mxu0 0.0
        %1581 = vmatpush2.xpose.msra.mxu0 0.0
        %1582 = vmatprep.subr.mxu0 0.0
        %1583 = vmatpush2.xpose.msra.mxu0 0.0
        %1584 = vmatprep.subr.mxu0 0.0
        %1585 = vmatpush2.xpose.msra.mxu0 0.0
        %1586 = vmatprep.subr.mxu0 0.0
        %1587 = vmatpush2.xpose.msra.mxu0 0.0
        %1588 = vmatprep.subr.mxu0 0.0
        %1589 = vmatpush2.xpose.msra.mxu0 0.0
        %1590 = vmatprep.subr.mxu0 0.0
        %1591 = vmatpush2.xpose.msra.mxu0 0.0
        %1592 = vmatprep.subr.mxu0 0.0
        %1593 = vmatpush2.xpose.msra.mxu0 0.0
        %1594 = vmatprep.mubr.f32.mxu0 0.0
        %1595 = vmatmul.mubr.f32.gmra.mxu0 %v1526
        %v1596 = vpop.f32.mrf.mxu0
        %v1597 = vadd.f32 %v421, %v1596
        %v1598 = vpop.f32.mrf.mxu0
        %1599 = vdwg.mxu0
        %v1600 = vsel %vm426, %v1597, -inf
        %1601 = vmax.xlane.f32.xlu0 %v1600
        %v1602 = vpop.xlane.xlu0 %1601
        %v1603 = vsub.f32 %v1597, %v1602
        %v1604 = vmul.f32 %v1603, 1.442695
        %v1605 = vpow.pop %v1604
        %v1606 = vsel %vm426, %v1605, 0.0
        %1607 = vadd.xlane.f32.xlu0 %v1606
        %v1608 = vpop.xlane.xlu0 %1607
        %v1609 = vrcp.pop %v1608
        %v1610 = vmul.f32 %v1605, %v1609
        %1612 = vrot.lane.b32.xlu0 %v1521, 64
        %v1613 = vpop.permute.xlu0 %1612
        %v1616 = vsel %vm426, %v1610, 0
        %1618 = vmatprep.subr.mxu0 0.0
        %1619 = vmatpush1.msra.mxu0 0.0
        %1620 = vmatprep.subr.mxu0 0.0
        %1621 = vmatpush1.msra.mxu0 0.0
        %1622 = vmatprep.subr.mxu0 0.0
        %1623 = vmatpush1.msra.mxu0 0.0
        %1624 = vmatprep.subr.mxu0 0.0
        %1625 = vmatpush1.msra.mxu0 0.0
        %1626 = vmatprep.subr.mxu0 0.0
        %1627 = vmatpush1.msra.mxu0 0.0
        %1628 = vmatprep.subr.mxu0 0.0
        %1629 = vmatpush1.msra.mxu0 0.0
        %1630 = vmatprep.subr.mxu0 0.0
        %1631 = vmatpush1.msra.mxu0 0.0
        %1632 = vmatprep.subr.mxu0 0.0
        %1633 = vmatpush1.msra.mxu0 0.0
        %1634 = vmatprep.subr.mxu0 0.0
        %1635 = vmatpush1.msra.mxu0 0.0
        %1636 = vmatprep.subr.mxu0 0.0
        %1637 = vmatpush1.msra.mxu0 0.0
        %1638 = vmatprep.subr.mxu0 0.0
        %1639 = vmatpush1.msra.mxu0 0.0
        %1640 = vmatprep.subr.mxu0 0.0
        %1641 = vmatpush1.msra.mxu0 0.0
        %1642 = vmatprep.subr.mxu0 0.0
        %1643 = vmatpush1.msra.mxu0 0.0
        %1644 = vmatprep.subr.mxu0 0.0
        %1645 = vmatpush1.msra.mxu0 0.0
        %1646 = vmatprep.subr.mxu0 0.0
        %1647 = vmatpush1.msra.mxu0 0.0
        %1648 = vmatprep.subr.mxu0 0.0
        %1649 = vmatpush1.msra.mxu0 %v1613
        %1650 = vmatprep.subr.mxu0 0.0
        %1651 = vmatpush2.msra.mxu0 0.0
        %1652 = vmatprep.subr.mxu0 0.0
        %1653 = vmatpush2.msra.mxu0 0.0
        %1654 = vmatprep.subr.mxu0 0.0
        %1655 = vmatpush2.msra.mxu0 0.0
        %1656 = vmatprep.subr.mxu0 0.0
        %1657 = vmatpush2.msra.mxu0 0.0
        %1658 = vmatprep.subr.mxu0 0.0
        %1659 = vmatpush2.msra.mxu0 0.0
        %1660 = vmatprep.subr.mxu0 0.0
        %1661 = vmatpush2.msra.mxu0 0.0
        %1662 = vmatprep.subr.mxu0 0.0
        %1663 = vmatpush2.msra.mxu0 0.0
        %1664 = vmatprep.subr.mxu0 0.0
        %1665 = vmatpush2.msra.mxu0 0.0
        %1666 = vmatprep.subr.mxu0 0.0
        %1667 = vmatpush2.msra.mxu0 0.0
        %1668 = vmatprep.subr.mxu0 0.0
        %1669 = vmatpush2.msra.mxu0 0.0
        %1670 = vmatprep.subr.mxu0 0.0
        %1671 = vmatpush2.msra.mxu0 0.0
        %1672 = vmatprep.subr.mxu0 0.0
        %1673 = vmatpush2.msra.mxu0 0.0
        %1674 = vmatprep.subr.mxu0 0.0
        %1675 = vmatpush2.msra.mxu0 0.0
        %1676 = vmatprep.subr.mxu0 0.0
        %1677 = vmatpush2.msra.mxu0 0.0
        %1678 = vmatprep.subr.mxu0 0.0
        %1679 = vmatpush2.msra.mxu0 0.0
        %1680 = vmatprep.subr.mxu0 0.0
        %1681 = vmatpush2.msra.mxu0 0.0
        %1682 = vmatprep.mubr.f32.mxu0 0.0
        %1683 = vmatmul.mubr.f32.gmra.mxu0 %v1616
        %v1684 = vpop.f32.mrf.mxu0
        %v1685 = vadd.f32 0.0, %v1684
        %v1686 = vpop.f32.mrf.mxu0
        %1687 = vdwg.mxu0
        %1688 = vst.msk [vmem:[#allocation2] sm:$0xff] %vm426, %v1685
        %1689 = vrot.lane.b32.xlu0 %v1503, 120
        %v1690 = vpop.permute.xlu0 %1689
        %1691 = vrot.lane.b32.xlu0 %v1512, 88
        %v1692 = vpop.permute.xlu0 %1691
        %v1693 = vsel %vm426, %v1690, 0
        %v1695 = vsel %vm426, %v1692, 0
        %1697 = vmatprep.subr.mxu0 0.0
        %1698 = vmatpush1.xpose.msra.mxu0 0.0
        %1699 = vmatprep.subr.mxu0 0.0
        %1700 = vmatpush1.xpose.msra.mxu0 0.0
        %1701 = vmatprep.subr.mxu0 0.0
        %1702 = vmatpush1.xpose.msra.mxu0 0.0
        %1703 = vmatprep.subr.mxu0 0.0
        %1704 = vmatpush1.xpose.msra.mxu0 0.0
        %1705 = vmatprep.subr.mxu0 0.0
        %1706 = vmatpush1.xpose.msra.mxu0 0.0
        %1707 = vmatprep.subr.mxu0 0.0
        %1708 = vmatpush1.xpose.msra.mxu0 0.0
        %1709 = vmatprep.subr.mxu0 0.0
        %1710 = vmatpush1.xpose.msra.mxu0 0.0
        %1711 = vmatprep.subr.mxu0 0.0
        %1712 = vmatpush1.xpose.msra.mxu0 0.0
        %1713 = vmatprep.subr.mxu0 0.0
        %1714 = vmatpush1.xpose.msra.mxu0 0.0
        %1715 = vmatprep.subr.mxu0 0.0
        %1716 = vmatpush1.xpose.msra.mxu0 0.0
        %1717 = vmatprep.subr.mxu0 0.0
        %1718 = vmatpush1.xpose.msra.mxu0 0.0
        %1719 = vmatprep.subr.mxu0 0.0
        %1720 = vmatpush1.xpose.msra.mxu0 0.0
        %1721 = vmatprep.subr.mxu0 0.0
        %1722 = vmatpush1.xpose.msra.mxu0 0.0
        %1723 = vmatprep.subr.mxu0 0.0
        %1724 = vmatpush1.xpose.msra.mxu0 0.0
        %1725 = vmatprep.subr.mxu0 0.0
        %1726 = vmatpush1.xpose.msra.mxu0 0.0
        %1727 = vmatprep.subr.mxu0 0.0
        %1728 = vmatpush1.xpose.msra.mxu0 %v1695
        %1729 = vmatprep.subr.mxu0 0.0
        %1730 = vmatpush2.xpose.msra.mxu0 0.0
        %1731 = vmatprep.subr.mxu0 0.0
        %1732 = vmatpush2.xpose.msra.mxu0 0.0
        %1733 = vmatprep.subr.mxu0 0.0
        %1734 = vmatpush2.xpose.msra.mxu0 0.0
        %1735 = vmatprep.subr.mxu0 0.0
        %1736 = vmatpush2.xpose.msra.mxu0 0.0
        %1737 = vmatprep.subr.mxu0 0.0
        %1738 = vmatpush2.xpose.msra.mxu0 0.0
        %1739 = vmatprep.subr.mxu0 0.0
        %1740 = vmatpush2.xpose.msra.mxu0 0.0
        %1741 = vmatprep.subr.mxu0 0.0
        %1742 = vmatpush2.xpose.msra.mxu0 0.0
        %1743 = vmatprep.subr.mxu0 0.0
        %1744 = vmatpush2.xpose.msra.mxu0 0.0
        %1745 = vmatprep.subr.mxu0 0.0
        %1746 = vmatpush2.xpose.msra.mxu0 0.0
        %1747 = vmatprep.subr.mxu0 0.0
        %1748 = vmatpush2.xpose.msra.mxu0 0.0
        %1749 = vmatprep.subr.mxu0 0.0
        %1750 = vmatpush2.xpose.msra.mxu0 0.0
        %1751 = vmatprep.subr.mxu0 0.0
        %1752 = vmatpush2.xpose.msra.mxu0 0.0
        %1753 = vmatprep.subr.mxu0 0.0
        %1754 = vmatpush2.xpose.msra.mxu0 0.0
        %1755 = vmatprep.subr.mxu0 0.0
        %1756 = vmatpush2.xpose.msra.mxu0 0.0
        %1757 = vmatprep.subr.mxu0 0.0
        %1758 = vmatpush2.xpose.msra.mxu0 0.0
        %1759 = vmatprep.subr.mxu0 0.0
        %1760 = vmatpush2.xpose.msra.mxu0 0.0
        %1761 = vmatprep.mubr.f32.mxu0 0.0
        %1762 = vmatmul.mubr.f32.gmra.mxu0 %v1693
        %v1763 = vpop.f32.mrf.mxu0
        %v1764 = vadd.f32 %v421, %v1763
        %v1765 = vpop.f32.mrf.mxu0
        %1766 = vdwg.mxu0
        %v1767 = vsel %vm426, %v1764, -inf
        %1768 = vmax.xlane.f32.xlu0 %v1767
        %v1769 = vpop.xlane.xlu0 %1768
        %v1770 = vsub.f32 %v1764, %v1769
        %v1771 = vmul.f32 %v1770, 1.442695
        %v1772 = vpow.pop %v1771
        %v1773 = vsel %vm426, %v1772, 0.0
        %1774 = vadd.xlane.f32.xlu0 %v1773
        %v1775 = vpop.xlane.xlu0 %1774
        %v1776 = vrcp.pop %v1775
        %v1777 = vmul.f32 %v1772, %v1776
        %1778 = vrot.lane.b32.xlu0 %v1521, 56
        %v1779 = vpop.permute.xlu0 %1778
        %v1782 = vsel %vm426, %v1777, 0
        %1784 = vmatprep.subr.mxu0 0.0
        %1785 = vmatpush1.msra.mxu0 0.0
        %1786 = vmatprep.subr.mxu0 0.0
        %1787 = vmatpush1.msra.mxu0 0.0
        %1788 = vmatprep.subr.mxu0 0.0
        %1789 = vmatpush1.msra.mxu0 0.0
        %1790 = vmatprep.subr.mxu0 0.0
        %1791 = vmatpush1.msra.mxu0 0.0
        %1792 = vmatprep.subr.mxu0 0.0
        %1793 = vmatpush1.msra.mxu0 0.0
        %1794 = vmatprep.subr.mxu0 0.0
        %1795 = vmatpush1.msra.mxu0 0.0
        %1796 = vmatprep.subr.mxu0 0.0
        %1797 = vmatpush1.msra.mxu0 0.0
        %1798 = vmatprep.subr.mxu0 0.0
        %1799 = vmatpush1.msra.mxu0 0.0
        %1800 = vmatprep.subr.mxu0 0.0
        %1801 = vmatpush1.msra.mxu0 0.0
        %1802 = vmatprep.subr.mxu0 0.0
        %1803 = vmatpush1.msra.mxu0 0.0
        %1804 = vmatprep.subr.mxu0 0.0
        %1805 = vmatpush1.msra.mxu0 0.0
        %1806 = vmatprep.subr.mxu0 0.0
        %1807 = vmatpush1.msra.mxu0 0.0
        %1808 = vmatprep.subr.mxu0 0.0
        %1809 = vmatpush1.msra.mxu0 0.0
        %1810 = vmatprep.subr.mxu0 0.0
        %1811 = vmatpush1.msra.mxu0 0.0
        %1812 = vmatprep.subr.mxu0 0.0
        %1813 = vmatpush1.msra.mxu0 0.0
        %1814 = vmatprep.subr.mxu0 0.0
        %1815 = vmatpush1.msra.mxu0 %v1779
        %1816 = vmatprep.subr.mxu0 0.0
        %1817 = vmatpush2.msra.mxu0 0.0
        %1818 = vmatprep.subr.mxu0 0.0
        %1819 = vmatpush2.msra.mxu0 0.0
        %1820 = vmatprep.subr.mxu0 0.0
        %1821 = vmatpush2.msra.mxu0 0.0
        %1822 = vmatprep.subr.mxu0 0.0
        %1823 = vmatpush2.msra.mxu0 0.0
        %1824 = vmatprep.subr.mxu0 0.0
        %1825 = vmatpush2.msra.mxu0 0.0
        %1826 = vmatprep.subr.mxu0 0.0
        %1827 = vmatpush2.msra.mxu0 0.0
        %1828 = vmatprep.subr.mxu0 0.0
        %1829 = vmatpush2.msra.mxu0 0.0
        %1830 = vmatprep.subr.mxu0 0.0
        %1831 = vmatpush2.msra.mxu0 0.0
        %1832 = vmatprep.subr.mxu0 0.0
        %1833 = vmatpush2.msra.mxu0 0.0
        %1834 = vmatprep.subr.mxu0 0.0
        %1835 = vmatpush2.msra.mxu0 0.0
        %1836 = vmatprep.subr.mxu0 0.0
        %1837 = vmatpush2.msra.mxu0 0.0
        %1838 = vmatprep.subr.mxu0 0.0
        %1839 = vmatpush2.msra.mxu0 0.0
        %1840 = vmatprep.subr.mxu0 0.0
        %1841 = vmatpush2.msra.mxu0 0.0
        %1842 = vmatprep.subr.mxu0 0.0
        %1843 = vmatpush2.msra.mxu0 0.0
        %1844 = vmatprep.subr.mxu0 0.0
        %1845 = vmatpush2.msra.mxu0 0.0
        %1846 = vmatprep.subr.mxu0 0.0
        %1847 = vmatpush2.msra.mxu0 0.0
        %1848 = vmatprep.mubr.f32.mxu0 0.0
        %1849 = vmatmul.mubr.f32.gmra.mxu0 %v1782
        %v1850 = vpop.f32.mrf.mxu0
        %v1851 = vadd.f32 0.0, %v1850
        %v1852 = vpop.f32.mrf.mxu0
        %1853 = vdwg.mxu0
        %1855 = vrot.lane.b32.xlu0 %v1851, 8
        %v1856 = vpop.permute.xlu0 %1855
        %1858 = vst.msk [vmem:[#allocation2] sm:$0xff] %vm760, %v1856
        %1859 = vrot.lane.b32.xlu0 %v1503, 112
        %v1860 = vpop.permute.xlu0 %1859
        %1861 = vrot.lane.b32.xlu0 %v1512, 80
        %v1862 = vpop.permute.xlu0 %1861
        %v1863 = vsel %vm426, %v1860, 0
        %v1865 = vsel %vm426, %v1862, 0
        %1867 = vmatprep.subr.mxu0 0.0
        %1868 = vmatpush1.xpose.msra.mxu0 0.0
        %1869 = vmatprep.subr.mxu0 0.0
        %1870 = vmatpush1.xpose.msra.mxu0 0.0
        %1871 = vmatprep.subr.mxu0 0.0
        %1872 = vmatpush1.xpose.msra.mxu0 0.0
        %1873 = vmatprep.subr.mxu0 0.0
        %1874 = vmatpush1.xpose.msra.mxu0 0.0
        %1875 = vmatprep.subr.mxu0 0.0
        %1876 = vmatpush1.xpose.msra.mxu0 0.0
        %1877 = vmatprep.subr.mxu0 0.0
        %1878 = vmatpush1.xpose.msra.mxu0 0.0
        %1879 = vmatprep.subr.mxu0 0.0
        %1880 = vmatpush1.xpose.msra.mxu0 0.0
        %1881 = vmatprep.subr.mxu0 0.0
        %1882 = vmatpush1.xpose.msra.mxu0 0.0
        %1883 = vmatprep.subr.mxu0 0.0
        %1884 = vmatpush1.xpose.msra.mxu0 0.0
        %1885 = vmatprep.subr.mxu0 0.0
        %1886 = vmatpush1.xpose.msra.mxu0 0.0
        %1887 = vmatprep.subr.mxu0 0.0
        %1888 = vmatpush1.xpose.msra.mxu0 0.0
        %1889 = vmatprep.subr.mxu0 0.0
        %1890 = vmatpush1.xpose.msra.mxu0 0.0
        %1891 = vmatprep.subr.mxu0 0.0
        %1892 = vmatpush1.xpose.msra.mxu0 0.0
        %1893 = vmatprep.subr.mxu0 0.0
        %1894 = vmatpush1.xpose.msra.mxu0 0.0
        %1895 = vmatprep.subr.mxu0 0.0
        %1896 = vmatpush1.xpose.msra.mxu0 0.0
        %1897 = vmatprep.subr.mxu0 0.0
        %1898 = vmatpush1.xpose.msra.mxu0 %v1865
        %1899 = vmatprep.subr.mxu0 0.0
        %1900 = vmatpush2.xpose.msra.mxu0 0.0
        %1901 = vmatprep.subr.mxu0 0.0
        %1902 = vmatpush2.xpose.msra.mxu0 0.0
        %1903 = vmatprep.subr.mxu0 0.0
        %1904 = vmatpush2.xpose.msra.mxu0 0.0
        %1905 = vmatprep.subr.mxu0 0.0
        %1906 = vmatpush2.xpose.msra.mxu0 0.0
        %1907 = vmatprep.subr.mxu0 0.0
        %1908 = vmatpush2.xpose.msra.mxu0 0.0
        %1909 = vmatprep.subr.mxu0 0.0
        %1910 = vmatpush2.xpose.msra.mxu0 0.0
        %1911 = vmatprep.subr.mxu0 0.0
        %1912 = vmatpush2.xpose.msra.mxu0 0.0
        %1913 = vmatprep.subr.mxu0 0.0
        %1914 = vmatpush2.xpose.msra.mxu0 0.0
        %1915 = vmatprep.subr.mxu0 0.0
        %1916 = vmatpush2.xpose.msra.mxu0 0.0
        %1917 = vmatprep.subr.mxu0 0.0
        %1918 = vmatpush2.xpose.msra.mxu0 0.0
        %1919 = vmatprep.subr.mxu0 0.0
        %1920 = vmatpush2.xpose.msra.mxu0 0.0
        %1921 = vmatprep.subr.mxu0 0.0
        %1922 = vmatpush2.xpose.msra.mxu0 0.0
        %1923 = vmatprep.subr.mxu0 0.0
        %1924 = vmatpush2.xpose.msra.mxu0 0.0
        %1925 = vmatprep.subr.mxu0 0.0
        %1926 = vmatpush2.xpose.msra.mxu0 0.0
        %1927 = vmatprep.subr.mxu0 0.0
        %1928 = vmatpush2.xpose.msra.mxu0 0.0
        %1929 = vmatprep.subr.mxu0 0.0
        %1930 = vmatpush2.xpose.msra.mxu0 0.0
        %1931 = vmatprep.mubr.f32.mxu0 0.0
        %1932 = vmatmul.mubr.f32.gmra.mxu0 %v1863
        %v1933 = vpop.f32.mrf.mxu0
        %v1934 = vadd.f32 %v421, %v1933
        %v1935 = vpop.f32.mrf.mxu0
        %1936 = vdwg.mxu0
        %v1937 = vsel %vm426, %v1934, -inf
        %1938 = vmax.xlane.f32.xlu0 %v1937
        %v1939 = vpop.xlane.xlu0 %1938
        %v1940 = vsub.f32 %v1934, %v1939
        %v1941 = vmul.f32 %v1940, 1.442695
        %v1942 = vpow.pop %v1941
        %v1943 = vsel %vm426, %v1942, 0.0
        %1944 = vadd.xlane.f32.xlu0 %v1943
        %v1945 = vpop.xlane.xlu0 %1944
        %v1946 = vrcp.pop %v1945
        %v1947 = vmul.f32 %v1942, %v1946
        %1948 = vrot.lane.b32.xlu0 %v1521, 48
        %v1949 = vpop.permute.xlu0 %1948
        %v1952 = vsel %vm426, %v1947, 0
        %1954 = vmatprep.subr.mxu0 0.0
        %1955 = vmatpush1.msra.mxu0 0.0
        %1956 = vmatprep.subr.mxu0 0.0
        %1957 = vmatpush1.msra.mxu0 0.0
        %1958 = vmatprep.subr.mxu0 0.0
        %1959 = vmatpush1.msra.mxu0 0.0
        %1960 = vmatprep.subr.mxu0 0.0
        %1961 = vmatpush1.msra.mxu0 0.0
        %1962 = vmatprep.subr.mxu0 0.0
        %1963 = vmatpush1.msra.mxu0 0.0
        %1964 = vmatprep.subr.mxu0 0.0
        %1965 = vmatpush1.msra.mxu0 0.0
        %1966 = vmatprep.subr.mxu0 0.0
        %1967 = vmatpush1.msra.mxu0 0.0
        %1968 = vmatprep.subr.mxu0 0.0
        %1969 = vmatpush1.msra.mxu0 0.0
        %1970 = vmatprep.subr.mxu0 0.0
        %1971 = vmatpush1.msra.mxu0 0.0
        %1972 = vmatprep.subr.mxu0 0.0
        %1973 = vmatpush1.msra.mxu0 0.0
        %1974 = vmatprep.subr.mxu0 0.0
        %1975 = vmatpush1.msra.mxu0 0.0
        %1976 = vmatprep.subr.mxu0 0.0
        %1977 = vmatpush1.msra.mxu0 0.0
        %1978 = vmatprep.subr.mxu0 0.0
        %1979 = vmatpush1.msra.mxu0 0.0
        %1980 = vmatprep.subr.mxu0 0.0
        %1981 = vmatpush1.msra.mxu0 0.0
        %1982 = vmatprep.subr.mxu0 0.0
        %1983 = vmatpush1.msra.mxu0 0.0
        %1984 = vmatprep.subr.mxu0 0.0
        %1985 = vmatpush1.msra.mxu0 %v1949
        %1986 = vmatprep.subr.mxu0 0.0
        %1987 = vmatpush2.msra.mxu0 0.0
        %1988 = vmatprep.subr.mxu0 0.0
        %1989 = vmatpush2.msra.mxu0 0.0
        %1990 = vmatprep.subr.mxu0 0.0
        %1991 = vmatpush2.msra.mxu0 0.0
        %1992 = vmatprep.subr.mxu0 0.0
        %1993 = vmatpush2.msra.mxu0 0.0
        %1994 = vmatprep.subr.mxu0 0.0
        %1995 = vmatpush2.msra.mxu0 0.0
        %1996 = vmatprep.subr.mxu0 0.0
        %1997 = vmatpush2.msra.mxu0 0.0
        %1998 = vmatprep.subr.mxu0 0.0
        %1999 = vmatpush2.msra.mxu0 0.0
        %2000 = vmatprep.subr.mxu0 0.0
        %2001 = vmatpush2.msra.mxu0 0.0
        %2002 = vmatprep.subr.mxu0 0.0
        %2003 = vmatpush2.msra.mxu0 0.0
        %2004 = vmatprep.subr.mxu0 0.0
        %2005 = vmatpush2.msra.mxu0 0.0
        %2006 = vmatprep.subr.mxu0 0.0
        %2007 = vmatpush2.msra.mxu0 0.0
        %2008 = vmatprep.subr.mxu0 0.0
        %2009 = vmatpush2.msra.mxu0 0.0
        %2010 = vmatprep.subr.mxu0 0.0
        %2011 = vmatpush2.msra.mxu0 0.0
        %2012 = vmatprep.subr.mxu0 0.0
        %2013 = vmatpush2.msra.mxu0 0.0
        %2014 = vmatprep.subr.mxu0 0.0
        %2015 = vmatpush2.msra.mxu0 0.0
        %2016 = vmatprep.subr.mxu0 0.0
        %2017 = vmatpush2.msra.mxu0 0.0
        %2018 = vmatprep.mubr.f32.mxu0 0.0
        %2019 = vmatmul.mubr.f32.gmra.mxu0 %v1952
        %v2020 = vpop.f32.mrf.mxu0
        %v2021 = vadd.f32 0.0, %v2020
        %v2022 = vpop.f32.mrf.mxu0
        %2023 = vdwg.mxu0
        %2025 = vrot.lane.b32.xlu0 %v2021, 16
        %v2026 = vpop.permute.xlu0 %2025
        %2028 = vst.msk [vmem:[#allocation2] sm:$0xff] %vm931, %v2026
        %2029 = vrot.lane.b32.xlu0 %v1503, 104
        %v2030 = vpop.permute.xlu0 %2029
        %2031 = vrot.lane.b32.xlu0 %v1512, 72
        %v2032 = vpop.permute.xlu0 %2031
        %v2033 = vsel %vm426, %v2030, 0
        %v2035 = vsel %vm426, %v2032, 0
        %2037 = vmatprep.subr.mxu0 0.0
        %2038 = vmatpush1.xpose.msra.mxu0 0.0
        %2039 = vmatprep.subr.mxu0 0.0
        %2040 = vmatpush1.xpose.msra.mxu0 0.0
        %2041 = vmatprep.subr.mxu0 0.0
        %2042 = vmatpush1.xpose.msra.mxu0 0.0
        %2043 = vmatprep.subr.mxu0 0.0
        %2044 = vmatpush1.xpose.msra.mxu0 0.0
        %2045 = vmatprep.subr.mxu0 0.0
        %2046 = vmatpush1.xpose.msra.mxu0 0.0
        %2047 = vmatprep.subr.mxu0 0.0
        %2048 = vmatpush1.xpose.msra.mxu0 0.0
        %2049 = vmatprep.subr.mxu0 0.0
        %2050 = vmatpush1.xpose.msra.mxu0 0.0
        %2051 = vmatprep.subr.mxu0 0.0
        %2052 = vmatpush1.xpose.msra.mxu0 0.0
        %2053 = vmatprep.subr.mxu0 0.0
        %2054 = vmatpush1.xpose.msra.mxu0 0.0
        %2055 = vmatprep.subr.mxu0 0.0
        %2056 = vmatpush1.xpose.msra.mxu0 0.0
        %2057 = vmatprep.subr.mxu0 0.0
        %2058 = vmatpush1.xpose.msra.mxu0 0.0
        %2059 = vmatprep.subr.mxu0 0.0
        %2060 = vmatpush1.xpose.msra.mxu0 0.0
        %2061 = vmatprep.subr.mxu0 0.0
        %2062 = vmatpush1.xpose.msra.mxu0 0.0
        %2063 = vmatprep.subr.mxu0 0.0
        %2064 = vmatpush1.xpose.msra.mxu0 0.0
        %2065 = vmatprep.subr.mxu0 0.0
        %2066 = vmatpush1.xpose.msra.mxu0 0.0
        %2067 = vmatprep.subr.mxu0 0.0
        %2068 = vmatpush1.xpose.msra.mxu0 %v2035
        %2069 = vmatprep.subr.mxu0 0.0
        %2070 = vmatpush2.xpose.msra.mxu0 0.0
        %2071 = vmatprep.subr.mxu0 0.0
        %2072 = vmatpush2.xpose.msra.mxu0 0.0
        %2073 = vmatprep.subr.mxu0 0.0
        %2074 = vmatpush2.xpose.msra.mxu0 0.0
        %2075 = vmatprep.subr.mxu0 0.0
        %2076 = vmatpush2.xpose.msra.mxu0 0.0
        %2077 = vmatprep.subr.mxu0 0.0
        %2078 = vmatpush2.xpose.msra.mxu0 0.0
        %2079 = vmatprep.subr.mxu0 0.0
        %2080 = vmatpush2.xpose.msra.mxu0 0.0
        %2081 = vmatprep.subr.mxu0 0.0
        %2082 = vmatpush2.xpose.msra.mxu0 0.0
        %2083 = vmatprep.subr.mxu0 0.0
        %2084 = vmatpush2.xpose.msra.mxu0 0.0
        %2085 = vmatprep.subr.mxu0 0.0
        %2086 = vmatpush2.xpose.msra.mxu0 0.0
        %2087 = vmatprep.subr.mxu0 0.0
        %2088 = vmatpush2.xpose.msra.mxu0 0.0
        %2089 = vmatprep.subr.mxu0 0.0
        %2090 = vmatpush2.xpose.msra.mxu0 0.0
        %2091 = vmatprep.subr.mxu0 0.0
        %2092 = vmatpush2.xpose.msra.mxu0 0.0
        %2093 = vmatprep.subr.mxu0 0.0
        %2094 = vmatpush2.xpose.msra.mxu0 0.0
        %2095 = vmatprep.subr.mxu0 0.0
        %2096 = vmatpush2.xpose.msra.mxu0 0.0
        %2097 = vmatprep.subr.mxu0 0.0
        %2098 = vmatpush2.xpose.msra.mxu0 0.0
        %2099 = vmatprep.subr.mxu0 0.0
        %2100 = vmatpush2.xpose.msra.mxu0 0.0
        %2101 = vmatprep.mubr.f32.mxu0 0.0
        %2102 = vmatmul.mubr.f32.gmra.mxu0 %v2033
        %v2103 = vpop.f32.mrf.mxu0
        %v2104 = vadd.f32 %v421, %v2103
        %v2105 = vpop.f32.mrf.mxu0
        %2106 = vdwg.mxu0
        %v2107 = vsel %vm426, %v2104, -inf
        %2108 = vmax.xlane.f32.xlu0 %v2107
        %v2109 = vpop.xlane.xlu0 %2108
        %v2110 = vsub.f32 %v2104, %v2109
        %v2111 = vmul.f32 %v2110, 1.442695
        %v2112 = vpow.pop %v2111
        %v2113 = vsel %vm426, %v2112, 0.0
        %2114 = vadd.xlane.f32.xlu0 %v2113
        %v2115 = vpop.xlane.xlu0 %2114
        %v2116 = vrcp.pop %v2115
        %v2117 = vmul.f32 %v2112, %v2116
        %2118 = vrot.lane.b32.xlu0 %v1521, 40
        %v2119 = vpop.permute.xlu0 %2118
        %v2122 = vsel %vm426, %v2117, 0
        %2124 = vmatprep.subr.mxu0 0.0
        %2125 = vmatpush1.msra.mxu0 0.0
        %2126 = vmatprep.subr.mxu0 0.0
        %2127 = vmatpush1.msra.mxu0 0.0
        %2128 = vmatprep.subr.mxu0 0.0
        %2129 = vmatpush1.msra.mxu0 0.0
        %2130 = vmatprep.subr.mxu0 0.0
        %2131 = vmatpush1.msra.mxu0 0.0
        %2132 = vmatprep.subr.mxu0 0.0
        %2133 = vmatpush1.msra.mxu0 0.0
        %2134 = vmatprep.subr.mxu0 0.0
        %2135 = vmatpush1.msra.mxu0 0.0
        %2136 = vmatprep.subr.mxu0 0.0
        %2137 = vmatpush1.msra.mxu0 0.0
        %2138 = vmatprep.subr.mxu0 0.0
        %2139 = vmatpush1.msra.mxu0 0.0
        %2140 = vmatprep.subr.mxu0 0.0
        %2141 = vmatpush1.msra.mxu0 0.0
        %2142 = vmatprep.subr.mxu0 0.0
        %2143 = vmatpush1.msra.mxu0 0.0
        %2144 = vmatprep.subr.mxu0 0.0
        %2145 = vmatpush1.msra.mxu0 0.0
        %2146 = vmatprep.subr.mxu0 0.0
        %2147 = vmatpush1.msra.mxu0 0.0
        %2148 = vmatprep.subr.mxu0 0.0
        %2149 = vmatpush1.msra.mxu0 0.0
        %2150 = vmatprep.subr.mxu0 0.0
        %2151 = vmatpush1.msra.mxu0 0.0
        %2152 = vmatprep.subr.mxu0 0.0
        %2153 = vmatpush1.msra.mxu0 0.0
        %2154 = vmatprep.subr.mxu0 0.0
        %2155 = vmatpush1.msra.mxu0 %v2119
        %2156 = vmatprep.subr.mxu0 0.0
        %2157 = vmatpush2.msra.mxu0 0.0
        %2158 = vmatprep.subr.mxu0 0.0
        %2159 = vmatpush2.msra.mxu0 0.0
        %2160 = vmatprep.subr.mxu0 0.0
        %2161 = vmatpush2.msra.mxu0 0.0
        %2162 = vmatprep.subr.mxu0 0.0
        %2163 = vmatpush2.msra.mxu0 0.0
        %2164 = vmatprep.subr.mxu0 0.0
        %2165 = vmatpush2.msra.mxu0 0.0
        %2166 = vmatprep.subr.mxu0 0.0
        %2167 = vmatpush2.msra.mxu0 0.0
        %2168 = vmatprep.subr.mxu0 0.0
        %2169 = vmatpush2.msra.mxu0 0.0
        %2170 = vmatprep.subr.mxu0 0.0
        %2171 = vmatpush2.msra.mxu0 0.0
        %2172 = vmatprep.subr.mxu0 0.0
        %2173 = vmatpush2.msra.mxu0 0.0
        %2174 = vmatprep.subr.mxu0 0.0
        %2175 = vmatpush2.msra.mxu0 0.0
        %2176 = vmatprep.subr.mxu0 0.0
        %2177 = vmatpush2.msra.mxu0 0.0
        %2178 = vmatprep.subr.mxu0 0.0
        %2179 = vmatpush2.msra.mxu0 0.0
        %2180 = vmatprep.subr.mxu0 0.0
        %2181 = vmatpush2.msra.mxu0 0.0
        %2182 = vmatprep.subr.mxu0 0.0
        %2183 = vmatpush2.msra.mxu0 0.0
        %2184 = vmatprep.subr.mxu0 0.0
        %2185 = vmatpush2.msra.mxu0 0.0
        %2186 = vmatprep.subr.mxu0 0.0
        %2187 = vmatpush2.msra.mxu0 0.0
        %2188 = vmatprep.mubr.f32.mxu0 0.0
        %2189 = vmatmul.mubr.f32.gmra.mxu0 %v2122
        %v2190 = vpop.f32.mrf.mxu0
        %v2191 = vadd.f32 0.0, %v2190
        %v2192 = vpop.f32.mrf.mxu0
        %2193 = vdwg.mxu0
        %2195 = vrot.lane.b32.xlu0 %v2191, 24
        %v2196 = vpop.permute.xlu0 %2195
        %2198 = vst.msk [vmem:[#allocation2] sm:$0xff] %vm1102, %v2196
        %v2199 = vld [vmem:[#allocation2] sm:$0xff]
        %v2200 = vlaneseq
        %v2201 = vshrl.u32 %v2200, 7
        %v2202 = vsub.s32 3, %v2201
        %v2203 = vrot.slane %v1424, %v2202
        %v2205 = vsel %vm320, %v2199, 0
        %2207 = vmatprep.subr.mxu0 0.0
        %2208 = vmatpush1.msra.mxu0 0.0
        %2209 = vmatprep.subr.mxu0 0.0
        %2210 = vmatpush1.msra.mxu0 0.0
        %2211 = vmatprep.subr.mxu0 0.0
        %2212 = vmatpush1.msra.mxu0 0.0
        %2213 = vmatprep.subr.mxu0 0.0
        %2214 = vmatpush1.msra.mxu0 0.0
        %2215 = vmatprep.subr.mxu0 0.0
        %2216 = vmatpush1.msra.mxu0 0.0
        %2217 = vmatprep.subr.mxu0 0.0
        %2218 = vmatpush1.msra.mxu0 0.0
        %2219 = vmatprep.subr.mxu0 0.0
        %2220 = vmatpush1.msra.mxu0 0.0
        %2221 = vmatprep.subr.mxu0 0.0
        %2222 = vmatpush1.msra.mxu0 0.0
        %2223 = vmatprep.subr.mxu0 0.0
        %2224 = vmatpush1.msra.mxu0 0.0
        %2225 = vmatprep.subr.mxu0 0.0
        %2226 = vmatpush1.msra.mxu0 0.0
        %2227 = vmatprep.subr.mxu0 0.0
        %2228 = vmatpush1.msra.mxu0 0.0
        %2229 = vmatprep.subr.mxu0 0.0
        %2230 = vmatpush1.msra.mxu0 0.0
        %2231 = vmatprep.subr.mxu0 0.0
        %2232 = vmatpush1.msra.mxu0 %v1400
        %2233 = vmatprep.subr.mxu0 0.0
        %2234 = vmatpush1.msra.mxu0 %v1399
        %2235 = vmatprep.subr.mxu0 0.0
        %2236 = vmatpush1.msra.mxu0 %v1398
        %2237 = vmatprep.subr.mxu0 0.0
        %2238 = vmatpush1.msra.mxu0 %v1397
        %2239 = vmatprep.subr.mxu0 0.0
        %2240 = vmatpush2.msra.mxu0 0.0
        %2241 = vmatprep.subr.mxu0 0.0
        %2242 = vmatpush2.msra.mxu0 0.0
        %2243 = vmatprep.subr.mxu0 0.0
        %2244 = vmatpush2.msra.mxu0 0.0
        %2245 = vmatprep.subr.mxu0 0.0
        %2246 = vmatpush2.msra.mxu0 0.0
        %2247 = vmatprep.subr.mxu0 0.0
        %2248 = vmatpush2.msra.mxu0 0.0
        %2249 = vmatprep.subr.mxu0 0.0
        %2250 = vmatpush2.msra.mxu0 0.0
        %2251 = vmatprep.subr.mxu0 0.0
        %2252 = vmatpush2.msra.mxu0 0.0
        %2253 = vmatprep.subr.mxu0 0.0
        %2254 = vmatpush2.msra.mxu0 0.0
        %2255 = vmatprep.subr.mxu0 0.0
        %2256 = vmatpush2.msra.mxu0 0.0
        %2257 = vmatprep.subr.mxu0 0.0
        %2258 = vmatpush2.msra.mxu0 0.0
        %2259 = vmatprep.subr.mxu0 0.0
        %2260 = vmatpush2.msra.mxu0 0.0
        %2261 = vmatprep.subr.mxu0 0.0
        %2262 = vmatpush2.msra.mxu0 0.0
        %2263 = vmatprep.subr.mxu0 0.0
        %2264 = vmatpush2.msra.mxu0 0.0
        %2265 = vmatprep.subr.mxu0 0.0
        %2266 = vmatpush2.msra.mxu0 0.0
        %2267 = vmatprep.subr.mxu0 0.0
        %2268 = vmatpush2.msra.mxu0 0.0
        %2269 = vmatprep.subr.mxu0 0.0
        %2270 = vmatpush2.msra.mxu0 0.0
        %2271 = vmatprep.mubr.f32.mxu0 0.0
        %2272 = vmatmul.mubr.f32.gmra.mxu0 %v2205
        %v2273 = vpop.f32.mrf.mxu0
        %v2274 = vadd.f32 %v2203, %v2273
        %v2275 = vpop.f32.mrf.mxu0
        %2276 = vdwg.mxu0
        %v2277 = vadd.f32 %v2274, %v1390
        %v2278 = vsel %vm320, %v2277, 0.0
        %2279 = vadd.xlane.f32.xlu0 %v2278
        %v2280 = vpop.xlane.xlu0 %2279
        %v2281 = vmul.f32 %v2280, %v1186
        %v2282 = vsub.f32 %v2277, %v2281
        %v2283 = vmul.f32 %v2282, %v2282
        %v2284 = vsel %vm320, %v2283, 0.0
        %2285 = vadd.xlane.f32.xlu0 %v2284
        %v2286 = vpop.xlane.xlu0 %2285
        %v2287 = vmul.f32 %v2286, %v1186
        %v2288 = vadd.f32 %v2287, 1e-12
        %v2289 = vrsqrt.pop %v2288
        %v2290 = vmul.f32 %v2282, %v2289
        %v2291 = vlaneseq
        %v2292 = vshrl.u32 %v2291, 7
        %v2293 = vsub.s32 5, %v2292
        %v2294 = vrot.slane %v1424, %v2293
        %v2295 = vmul.f32 %v2290, %v2294
        %v2296 = vlaneseq
        %v2297 = vshrl.u32 %v2296, 7
        %v2298 = vsub.s32 6, %v2297
        %v2299 = vrot.slane %v1424, %v2298
        %v2300 = vadd.f32 %v2295, %v2299
        %v2301 = vlaneseq
        %v2302 = vshrl.u32 %v2301, 7
        %v2303 = vsub.s32 4, %v2302
        %v2304 = vrot.slane %v1424, %v2303
        %v2306 = vsel %vm320, %v2300, 0
        %2308 = vmatprep.subr.mxu0 0.0
        %2309 = vmatpush1.msra.mxu0 0.0
        %2310 = vmatprep.subr.mxu0 0.0
        %2311 = vmatpush1.msra.mxu0 0.0
        %2312 = vmatprep.subr.mxu0 0.0
        %2313 = vmatpush1.msra.mxu0 0.0
        %2314 = vmatprep.subr.mxu0 0.0
        %2315 = vmatpush1.msra.mxu0 0.0
        %2316 = vmatprep.subr.mxu0 0.0
        %2317 = vmatpush1.msra.mxu0 0.0
        %2318 = vmatprep.subr.mxu0 0.0
        %2319 = vmatpush1.msra.mxu0 0.0
        %2320 = vmatprep.subr.mxu0 0.0
        %2321 = vmatpush1.msra.mxu0 0.0
        %2322 = vmatprep.subr.mxu0 0.0
        %2323 = vmatpush1.msra.mxu0 0.0
        %2324 = vmatprep.subr.mxu0 0.0
        %2325 = vmatpush1.msra.mxu0 0.0
        %2326 = vmatprep.subr.mxu0 0.0
        %2327 = vmatpush1.msra.mxu0 0.0
        %2328 = vmatprep.subr.mxu0 0.0
        %2329 = vmatpush1.msra.mxu0 0.0
        %2330 = vmatprep.subr.mxu0 0.0
        %2331 = vmatpush1.msra.mxu0 0.0
        %2332 = vmatprep.subr.mxu0 0.0
        %2333 = vmatpush1.msra.mxu0 %v1405
        %2334 = vmatprep.subr.mxu0 0.0
        %2335 = vmatpush1.msra.mxu0 %v1404
        %2336 = vmatprep.subr.mxu0 0.0
        %2337 = vmatpush1.msra.mxu0 %v1403
        %2338 = vmatprep.subr.mxu0 0.0
        %2339 = vmatpush1.msra.mxu0 %v1402
        %2340 = vmatprep.subr.mxu0 0.0
        %2341 = vmatpush2.msra.mxu0 0.0
        %2342 = vmatprep.subr.mxu0 0.0
        %2343 = vmatpush2.msra.mxu0 0.0
        %2344 = vmatprep.subr.mxu0 0.0
        %2345 = vmatpush2.msra.mxu0 0.0
        %2346 = vmatprep.subr.mxu0 0.0
        %2347 = vmatpush2.msra.mxu0 0.0
        %2348 = vmatprep.subr.mxu0 0.0
        %2349 = vmatpush2.msra.mxu0 0.0
        %2350 = vmatprep.subr.mxu0 0.0
        %2351 = vmatpush2.msra.mxu0 0.0
        %2352 = vmatprep.subr.mxu0 0.0
        %2353 = vmatpush2.msra.mxu0 0.0
        %2354 = vmatprep.subr.mxu0 0.0
        %2355 = vmatpush2.msra.mxu0 0.0
        %2356 = vmatprep.subr.mxu0 0.0
        %2357 = vmatpush2.msra.mxu0 0.0
        %2358 = vmatprep.subr.mxu0 0.0
        %2359 = vmatpush2.msra.mxu0 0.0
        %2360 = vmatprep.subr.mxu0 0.0
        %2361 = vmatpush2.msra.mxu0 0.0
        %2362 = vmatprep.subr.mxu0 0.0
        %2363 = vmatpush2.msra.mxu0 0.0
        %2364 = vmatprep.subr.mxu0 0.0
        %2365 = vmatpush2.msra.mxu0 0.0
        %2366 = vmatprep.subr.mxu0 0.0
        %2367 = vmatpush2.msra.mxu0 0.0
        %2368 = vmatprep.subr.mxu0 0.0
        %2369 = vmatpush2.msra.mxu0 0.0
        %2370 = vmatprep.subr.mxu0 0.0
        %2371 = vmatpush2.msra.mxu0 0.0
        %2372 = vmatprep.mubr.f32.mxu0 0.0
        %2373 = vmatmul.mubr.f32.gmra.mxu0 %v2306
        %v2374 = vpop.f32.mrf.mxu0
        %v2375 = vadd.f32 %v2304, %v2374
        %v2376 = vpop.f32.mrf.mxu0
        %2377 = vdwg.mxu0
        %v2378 = vmul.f32 %v2375, 0.5
        %v2379 = vmul.f32 %v2375, 0.044715
        %v2380 = vmul.f32 %v2379, %v2375
        %v2381 = vmul.f32 %v2380, %v2375
        %v2382 = vadd.f32 %v2375, %v2381
        %v2383 = vmul.f32 %v2382, 0.7978846
        %v2384 = vtanh.pop %v2383
        %v2385 = vadd.f32 %v2384, 1.0
        %v2386 = vmul.f32 %v2378, %v2385
        %v2387 = vlaneseq
        %v2388 = vshrl.u32 %v2387, 7
        %v2389 = vsub.s32 7, %v2388
        %v2390 = vrot.slane %v1424, %v2389
        %2391 = vmatprep.subr.mxu0 0.0
        %2392 = vmatpush1.msra.mxu0 %v1422
        %2393 = vmatprep.subr.mxu0 0.0
        %2394 = vmatpush1.msra.mxu0 %v1421
        %2395 = vmatprep.subr.mxu0 0.0
        %2396 = vmatpush1.msra.mxu0 %v1420
        %2397 = vmatprep.subr.mxu0 0.0
        %2398 = vmatpush1.msra.mxu0 %v1419
        %2399 = vmatprep.subr.mxu0 0.0
        %2400 = vmatpush1.msra.mxu0 %v1418
        %2401 = vmatprep.subr.mxu0 0.0
        %2402 = vmatpush1.msra.mxu0 %v1417
        %2403 = vmatprep.subr.mxu0 0.0
        %2404 = vmatpush1.msra.mxu0 %v1416
        %2405 = vmatprep.subr.mxu0 0.0
        %2406 = vmatpush1.msra.mxu0 %v1415
        %2407 = vmatprep.subr.mxu0 0.0
        %2408 = vmatpush1.msra.mxu0 %v1414
        %2409 = vmatprep.subr.mxu0 0.0
        %2410 = vmatpush1.msra.mxu0 %v1413
        %2411 = vmatprep.subr.mxu0 0.0
        %2412 = vmatpush1.msra.mxu0 %v1412
        %2413 = vmatprep.subr.mxu0 0.0
        %2414 = vmatpush1.msra.mxu0 %v1411
        %2415 = vmatprep.subr.mxu0 0.0
        %2416 = vmatpush1.msra.mxu0 %v1410
        %2417 = vmatprep.subr.mxu0 0.0
        %2418 = vmatpush1.msra.mxu0 %v1409
        %2419 = vmatprep.subr.mxu0 0.0
        %2420 = vmatpush1.msra.mxu0 %v1408
        %2421 = vmatprep.subr.mxu0 0.0
        %2422 = vmatpush1.msra.mxu0 %v1407
        %2423 = vmatprep.subr.mxu0 0.0
        %2424 = vmatpush2.msra.mxu0 0.0
        %2425 = vmatprep.subr.mxu0 0.0
        %2426 = vmatpush2.msra.mxu0 0.0
        %2427 = vmatprep.subr.mxu0 0.0
        %2428 = vmatpush2.msra.mxu0 0.0
        %2429 = vmatprep.subr.mxu0 0.0
        %2430 = vmatpush2.msra.mxu0 0.0
        %2431 = vmatprep.subr.mxu0 0.0
        %2432 = vmatpush2.msra.mxu0 0.0
        %2433 = vmatprep.subr.mxu0 0.0
        %2434 = vmatpush2.msra.mxu0 0.0
        %2435 = vmatprep.subr.mxu0 0.0
        %2436 = vmatpush2.msra.mxu0 0.0
        %2437 = vmatprep.subr.mxu0 0.0
        %2438 = vmatpush2.msra.mxu0 0.0
        %2439 = vmatprep.subr.mxu0 0.0
        %2440 = vmatpush2.msra.mxu0 0.0
        %2441 = vmatprep.subr.mxu0 0.0
        %2442 = vmatpush2.msra.mxu0 0.0
        %2443 = vmatprep.subr.mxu0 0.0
        %2444 = vmatpush2.msra.mxu0 0.0
        %2445 = vmatprep.subr.mxu0 0.0
        %2446 = vmatpush2.msra.mxu0 0.0
        %2447 = vmatprep.subr.mxu0 0.0
        %2448 = vmatpush2.msra.mxu0 0.0
        %2449 = vmatprep.subr.mxu0 0.0
        %2450 = vmatpush2.msra.mxu0 0.0
        %2451 = vmatprep.subr.mxu0 0.0
        %2452 = vmatpush2.msra.mxu0 0.0
        %2453 = vmatprep.subr.mxu0 0.0
        %2454 = vmatpush2.msra.mxu0 0.0
        %2455 = vmatprep.mubr.f32.mxu0 0.0
        %2456 = vmatmul.mubr.f32.gmra.mxu0 %v2386
        %v2457 = vpop.f32.mrf.mxu0
        %v2458 = vadd.f32 %v2390, %v2457
        %v2459 = vpop.f32.mrf.mxu0
        %2460 = vdwg.mxu0
        %v2461 = vadd.f32 %v2458, %v2300
        %v2462 = vsel %vm320, %v2461, 0.0
        %2463 = vadd.xlane.f32.xlu0 %v2462
        %v2464 = vpop.xlane.xlu0 %2463
        %v2465 = vmul.f32 %v2464, %v1186
        %v2466 = vsub.f32 %v2461, %v2465
        %v2467 = vmul.f32 %v2466, %v2466
        %v2468 = vsel %vm320, %v2467, 0.0
        %2469 = vadd.xlane.f32.xlu0 %v2468
        %v2470 = vpop.xlane.xlu0 %2469
        %v2471 = vmul.f32 %v2470, %v1186
        %v2472 = vadd.f32 %v2471, 1e-12
        %v2473 = vrsqrt.pop %v2472
        %v2474 = vmul.f32 %v2466, %v2473
        %v2475 = vlaneseq
        %v2476 = vshrl.u32 %v2475, 7
        %v2477 = vsub.s32 0, %v2476
        %v2478 = vrot.slane %v1425, %v2477
        %v2479 = vmul.f32 %v2474, %v2478
        %v2480 = vlaneseq
        %v2481 = vshrl.u32 %v2480, 7
        %v2482 = vsub.s32 1, %v2481
        %v2483 = vrot.slane %v1425, %v2482
        %v2484 = vadd.f32 %v2479, %v2483
        %2485 = vst.msk [vmem:[%s280] sm:$0xff] %vm320, %v2484
        %s2486 = sand.u32 %s186, 1
        %s2487 = scalar_lea.sflag [#allocation4], %s2486
        %s2488 = sand.u32 %s186, 1
        %s2489 = smul.addr %s2488, 8
        %s2490 = scalar_lea.vmem [#allocation3], %s2489
        // Predicated region
        $region49: #{tpu_custom_call.1} parent=47 // pred_check
          %p2491 = pneg %p196
        $region50: #{tpu_custom_call.1} parent=47 // pred_check_branch
          %2493 = sbr.rel (%p2491) target = $region52
        $region51: #{tpu_custom_call.1} parent=47 // pred_region
          %s2495 = ssub.s32 128, 128
          %2496 = vsyncadd %s2487, %s2495
          %s2497 = smul.addr %s21, 128
          %s2498 = scalar_lea.hbm %s7, %s2497
          %s2500 = sshll.u32 %s2490, 4
          %s2501 = int_to_ptr.vmem [resolvable:$true] %s2500
          %2503 = dma.vmem_to_hbm [thread:$0]  %s2501, 128, %s2498, %s2487
        $region52: #{tpu_custom_call.1} parent=47 // pred_fallthru
          _
      $region48: #{tpu_custom_call.1} parent=5 // pred_fallthru
        _
      %p2504 = scmp.le.s32.totalorder 2, %s16
      // Predicated region
      $region53: #{tpu_custom_call.1} parent=5 // pred_check
        %p2505 = pneg %p2504
      $region54: #{tpu_custom_call.1} parent=5 // pred_check_branch
        %2507 = sbr.rel (%p2505) target = $region56
      $region55: #{tpu_custom_call.1} parent=5 // pred_region
        %s2508 = ssub.s32 %s16, 2
        // Predicated region
        $region57: #{tpu_custom_call.1} parent=55 // pred_check
          %p2509 = pneg %p202
        $region58: #{tpu_custom_call.1} parent=55 // pred_check_branch
          %2511 = sbr.rel (%p2509) target = $region60
        $region59: #{tpu_custom_call.1} parent=55 // pred_region
          %s2512 = sand.u32 %s187, 1
          %s2513 = scalar_lea.sflag [#allocation4], %s2512
          %s2514 = sand.u32 %s187, 1
          %s2515 = smul.addr %s2514, 8
          %s2516 = scalar_lea.vmem [#allocation3], %s2515
          %2517 = dma.done %s2513, 128
        $region60: #{tpu_custom_call.1} parent=55 // pred_fallthru
          _
      $region56: #{tpu_custom_call.1} parent=5 // pred_fallthru
        _
    $region6: #{tpu_custom_call.1} parent=1 // loop_footer
      %s20 = sadd.s32 1, %s16
    $region7: #{tpu_custom_call.1} parent=1 // loop_footer_branch
      %15 = sbr.rel target = $region3
    $region8: #{tpu_custom_call.1} parent=1 // loop_exit
      _
    %2518 = vsyncpa [#allocation4], 1
    %s2519 = scalar_lea.sflag [#allocation4], 1
    %2520 = vsyncpa %s2519, 1

</llo_original>
